<compile_context>
chip_gen: v6e
topology: v6e:2x2x1
jax: 0.10.0
libtpu: 0.0.40
codegen_flags: <defaults>
</compile_context>

<pallas_src>
import jax
import jax.numpy as jnp
from jax import lax
from jax.experimental import pallas as pl
from jax.experimental.pallas import tpu as pltpu


# ----------------------------- fused Pallas kernel ---------------------------

def _make_sentiment_kernel(T, B, H, num_layers):
    """Build the fused forward kernel: num_layers bidirectional LSTM layers
    followed by the linear decoder, everything resident in VMEM."""
    G4 = 4 * H       # per-direction gate width, PyTorch order (i, f, g, o)
    G8 = 8 * H       # fused [fwd gates | bwd gates]

    def kernel(*refs):
        x_ref = refs[0]
        layer_refs = [(refs[1 + 3 * l], refs[2 + 3 * l], refs[3 + 3 * l])
                      for l in range(num_layers)]           # (w_ih, w_hh, b)
        base = 1 + 3 * num_layers
        wdec_ref, bdec_ref, out_ref = refs[base], refs[base + 1], refs[base + 2]
        yf_scr, yb_scr = refs[base + 3], refs[base + 4]      # (T, B, H) each

        def cell(gates, c):
            # gates: (B, 4H), layout [i|f|g|o].  Full-width activations (EUP),
            # then static lane slices.
            sig = jax.nn.sigmoid(gates)
            tah = jnp.tanh(gates)
            i = sig[:, 0 * H:1 * H]
            f = sig[:, 1 * H:2 * H]
            g = tah[:, 2 * H:3 * H]
            o = sig[:, 3 * H:4 * H]
            c_new = f * c + i * g
            h_new = o * jnp.tanh(c_new)
            return h_new, c_new

        def run_layer(gx, whh_ref, is_last):
            # gx: (T, B, 8H) precomputed input projection (+bias).
            # Recurrence carries only h @ W_hh (block-diag fwd|bwd).
            h = jnp.zeros((B, 2 * H), jnp.float32)           # [h_fwd | h_bwd]
            c_f = jnp.zeros((B, H), jnp.float32)
            c_b = jnp.zeros((B, H), jnp.float32)
            h_f0 = h_b0 = h_fT = h_bT = None
            for t in range(T):                               # static unroll
                gates_h = jnp.dot(h, whh_ref[...],
                                  preferred_element_type=jnp.float32)  # (B,8H)
                gf = gates_h[:, :G4] + gx[t, :, :G4]             # fwd @ time t
                gb = gates_h[:, G4:] + gx[T - 1 - t, :, G4:]     # bwd @ time T-1-t
                h_f, c_f = cell(gf, c_f)
                h_b, c_b = cell(gb, c_b)
                if is_last:
                    # Decoder only consumes states[0] and states[-1].
                    if t == 0:
                        h_f0, h_bT = h_f, h_b                    # h_b is time T-1
                    if t == T - 1:
                        h_fT, h_b0 = h_f, h_b                    # h_b is time 0
                else:
                    yf_scr[t] = h_f
                    yb_scr[T - 1 - t] = h_b
                h = jnp.concatenate([h_f, h_b], axis=-1)
            return h_f0, h_b0, h_fT, h_bT

        # ---- layer 0: hoisted input projection, one big matmul --------------
        x = x_ref[...].reshape(T * B, -1)                        # (T*B, E)
        wih0, whh0, b0 = layer_refs[0]
        gx = (jnp.dot(x, wih0[...], preferred_element_type=jnp.float32)
              + b0[...]).reshape(T, B, G8)
        caps = run_layer(gx, whh0, is_last=(num_layers == 1))

        # ---- layers 1..L-1: consume previous layer's scratch output ---------
        for l in range(1, num_layers):
            wih, whh, b = layer_refs[l]
            yf = yf_scr[...].reshape(T * B, H)
            yb = yb_scr[...].reshape(T * B, H)
            gx = (jnp.dot(yf, wih[0:H, :], preferred_element_type=jnp.float32)
                  + jnp.dot(yb, wih[H:2 * H, :], preferred_element_type=jnp.float32)
                  + b[...]).reshape(T, B, G8)
            caps = run_layer(gx, whh, is_last=(l == num_layers - 1))

        # ---- decoder epilogue ------------------------------------------------
        h_f0, h_b0, h_fT, h_bT = caps
        # encoding = concat([states[0], states[-1]], dim=1)
        encoding = jnp.concatenate([h_f0, h_b0, h_fT, h_bT], axis=1)  # (B, 4H)
        out_ref[...] = (jnp.dot(encoding, wdec_ref[...],
                                preferred_element_type=jnp.float32)
                        + bdec_ref[...])

    return kernel


def _fuse_bidir_layer(layer_p):
    """Pack one bidirectional layer's weights: W_ih -> (In, 8H), bias -> (1, 8H),
    W_hh -> block-diag (2H, 8H) so the recurrence is one matmul per step."""
    wf, wb = layer_p["fwd"], layer_p["bwd"]
    H = wf["w_hh"].shape[0]
    wih = jnp.concatenate([wf["w_ih"], wb["w_ih"]], axis=1)          # (In, 8H)
    b = jnp.concatenate([wf["b"], wb["b"]], axis=1)                  # (1, 8H)
    z = jnp.zeros((H, 4 * H), jnp.float32)
    whh = jnp.concatenate(
        [jnp.concatenate([wf["w_hh"], z], axis=1),
         jnp.concatenate([z, wb["w_hh"]], axis=1)], axis=0)          # (2H, 8H)
    return wih, whh, b


# ------------------------------ model wrapper --------------------------------

@jax.jit
def sentiment_net_forward(params, tokens):
    """tokens: (B, T) int32 -> logits (B, labels). Mirrors SentimentNet.forward."""
    # Frozen embedding lookup + permute([1,0,2]) kept as plain-JAX glue.
    emb = jnp.take(params["embedding"], tokens, axis=0)              # (B, T, E)
    x = jnp.transpose(emb, (1, 0, 2)).astype(jnp.float32)            # (T, B, E)
    T, B, _ = x.shape
    H = params["lstm"][0]["fwd"]["w_hh"].shape[0]
    num_layers = len(params["lstm"])
    labels = params["decoder"]["w"].shape[1]

    # TODO(synk): only the bidirectional configuration is fused here; the
    # unidirectional branch of the PyTorch module is not implemented.
    assert all("bwd" in lp for lp in params["lstm"])

    inputs = [x]
    for lp in params["lstm"]:
        inputs += list(_fuse_bidir_layer(lp))
    inputs += [params["decoder"]["w"], params["decoder"]["b"]]

    kernel = _make_sentiment_kernel(T, B, H, num_layers)
    vmem = pl.BlockSpec(memory_space=pltpu.MemorySpace.VMEM)
    return pl.pallas_call(
        kernel,
        out_shape=jax.ShapeDtypeStruct((B, labels), jnp.float32),
        in_specs=[vmem] * len(inputs),
        out_specs=vmem,
        scratch_shapes=[pltpu.VMEM((T, B, H), jnp.float32),   # layer out (fwd)
                        pltpu.VMEM((T, B, H), jnp.float32)],  # layer out (bwd)
    )(*inputs)


# --------------------------- pure-JAX reference -------------------------------

def _lstm_dir_ref(x, w_ih, w_hh, b):
    H = w_hh.shape[0]
    B = x.shape[1]

    def step(carry, x_t):
        h, c = carry
        gates = x_t @ w_ih + h @ w_hh + b
        i = jax.nn.sigmoid(gates[:, :H])
        f = jax.nn.sigmoid(gates[:, H:2 * H])
        g = jnp.tanh(gates[:, 2 * H:3 * H])
        o = jax.nn.sigmoid(gates[:, 3 * H:])
        c = f * c + i * g
        h = o * jnp.tanh(c)
        return (h, c), h

    init = (jnp.zeros((B, H), jnp.float32), jnp.zeros((B, H), jnp.float32))
    _, ys = lax.scan(step, init, x)
    return ys


def reference_forward(params, tokens):
    emb = jnp.take(params["embedding"], tokens, axis=0)
    x = jnp.transpose(emb, (1, 0, 2)).astype(jnp.float32)
    for lp in params["lstm"]:
        outs = [_lstm_dir_ref(x, lp["fwd"]["w_ih"], lp["fwd"]["w_hh"], lp["fwd"]["b"])]
        if "bwd" in lp:
            outs.append(_lstm_dir_ref(x[::-1], lp["bwd"]["w_ih"],
                                      lp["bwd"]["w_hh"], lp["bwd"]["b"])[::-1])
        x = jnp.concatenate(outs, axis=-1)
    enc = jnp.concatenate([x[0], x[-1]], axis=1)
    return enc @ params["decoder"]["w"] + params["decoder"]["b"]


# ------------------------------ parameter init --------------------------------

def init_params(key, vocab_size, embed_size, num_hiddens, num_layers,
                bidirectional, labels):
    k_emb, k_dec = jax.random.split(key)
    embedding = jax.random.normal(k_emb, (vocab_size, embed_size), jnp.float32)

    num_dirs = 2 if bidirectional else 1
    bound = 1.0 / float(num_hiddens) ** 0.5
    lstm = []
    in_size = embed_size
    for layer in range(num_layers):
        layer_p = {}
        for d, name in enumerate(["fwd", "bwd"][:num_dirs]):
            kk = jax.random.fold_in(key, 100 + layer * 10 + d)
            k1, k2, k3, k4 = jax.random.split(kk, 4)
            layer_p[name] = {
                "w_ih": jax.random.uniform(k1, (in_size, 4 * num_hiddens),
                                           jnp.float32, -bound, bound),
                "w_hh": jax.random.uniform(k2, (num_hiddens, 4 * num_hiddens),
                                           jnp.float32, -bound, bound),
                "b": (jax.random.uniform(k3, (1, 4 * num_hiddens),
                                         jnp.float32, -bound, bound)
                      + jax.random.uniform(k4, (1, 4 * num_hiddens),
                                           jnp.float32, -bound, bound)),
            }
        lstm.append(layer_p)
        in_size = num_dirs * num_hiddens

    dec_in = 2 * num_dirs * num_hiddens   # num_hiddens*4 (bi) as in PyTorch module
    dbound = 1.0 / float(dec_in) ** 0.5
    kw, kb = jax.random.split(k_dec)
    decoder = {
        "w": jax.random.uniform(kw, (dec_in, labels), jnp.float32, -dbound, dbound),
        "b": jax.random.uniform(kb, (1, labels), jnp.float32, -dbound, dbound),
    }
    return {"embedding": embedding, "lstm": lstm, "decoder": decoder}


# ----------------------------------- main -------------------------------------

if __name__ == "__main__":
    vocab_size, embed_size, num_hiddens = 50, 32, 32
    num_layers, bidirectional, labels = 2, True, 2
    batch, seq = 2, 8

    key = jax.random.PRNGKey(0)
    k_param, k_tok = jax.random.split(key)
    params = init_params(k_param, vocab_size, embed_size, num_hiddens,
                         num_layers, bidirectional, labels)
    tokens = jax.random.randint(k_tok, (batch, seq), 0, vocab_size,
                                dtype=jnp.int32)

    out = sentiment_net_forward(params, tokens)
    out = jax.block_until_ready(out)

    ref = reference_forward(params, tokens)
    assert out.shape == (batch, labels), out.shape
    assert jnp.allclose(out, ref, rtol=1e-4, atol=1e-4), (out, ref)

    print("KERNEL_OK")
</pallas_src>

<mosaic_0001>
module attributes {stable_mosaic.version = 11 : i64} {
  func.func @kernel(%arg0: memref<8x2x32xf32, #tpu.memory_space<vmem>>, %arg1: memref<32x256xf32, #tpu.memory_space<vmem>>, %arg2: memref<64x256xf32, #tpu.memory_space<vmem>>, %arg3: memref<1x256xf32, #tpu.memory_space<vmem>>, %arg4: memref<64x256xf32, #tpu.memory_space<vmem>>, %arg5: memref<64x256xf32, #tpu.memory_space<vmem>>, %arg6: memref<1x256xf32, #tpu.memory_space<vmem>>, %arg7: memref<128x2xf32, #tpu.memory_space<vmem>>, %arg8: memref<1x2xf32, #tpu.memory_space<vmem>>, %arg9: memref<2x2xf32, #tpu.memory_space<vmem>>, %arg10: memref<8x2x32xf32, #tpu.memory_space<vmem>>, %arg11: memref<8x2x32xf32, #tpu.memory_space<vmem>>) attributes {dimension_semantics = [], scalar_prefetch = 0 : i64, scratch_operands = 2 : i64, tpu.core_type = #tpu.core_type<tc>} {
    %c0 = arith.constant 0 : index
    %c0_0 = arith.constant 0 : index
    %c0_1 = arith.constant 0 : index
    %0 = vector.load %arg0[%c0, %c0_0, %c0_1] : memref<8x2x32xf32, #tpu.memory_space<vmem>>, vector<8x2x32xf32>
    %1 = vector.shape_cast %0 : vector<8x2x32xf32> to vector<16x32xf32>
    %c0_2 = arith.constant 0 : index
    %c0_3 = arith.constant 0 : index
    %2 = vector.load %arg1[%c0_2, %c0_3] : memref<32x256xf32, #tpu.memory_space<vmem>>, vector<32x256xf32>
    %cst = arith.constant dense<0.000000e+00> : vector<16x256xf32>
    %3 = tpu.matmul %1, %2, %cst {dimension_numbers = #tpu.dot_dimension_numbers<[1], [0], [0], [1], [0, 0, 1, 1], [], []>} : vector<16x32xf32>, vector<32x256xf32>, vector<16x256xf32> -> vector<16x256xf32>
    %c0_4 = arith.constant 0 : index
    %c0_5 = arith.constant 0 : index
    %4 = vector.load %arg3[%c0_4, %c0_5] : memref<1x256xf32, #tpu.memory_space<vmem>>, vector<1x256xf32>
    %5 = vector.broadcast %4 : vector<1x256xf32> to vector<16x256xf32>
    %6 = arith.addf %3, %5 : vector<16x256xf32>
    %7 = vector.shape_cast %6 : vector<16x256xf32> to vector<8x2x256xf32>
    %cst_6 = arith.constant 0.000000e+00 : f32
    %8 = vector.broadcast %cst_6 : f32 to vector<2x64xf32>
    %cst_7 = arith.constant 0.000000e+00 : f32
    %9 = vector.broadcast %cst_7 : f32 to vector<2x32xf32>
    %cst_8 = arith.constant 0.000000e+00 : f32
    %10 = vector.broadcast %cst_8 : f32 to vector<2x32xf32>
    %c0_9 = arith.constant 0 : index
    %c0_10 = arith.constant 0 : index
    %11 = vector.load %arg2[%c0_9, %c0_10] : memref<64x256xf32, #tpu.memory_space<vmem>>, vector<64x256xf32>
    %cst_11 = arith.constant dense<0.000000e+00> : vector<2x256xf32>
    %12 = tpu.matmul %8, %11, %cst_11 {dimension_numbers = #tpu.dot_dimension_numbers<[1], [0], [0], [1], [0, 0, 1, 1], [], []>} : vector<2x64xf32>, vector<64x256xf32>, vector<2x256xf32> -> vector<2x256xf32>
    %13 = vector.extract_strided_slice %12 {offsets = [0, 0], sizes = [2, 128], strides = [1, 1]} : vector<2x256xf32> to vector<2x128xf32>
    %14 = vector.extract_strided_slice %7 {offsets = [0, 0, 0], sizes = [1, 2, 128], strides = [1, 1, 1]} : vector<8x2x256xf32> to vector<1x2x128xf32>
    %15 = vector.shape_cast %14 : vector<1x2x128xf32> to vector<2x128xf32>
    %16 = arith.addf %13, %15 : vector<2x128xf32>
    %17 = vector.extract_strided_slice %12 {offsets = [0, 128], sizes = [2, 128], strides = [1, 1]} : vector<2x256xf32> to vector<2x128xf32>
    %18 = vector.extract_strided_slice %7 {offsets = [7, 0, 128], sizes = [1, 2, 128], strides = [1, 1, 1]} : vector<8x2x256xf32> to vector<1x2x128xf32>
    %19 = vector.shape_cast %18 : vector<1x2x128xf32> to vector<2x128xf32>
    %20 = arith.addf %17, %19 : vector<2x128xf32>
    %21 = arith.negf %16 : vector<2x128xf32>
    %22 = math.exp %21 : vector<2x128xf32>
    %cst_12 = arith.constant 1.000000e+00 : f32
    %23 = vector.broadcast %cst_12 : f32 to vector<2x128xf32>
    %24 = arith.addf %23, %22 : vector<2x128xf32>
    %25 = arith.divf %23, %24 : vector<2x128xf32>
    %26 = math.tanh %16 : vector<2x128xf32>
    %27 = vector.extract_strided_slice %25 {offsets = [0, 0], sizes = [2, 32], strides = [1, 1]} : vector<2x128xf32> to vector<2x32xf32>
    %28 = vector.extract_strided_slice %25 {offsets = [0, 32], sizes = [2, 32], strides = [1, 1]} : vector<2x128xf32> to vector<2x32xf32>
    %29 = vector.extract_strided_slice %26 {offsets = [0, 64], sizes = [2, 32], strides = [1, 1]} : vector<2x128xf32> to vector<2x32xf32>
    %30 = vector.extract_strided_slice %25 {offsets = [0, 96], sizes = [2, 32], strides = [1, 1]} : vector<2x128xf32> to vector<2x32xf32>
    %31 = arith.mulf %28, %9 : vector<2x32xf32>
    %32 = arith.mulf %27, %29 : vector<2x32xf32>
    %33 = arith.addf %31, %32 : vector<2x32xf32>
    %34 = math.tanh %33 : vector<2x32xf32>
    %35 = arith.mulf %30, %34 : vector<2x32xf32>
    %36 = arith.negf %20 : vector<2x128xf32>
    %37 = math.exp %36 : vector<2x128xf32>
    %cst_13 = arith.constant 1.000000e+00 : f32
    %38 = vector.broadcast %cst_13 : f32 to vector<2x128xf32>
    %39 = arith.addf %38, %37 : vector<2x128xf32>
    %40 = arith.divf %38, %39 : vector<2x128xf32>
    %41 = math.tanh %20 : vector<2x128xf32>
    %42 = vector.extract_strided_slice %40 {offsets = [0, 0], sizes = [2, 32], strides = [1, 1]} : vector<2x128xf32> to vector<2x32xf32>
    %43 = vector.extract_strided_slice %40 {offsets = [0, 32], sizes = [2, 32], strides = [1, 1]} : vector<2x128xf32> to vector<2x32xf32>
    %44 = vector.extract_strided_slice %41 {offsets = [0, 64], sizes = [2, 32], strides = [1, 1]} : vector<2x128xf32> to vector<2x32xf32>
    %45 = vector.extract_strided_slice %40 {offsets = [0, 96], sizes = [2, 32], strides = [1, 1]} : vector<2x128xf32> to vector<2x32xf32>
    %46 = arith.mulf %43, %10 : vector<2x32xf32>
    %47 = arith.mulf %42, %44 : vector<2x32xf32>
    %48 = arith.addf %46, %47 : vector<2x32xf32>
    %49 = math.tanh %48 : vector<2x32xf32>
    %50 = arith.mulf %45, %49 : vector<2x32xf32>
    %c0_14 = arith.constant 0 : index
    %c0_15 = arith.constant 0 : index
    %c0_16 = arith.constant 0 : index
    %51 = vector.load %arg10[%c0_14, %c0_15, %c0_16] : memref<8x2x32xf32, #tpu.memory_space<vmem>>, vector<1x2x32xf32>
    %52 = vector.shape_cast %51 : vector<1x2x32xf32> to vector<2x32xf32>
    %53 = vector.shape_cast %35 : vector<2x32xf32> to vector<1x2x32xf32>
    tpu.vector_store %arg10[%c0_14, %c0_15, %c0_16], %53 {strides = array<i32>} : memref<8x2x32xf32, #tpu.memory_space<vmem>>, vector<1x2x32xf32>,
    %c7 = arith.constant 7 : index
    %c0_17 = arith.constant 0 : index
    %c0_18 = arith.constant 0 : index
    %54 = vector.load %arg11[%c7, %c0_17, %c0_18] : memref<8x2x32xf32, #tpu.memory_space<vmem>>, vector<1x2x32xf32>
    %55 = vector.shape_cast %54 : vector<1x2x32xf32> to vector<2x32xf32>
    %56 = vector.shape_cast %50 : vector<2x32xf32> to vector<1x2x32xf32>
    tpu.vector_store %arg11[%c7, %c0_17, %c0_18], %56 {strides = array<i32>} : memref<8x2x32xf32, #tpu.memory_space<vmem>>, vector<1x2x32xf32>,
    %57 = tpu.concatenate %35, %50 in 1 : vector<2x32xf32>, vector<2x32xf32> -> vector<2x64xf32>
    %c0_19 = arith.constant 0 : index
    %c0_20 = arith.constant 0 : index
    %58 = vector.load %arg2[%c0_19, %c0_20] : memref<64x256xf32, #tpu.memory_space<vmem>>, vector<64x256xf32>
    %cst_21 = arith.constant dense<0.000000e+00> : vector<2x256xf32>
    %59 = tpu.matmul %57, %58, %cst_21 {dimension_numbers = #tpu.dot_dimension_numbers<[1], [0], [0], [1], [0, 0, 1, 1], [], []>} : vector<2x64xf32>, vector<64x256xf32>, vector<2x256xf32> -> vector<2x256xf32>
    %60 = vector.extract_strided_slice %59 {offsets = [0, 0], sizes = [2, 128], strides = [1, 1]} : vector<2x256xf32> to vector<2x128xf32>
    %61 = vector.extract_strided_slice %7 {offsets = [1, 0, 0], sizes = [1, 2, 128], strides = [1, 1, 1]} : vector<8x2x256xf32> to vector<1x2x128xf32>
    %62 = vector.shape_cast %61 : vector<1x2x128xf32> to vector<2x128xf32>
    %63 = arith.addf %60, %62 : vector<2x128xf32>
    %64 = vector.extract_strided_slice %59 {offsets = [0, 128], sizes = [2, 128], strides = [1, 1]} : vector<2x256xf32> to vector<2x128xf32>
    %65 = vector.extract_strided_slice %7 {offsets = [6, 0, 128], sizes = [1, 2, 128], strides = [1, 1, 1]} : vector<8x2x256xf32> to vector<1x2x128xf32>
    %66 = vector.shape_cast %65 : vector<1x2x128xf32> to vector<2x128xf32>
    %67 = arith.addf %64, %66 : vector<2x128xf32>
    %68 = arith.negf %63 : vector<2x128xf32>
    %69 = math.exp %68 : vector<2x128xf32>
    %cst_22 = arith.constant 1.000000e+00 : f32
    %70 = vector.broadcast %cst_22 : f32 to vector<2x128xf32>
    %71 = arith.addf %70, %69 : vector<2x128xf32>
    %72 = arith.divf %70, %71 : vector<2x128xf32>
    %73 = math.tanh %63 : vector<2x128xf32>
    %74 = vector.extract_strided_slice %72 {offsets = [0, 0], sizes = [2, 32], strides = [1, 1]} : vector<2x128xf32> to vector<2x32xf32>
    %75 = vector.extract_strided_slice %72 {offsets = [0, 32], sizes = [2, 32], strides = [1, 1]} : vector<2x128xf32> to vector<2x32xf32>
    %76 = vector.extract_strided_slice %73 {offsets = [0, 64], sizes = [2, 32], strides = [1, 1]} : vector<2x128xf32> to vector<2x32xf32>
    %77 = vector.extract_strided_slice %72 {offsets = [0, 96], sizes = [2, 32], strides = [1, 1]} : vector<2x128xf32> to vector<2x32xf32>
    %78 = arith.mulf %75, %33 : vector<2x32xf32>
    %79 = arith.mulf %74, %76 : vector<2x32xf32>
    %80 = arith.addf %78, %79 : vector<2x32xf32>
    %81 = math.tanh %80 : vector<2x32xf32>
    %82 = arith.mulf %77, %81 : vector<2x32xf32>
    %83 = arith.negf %67 : vector<2x128xf32>
    %84 = math.exp %83 : vector<2x128xf32>
    %cst_23 = arith.constant 1.000000e+00 : f32
    %85 = vector.broadcast %cst_23 : f32 to vector<2x128xf32>
    %86 = arith.addf %85, %84 : vector<2x128xf32>
    %87 = arith.divf %85, %86 : vector<2x128xf32>
    %88 = math.tanh %67 : vector<2x128xf32>
    %89 = vector.extract_strided_slice %87 {offsets = [0, 0], sizes = [2, 32], strides = [1, 1]} : vector<2x128xf32> to vector<2x32xf32>
    %90 = vector.extract_strided_slice %87 {offsets = [0, 32], sizes = [2, 32], strides = [1, 1]} : vector<2x128xf32> to vector<2x32xf32>
    %91 = vector.extract_strided_slice %88 {offsets = [0, 64], sizes = [2, 32], strides = [1, 1]} : vector<2x128xf32> to vector<2x32xf32>
    %92 = vector.extract_strided_slice %87 {offsets = [0, 96], sizes = [2, 32], strides = [1, 1]} : vector<2x128xf32> to vector<2x32xf32>
    %93 = arith.mulf %90, %48 : vector<2x32xf32>
    %94 = arith.mulf %89, %91 : vector<2x32xf32>
    %95 = arith.addf %93, %94 : vector<2x32xf32>
    %96 = math.tanh %95 : vector<2x32xf32>
    %97 = arith.mulf %92, %96 : vector<2x32xf32>
    %c1 = arith.constant 1 : index
    %c0_24 = arith.constant 0 : index
    %c0_25 = arith.constant 0 : index
    %98 = vector.load %arg10[%c1, %c0_24, %c0_25] : memref<8x2x32xf32, #tpu.memory_space<vmem>>, vector<1x2x32xf32>
    %99 = vector.shape_cast %98 : vector<1x2x32xf32> to vector<2x32xf32>
    %100 = vector.shape_cast %82 : vector<2x32xf32> to vector<1x2x32xf32>
    tpu.vector_store %arg10[%c1, %c0_24, %c0_25], %100 {strides = array<i32>} : memref<8x2x32xf32, #tpu.memory_space<vmem>>, vector<1x2x32xf32>,
    %c6 = arith.constant 6 : index
    %c0_26 = arith.constant 0 : index
    %c0_27 = arith.constant 0 : index
    %101 = vector.load %arg11[%c6, %c0_26, %c0_27] : memref<8x2x32xf32, #tpu.memory_space<vmem>>, vector<1x2x32xf32>
    %102 = vector.shape_cast %101 : vector<1x2x32xf32> to vector<2x32xf32>
    %103 = vector.shape_cast %97 : vector<2x32xf32> to vector<1x2x32xf32>
    tpu.vector_store %arg11[%c6, %c0_26, %c0_27], %103 {strides = array<i32>} : memref<8x2x32xf32, #tpu.memory_space<vmem>>, vector<1x2x32xf32>,
    %104 = tpu.concatenate %82, %97 in 1 : vector<2x32xf32>, vector<2x32xf32> -> vector<2x64xf32>
    %c0_28 = arith.constant 0 : index
    %c0_29 = arith.constant 0 : index
    %105 = vector.load %arg2[%c0_28, %c0_29] : memref<64x256xf32, #tpu.memory_space<vmem>>, vector<64x256xf32>
    %cst_30 = arith.constant dense<0.000000e+00> : vector<2x256xf32>
    %106 = tpu.matmul %104, %105, %cst_30 {dimension_numbers = #tpu.dot_dimension_numbers<[1], [0], [0], [1], [0, 0, 1, 1], [], []>} : vector<2x64xf32>, vector<64x256xf32>, vector<2x256xf32> -> vector<2x256xf32>
    %107 = vector.extract_strided_slice %106 {offsets = [0, 0], sizes = [2, 128], strides = [1, 1]} : vector<2x256xf32> to vector<2x128xf32>
    %108 = vector.extract_strided_slice %7 {offsets = [2, 0, 0], sizes = [1, 2, 128], strides = [1, 1, 1]} : vector<8x2x256xf32> to vector<1x2x128xf32>
    %109 = vector.shape_cast %108 : vector<1x2x128xf32> to vector<2x128xf32>
    %110 = arith.addf %107, %109 : vector<2x128xf32>
    %111 = vector.extract_strided_slice %106 {offsets = [0, 128], sizes = [2, 128], strides = [1, 1]} : vector<2x256xf32> to vector<2x128xf32>
    %112 = vector.extract_strided_slice %7 {offsets = [5, 0, 128], sizes = [1, 2, 128], strides = [1, 1, 1]} : vector<8x2x256xf32> to vector<1x2x128xf32>
    %113 = vector.shape_cast %112 : vector<1x2x128xf32> to vector<2x128xf32>
    %114 = arith.addf %111, %113 : vector<2x128xf32>
    %115 = arith.negf %110 : vector<2x128xf32>
    %116 = math.exp %115 : vector<2x128xf32>
    %cst_31 = arith.constant 1.000000e+00 : f32
    %117 = vector.broadcast %cst_31 : f32 to vector<2x128xf32>
    %118 = arith.addf %117, %116 : vector<2x128xf32>
    %119 = arith.divf %117, %118 : vector<2x128xf32>
    %120 = math.tanh %110 : vector<2x128xf32>
    %121 = vector.extract_strided_slice %119 {offsets = [0, 0], sizes = [2, 32], strides = [1, 1]} : vector<2x128xf32> to vector<2x32xf32>
    %122 = vector.extract_strided_slice %119 {offsets = [0, 32], sizes = [2, 32], strides = [1, 1]} : vector<2x128xf32> to vector<2x32xf32>
    %123 = vector.extract_strided_slice %120 {offsets = [0, 64], sizes = [2, 32], strides = [1, 1]} : vector<2x128xf32> to vector<2x32xf32>
    %124 = vector.extract_strided_slice %119 {offsets = [0, 96], sizes = [2, 32], strides = [1, 1]} : vector<2x128xf32> to vector<2x32xf32>
    %125 = arith.mulf %122, %80 : vector<2x32xf32>
    %126 = arith.mulf %121, %123 : vector<2x32xf32>
    %127 = arith.addf %125, %126 : vector<2x32xf32>
    %128 = math.tanh %127 : vector<2x32xf32>
    %129 = arith.mulf %124, %128 : vector<2x32xf32>
    %130 = arith.negf %114 : vector<2x128xf32>
    %131 = math.exp %130 : vector<2x128xf32>
    %cst_32 = arith.constant 1.000000e+00 : f32
    %132 = vector.broadcast %cst_32 : f32 to vector<2x128xf32>
    %133 = arith.addf %132, %131 : vector<2x128xf32>
    %134 = arith.divf %132, %133 : vector<2x128xf32>
    %135 = math.tanh %114 : vector<2x128xf32>
    %136 = vector.extract_strided_slice %134 {offsets = [0, 0], sizes = [2, 32], strides = [1, 1]} : vector<2x128xf32> to vector<2x32xf32>
    %137 = vector.extract_strided_slice %134 {offsets = [0, 32], sizes = [2, 32], strides = [1, 1]} : vector<2x128xf32> to vector<2x32xf32>
    %138 = vector.extract_strided_slice %135 {offsets = [0, 64], sizes = [2, 32], strides = [1, 1]} : vector<2x128xf32> to vector<2x32xf32>
    %139 = vector.extract_strided_slice %134 {offsets = [0, 96], sizes = [2, 32], strides = [1, 1]} : vector<2x128xf32> to vector<2x32xf32>
    %140 = arith.mulf %137, %95 : vector<2x32xf32>
    %141 = arith.mulf %136, %138 : vector<2x32xf32>
    %142 = arith.addf %140, %141 : vector<2x32xf32>
    %143 = math.tanh %142 : vector<2x32xf32>
    %144 = arith.mulf %139, %143 : vector<2x32xf32>
    %c2 = arith.constant 2 : index
    %c0_33 = arith.constant 0 : index
    %c0_34 = arith.constant 0 : index
    %145 = vector.load %arg10[%c2, %c0_33, %c0_34] : memref<8x2x32xf32, #tpu.memory_space<vmem>>, vector<1x2x32xf32>
    %146 = vector.shape_cast %145 : vector<1x2x32xf32> to vector<2x32xf32>
    %147 = vector.shape_cast %129 : vector<2x32xf32> to vector<1x2x32xf32>
    tpu.vector_store %arg10[%c2, %c0_33, %c0_34], %147 {strides = array<i32>} : memref<8x2x32xf32, #tpu.memory_space<vmem>>, vector<1x2x32xf32>,
    %c5 = arith.constant 5 : index
    %c0_35 = arith.constant 0 : index
    %c0_36 = arith.constant 0 : index
    %148 = vector.load %arg11[%c5, %c0_35, %c0_36] : memref<8x2x32xf32, #tpu.memory_space<vmem>>, vector<1x2x32xf32>
    %149 = vector.shape_cast %148 : vector<1x2x32xf32> to vector<2x32xf32>
    %150 = vector.shape_cast %144 : vector<2x32xf32> to vector<1x2x32xf32>
    tpu.vector_store %arg11[%c5, %c0_35, %c0_36], %150 {strides = array<i32>} : memref<8x2x32xf32, #tpu.memory_space<vmem>>, vector<1x2x32xf32>,
    %151 = tpu.concatenate %129, %144 in 1 : vector<2x32xf32>, vector<2x32xf32> -> vector<2x64xf32>
    %c0_37 = arith.constant 0 : index
    %c0_38 = arith.constant 0 : index
    %152 = vector.load %arg2[%c0_37, %c0_38] : memref<64x256xf32, #tpu.memory_space<vmem>>, vector<64x256xf32>
    %cst_39 = arith.constant dense<0.000000e+00> : vector<2x256xf32>
    %153 = tpu.matmul %151, %152, %cst_39 {dimension_numbers = #tpu.dot_dimension_numbers<[1], [0], [0], [1], [0, 0, 1, 1], [], []>} : vector<2x64xf32>, vector<64x256xf32>, vector<2x256xf32> -> vector<2x256xf32>
    %154 = vector.extract_strided_slice %153 {offsets = [0, 0], sizes = [2, 128], strides = [1, 1]} : vector<2x256xf32> to vector<2x128xf32>
    %155 = vector.extract_strided_slice %7 {offsets = [3, 0, 0], sizes = [1, 2, 128], strides = [1, 1, 1]} : vector<8x2x256xf32> to vector<1x2x128xf32>
    %156 = vector.shape_cast %155 : vector<1x2x128xf32> to vector<2x128xf32>
    %157 = arith.addf %154, %156 : vector<2x128xf32>
    %158 = vector.extract_strided_slice %153 {offsets = [0, 128], sizes = [2, 128], strides = [1, 1]} : vector<2x256xf32> to vector<2x128xf32>
    %159 = vector.extract_strided_slice %7 {offsets = [4, 0, 128], sizes = [1, 2, 128], strides = [1, 1, 1]} : vector<8x2x256xf32> to vector<1x2x128xf32>
    %160 = vector.shape_cast %159 : vector<1x2x128xf32> to vector<2x128xf32>
    %161 = arith.addf %158, %160 : vector<2x128xf32>
    %162 = arith.negf %157 : vector<2x128xf32>
    %163 = math.exp %162 : vector<2x128xf32>
    %cst_40 = arith.constant 1.000000e+00 : f32
    %164 = vector.broadcast %cst_40 : f32 to vector<2x128xf32>
    %165 = arith.addf %164, %163 : vector<2x128xf32>
    %166 = arith.divf %164, %165 : vector<2x128xf32>
    %167 = math.tanh %157 : vector<2x128xf32>
    %168 = vector.extract_strided_slice %166 {offsets = [0, 0], sizes = [2, 32], strides = [1, 1]} : vector<2x128xf32> to vector<2x32xf32>
    %169 = vector.extract_strided_slice %166 {offsets = [0, 32], sizes = [2, 32], strides = [1, 1]} : vector<2x128xf32> to vector<2x32xf32>
    %170 = vector.extract_strided_slice %167 {offsets = [0, 64], sizes = [2, 32], strides = [1, 1]} : vector<2x128xf32> to vector<2x32xf32>
    %171 = vector.extract_strided_slice %166 {offsets = [0, 96], sizes = [2, 32], strides = [1, 1]} : vector<2x128xf32> to vector<2x32xf32>
    %172 = arith.mulf %169, %127 : vector<2x32xf32>
    %173 = arith.mulf %168, %170 : vector<2x32xf32>
    %174 = arith.addf %172, %173 : vector<2x32xf32>
    %175 = math.tanh %174 : vector<2x32xf32>
    %176 = arith.mulf %171, %175 : vector<2x32xf32>
    %177 = arith.negf %161 : vector<2x128xf32>
    %178 = math.exp %177 : vector<2x128xf32>
    %cst_41 = arith.constant 1.000000e+00 : f32
    %179 = vector.broadcast %cst_41 : f32 to vector<2x128xf32>
    %180 = arith.addf %179, %178 : vector<2x128xf32>
    %181 = arith.divf %179, %180 : vector<2x128xf32>
    %182 = math.tanh %161 : vector<2x128xf32>
    %183 = vector.extract_strided_slice %181 {offsets = [0, 0], sizes = [2, 32], strides = [1, 1]} : vector<2x128xf32> to vector<2x32xf32>
    %184 = vector.extract_strided_slice %181 {offsets = [0, 32], sizes = [2, 32], strides = [1, 1]} : vector<2x128xf32> to vector<2x32xf32>
    %185 = vector.extract_strided_slice %182 {offsets = [0, 64], sizes = [2, 32], strides = [1, 1]} : vector<2x128xf32> to vector<2x32xf32>
    %186 = vector.extract_strided_slice %181 {offsets = [0, 96], sizes = [2, 32], strides = [1, 1]} : vector<2x128xf32> to vector<2x32xf32>
    %187 = arith.mulf %184, %142 : vector<2x32xf32>
    %188 = arith.mulf %183, %185 : vector<2x32xf32>
    %189 = arith.addf %187, %188 : vector<2x32xf32>
    %190 = math.tanh %189 : vector<2x32xf32>
    %191 = arith.mulf %186, %190 : vector<2x32xf32>
    %c3 = arith.constant 3 : index
    %c0_42 = arith.constant 0 : index
    %c0_43 = arith.constant 0 : index
    %192 = vector.load %arg10[%c3, %c0_42, %c0_43] : memref<8x2x32xf32, #tpu.memory_space<vmem>>, vector<1x2x32xf32>
    %193 = vector.shape_cast %192 : vector<1x2x32xf32> to vector<2x32xf32>
    %194 = vector.shape_cast %176 : vector<2x32xf32> to vector<1x2x32xf32>
    tpu.vector_store %arg10[%c3, %c0_42, %c0_43], %194 {strides = array<i32>} : memref<8x2x32xf32, #tpu.memory_space<vmem>>, vector<1x2x32xf32>,
    %c4 = arith.constant 4 : index
    %c0_44 = arith.constant 0 : index
    %c0_45 = arith.constant 0 : index
    %195 = vector.load %arg11[%c4, %c0_44, %c0_45] : memref<8x2x32xf32, #tpu.memory_space<vmem>>, vector<1x2x32xf32>
    %196 = vector.shape_cast %195 : vector<1x2x32xf32> to vector<2x32xf32>
    %197 = vector.shape_cast %191 : vector<2x32xf32> to vector<1x2x32xf32>
    tpu.vector_store %arg11[%c4, %c0_44, %c0_45], %197 {strides = array<i32>} : memref<8x2x32xf32, #tpu.memory_space<vmem>>, vector<1x2x32xf32>,
    %198 = tpu.concatenate %176, %191 in 1 : vector<2x32xf32>, vector<2x32xf32> -> vector<2x64xf32>
    %c0_46 = arith.constant 0 : index
    %c0_47 = arith.constant 0 : index
    %199 = vector.load %arg2[%c0_46, %c0_47] : memref<64x256xf32, #tpu.memory_space<vmem>>, vector<64x256xf32>
    %cst_48 = arith.constant dense<0.000000e+00> : vector<2x256xf32>
    %200 = tpu.matmul %198, %199, %cst_48 {dimension_numbers = #tpu.dot_dimension_numbers<[1], [0], [0], [1], [0, 0, 1, 1], [], []>} : vector<2x64xf32>, vector<64x256xf32>, vector<2x256xf32> -> vector<2x256xf32>
    %201 = vector.extract_strided_slice %200 {offsets = [0, 0], sizes = [2, 128], strides = [1, 1]} : vector<2x256xf32> to vector<2x128xf32>
    %202 = vector.extract_strided_slice %7 {offsets = [4, 0, 0], sizes = [1, 2, 128], strides = [1, 1, 1]} : vector<8x2x256xf32> to vector<1x2x128xf32>
    %203 = vector.shape_cast %202 : vector<1x2x128xf32> to vector<2x128xf32>
    %204 = arith.addf %201, %203 : vector<2x128xf32>
    %205 = vector.extract_strided_slice %200 {offsets = [0, 128], sizes = [2, 128], strides = [1, 1]} : vector<2x256xf32> to vector<2x128xf32>
    %206 = vector.extract_strided_slice %7 {offsets = [3, 0, 128], sizes = [1, 2, 128], strides = [1, 1, 1]} : vector<8x2x256xf32> to vector<1x2x128xf32>
    %207 = vector.shape_cast %206 : vector<1x2x128xf32> to vector<2x128xf32>
    %208 = arith.addf %205, %207 : vector<2x128xf32>
    %209 = arith.negf %204 : vector<2x128xf32>
    %210 = math.exp %209 : vector<2x128xf32>
    %cst_49 = arith.constant 1.000000e+00 : f32
    %211 = vector.broadcast %cst_49 : f32 to vector<2x128xf32>
    %212 = arith.addf %211, %210 : vector<2x128xf32>
    %213 = arith.divf %211, %212 : vector<2x128xf32>
    %214 = math.tanh %204 : vector<2x128xf32>
    %215 = vector.extract_strided_slice %213 {offsets = [0, 0], sizes = [2, 32], strides = [1, 1]} : vector<2x128xf32> to vector<2x32xf32>
    %216 = vector.extract_strided_slice %213 {offsets = [0, 32], sizes = [2, 32], strides = [1, 1]} : vector<2x128xf32> to vector<2x32xf32>
    %217 = vector.extract_strided_slice %214 {offsets = [0, 64], sizes = [2, 32], strides = [1, 1]} : vector<2x128xf32> to vector<2x32xf32>
    %218 = vector.extract_strided_slice %213 {offsets = [0, 96], sizes = [2, 32], strides = [1, 1]} : vector<2x128xf32> to vector<2x32xf32>
    %219 = arith.mulf %216, %174 : vector<2x32xf32>
    %220 = arith.mulf %215, %217 : vector<2x32xf32>
    %221 = arith.addf %219, %220 : vector<2x32xf32>
    %222 = math.tanh %221 : vector<2x32xf32>
    %223 = arith.mulf %218, %222 : vector<2x32xf32>
    %224 = arith.negf %208 : vector<2x128xf32>
    %225 = math.exp %224 : vector<2x128xf32>
    %cst_50 = arith.constant 1.000000e+00 : f32
    %226 = vector.broadcast %cst_50 : f32 to vector<2x128xf32>
    %227 = arith.addf %226, %225 : vector<2x128xf32>
    %228 = arith.divf %226, %227 : vector<2x128xf32>
    %229 = math.tanh %208 : vector<2x128xf32>
    %230 = vector.extract_strided_slice %228 {offsets = [0, 0], sizes = [2, 32], strides = [1, 1]} : vector<2x128xf32> to vector<2x32xf32>
    %231 = vector.extract_strided_slice %228 {offsets = [0, 32], sizes = [2, 32], strides = [1, 1]} : vector<2x128xf32> to vector<2x32xf32>
    %232 = vector.extract_strided_slice %229 {offsets = [0, 64], sizes = [2, 32], strides = [1, 1]} : vector<2x128xf32> to vector<2x32xf32>
    %233 = vector.extract_strided_slice %228 {offsets = [0, 96], sizes = [2, 32], strides = [1, 1]} : vector<2x128xf32> to vector<2x32xf32>
    %234 = arith.mulf %231, %189 : vector<2x32xf32>
    %235 = arith.mulf %230, %232 : vector<2x32xf32>
    %236 = arith.addf %234, %235 : vector<2x32xf32>
    %237 = math.tanh %236 : vector<2x32xf32>
    %238 = arith.mulf %233, %237 : vector<2x32xf32>
    %c4_51 = arith.constant 4 : index
    %c0_52 = arith.constant 0 : index
    %c0_53 = arith.constant 0 : index
    %239 = vector.load %arg10[%c4_51, %c0_52, %c0_53] : memref<8x2x32xf32, #tpu.memory_space<vmem>>, vector<1x2x32xf32>
    %240 = vector.shape_cast %239 : vector<1x2x32xf32> to vector<2x32xf32>
    %241 = vector.shape_cast %223 : vector<2x32xf32> to vector<1x2x32xf32>
    tpu.vector_store %arg10[%c4_51, %c0_52, %c0_53], %241 {strides = array<i32>} : memref<8x2x32xf32, #tpu.memory_space<vmem>>, vector<1x2x32xf32>,
    %c3_54 = arith.constant 3 : index
    %c0_55 = arith.constant 0 : index
    %c0_56 = arith.constant 0 : index
    %242 = vector.load %arg11[%c3_54, %c0_55, %c0_56] : memref<8x2x32xf32, #tpu.memory_space<vmem>>, vector<1x2x32xf32>
    %243 = vector.shape_cast %242 : vector<1x2x32xf32> to vector<2x32xf32>
    %244 = vector.shape_cast %238 : vector<2x32xf32> to vector<1x2x32xf32>
    tpu.vector_store %arg11[%c3_54, %c0_55, %c0_56], %244 {strides = array<i32>} : memref<8x2x32xf32, #tpu.memory_space<vmem>>, vector<1x2x32xf32>,
    %245 = tpu.concatenate %223, %238 in 1 : vector<2x32xf32>, vector<2x32xf32> -> vector<2x64xf32>
    %c0_57 = arith.constant 0 : index
    %c0_58 = arith.constant 0 : index
    %246 = vector.load %arg2[%c0_57, %c0_58] : memref<64x256xf32, #tpu.memory_space<vmem>>, vector<64x256xf32>
    %cst_59 = arith.constant dense<0.000000e+00> : vector<2x256xf32>
    %247 = tpu.matmul %245, %246, %cst_59 {dimension_numbers = #tpu.dot_dimension_numbers<[1], [0], [0], [1], [0, 0, 1, 1], [], []>} : vector<2x64xf32>, vector<64x256xf32>, vector<2x256xf32> -> vector<2x256xf32>
    %248 = vector.extract_strided_slice %247 {offsets = [0, 0], sizes = [2, 128], strides = [1, 1]} : vector<2x256xf32> to vector<2x128xf32>
    %249 = vector.extract_strided_slice %7 {offsets = [5, 0, 0], sizes = [1, 2, 128], strides = [1, 1, 1]} : vector<8x2x256xf32> to vector<1x2x128xf32>
    %250 = vector.shape_cast %249 : vector<1x2x128xf32> to vector<2x128xf32>
    %251 = arith.addf %248, %250 : vector<2x128xf32>
    %252 = vector.extract_strided_slice %247 {offsets = [0, 128], sizes = [2, 128], strides = [1, 1]} : vector<2x256xf32> to vector<2x128xf32>
    %253 = vector.extract_strided_slice %7 {offsets = [2, 0, 128], sizes = [1, 2, 128], strides = [1, 1, 1]} : vector<8x2x256xf32> to vector<1x2x128xf32>
    %254 = vector.shape_cast %253 : vector<1x2x128xf32> to vector<2x128xf32>
    %255 = arith.addf %252, %254 : vector<2x128xf32>
    %256 = arith.negf %251 : vector<2x128xf32>
    %257 = math.exp %256 : vector<2x128xf32>
    %cst_60 = arith.constant 1.000000e+00 : f32
    %258 = vector.broadcast %cst_60 : f32 to vector<2x128xf32>
    %259 = arith.addf %258, %257 : vector<2x128xf32>
    %260 = arith.divf %258, %259 : vector<2x128xf32>
    %261 = math.tanh %251 : vector<2x128xf32>
    %262 = vector.extract_strided_slice %260 {offsets = [0, 0], sizes = [2, 32], strides = [1, 1]} : vector<2x128xf32> to vector<2x32xf32>
    %263 = vector.extract_strided_slice %260 {offsets = [0, 32], sizes = [2, 32], strides = [1, 1]} : vector<2x128xf32> to vector<2x32xf32>
    %264 = vector.extract_strided_slice %261 {offsets = [0, 64], sizes = [2, 32], strides = [1, 1]} : vector<2x128xf32> to vector<2x32xf32>
    %265 = vector.extract_strided_slice %260 {offsets = [0, 96], sizes = [2, 32], strides = [1, 1]} : vector<2x128xf32> to vector<2x32xf32>
    %266 = arith.mulf %263, %221 : vector<2x32xf32>
    %267 = arith.mulf %262, %264 : vector<2x32xf32>
    %268 = arith.addf %266, %267 : vector<2x32xf32>
    %269 = math.tanh %268 : vector<2x32xf32>
    %270 = arith.mulf %265, %269 : vector<2x32xf32>
    %271 = arith.negf %255 : vector<2x128xf32>
    %272 = math.exp %271 : vector<2x128xf32>
    %cst_61 = arith.constant 1.000000e+00 : f32
    %273 = vector.broadcast %cst_61 : f32 to vector<2x128xf32>
    %274 = arith.addf %273, %272 : vector<2x128xf32>
    %275 = arith.divf %273, %274 : vector<2x128xf32>
    %276 = math.tanh %255 : vector<2x128xf32>
    %277 = vector.extract_strided_slice %275 {offsets = [0, 0], sizes = [2, 32], strides = [1, 1]} : vector<2x128xf32> to vector<2x32xf32>
    %278 = vector.extract_strided_slice %275 {offsets = [0, 32], sizes = [2, 32], strides = [1, 1]} : vector<2x128xf32> to vector<2x32xf32>
    %279 = vector.extract_strided_slice %276 {offsets = [0, 64], sizes = [2, 32], strides = [1, 1]} : vector<2x128xf32> to vector<2x32xf32>
    %280 = vector.extract_strided_slice %275 {offsets = [0, 96], sizes = [2, 32], strides = [1, 1]} : vector<2x128xf32> to vector<2x32xf32>
    %281 = arith.mulf %278, %236 : vector<2x32xf32>
    %282 = arith.mulf %277, %279 : vector<2x32xf32>
    %283 = arith.addf %281, %282 : vector<2x32xf32>
    %284 = math.tanh %283 : vector<2x32xf32>
    %285 = arith.mulf %280, %284 : vector<2x32xf32>
    %c5_62 = arith.constant 5 : index
    %c0_63 = arith.constant 0 : index
    %c0_64 = arith.constant 0 : index
    %286 = vector.load %arg10[%c5_62, %c0_63, %c0_64] : memref<8x2x32xf32, #tpu.memory_space<vmem>>, vector<1x2x32xf32>
    %287 = vector.shape_cast %286 : vector<1x2x32xf32> to vector<2x32xf32>
    %288 = vector.shape_cast %270 : vector<2x32xf32> to vector<1x2x32xf32>
    tpu.vector_store %arg10[%c5_62, %c0_63, %c0_64], %288 {strides = array<i32>} : memref<8x2x32xf32, #tpu.memory_space<vmem>>, vector<1x2x32xf32>,
    %c2_65 = arith.constant 2 : index
    %c0_66 = arith.constant 0 : index
    %c0_67 = arith.constant 0 : index
    %289 = vector.load %arg11[%c2_65, %c0_66, %c0_67] : memref<8x2x32xf32, #tpu.memory_space<vmem>>, vector<1x2x32xf32>
    %290 = vector.shape_cast %289 : vector<1x2x32xf32> to vector<2x32xf32>
    %291 = vector.shape_cast %285 : vector<2x32xf32> to vector<1x2x32xf32>
    tpu.vector_store %arg11[%c2_65, %c0_66, %c0_67], %291 {strides = array<i32>} : memref<8x2x32xf32, #tpu.memory_space<vmem>>, vector<1x2x32xf32>,
    %292 = tpu.concatenate %270, %285 in 1 : vector<2x32xf32>, vector<2x32xf32> -> vector<2x64xf32>
    %c0_68 = arith.constant 0 : index
    %c0_69 = arith.constant 0 : index
    %293 = vector.load %arg2[%c0_68, %c0_69] : memref<64x256xf32, #tpu.memory_space<vmem>>, vector<64x256xf32>
    %cst_70 = arith.constant dense<0.000000e+00> : vector<2x256xf32>
    %294 = tpu.matmul %292, %293, %cst_70 {dimension_numbers = #tpu.dot_dimension_numbers<[1], [0], [0], [1], [0, 0, 1, 1], [], []>} : vector<2x64xf32>, vector<64x256xf32>, vector<2x256xf32> -> vector<2x256xf32>
    %295 = vector.extract_strided_slice %294 {offsets = [0, 0], sizes = [2, 128], strides = [1, 1]} : vector<2x256xf32> to vector<2x128xf32>
    %296 = vector.extract_strided_slice %7 {offsets = [6, 0, 0], sizes = [1, 2, 128], strides = [1, 1, 1]} : vector<8x2x256xf32> to vector<1x2x128xf32>
    %297 = vector.shape_cast %296 : vector<1x2x128xf32> to vector<2x128xf32>
    %298 = arith.addf %295, %297 : vector<2x128xf32>
    %299 = vector.extract_strided_slice %294 {offsets = [0, 128], sizes = [2, 128], strides = [1, 1]} : vector<2x256xf32> to vector<2x128xf32>
    %300 = vector.extract_strided_slice %7 {offsets = [1, 0, 128], sizes = [1, 2, 128], strides = [1, 1, 1]} : vector<8x2x256xf32> to vector<1x2x128xf32>
    %301 = vector.shape_cast %300 : vector<1x2x128xf32> to vector<2x128xf32>
    %302 = arith.addf %299, %301 : vector<2x128xf32>
    %303 = arith.negf %298 : vector<2x128xf32>
    %304 = math.exp %303 : vector<2x128xf32>
    %cst_71 = arith.constant 1.000000e+00 : f32
    %305 = vector.broadcast %cst_71 : f32 to vector<2x128xf32>
    %306 = arith.addf %305, %304 : vector<2x128xf32>
    %307 = arith.divf %305, %306 : vector<2x128xf32>
    %308 = math.tanh %298 : vector<2x128xf32>
    %309 = vector.extract_strided_slice %307 {offsets = [0, 0], sizes = [2, 32], strides = [1, 1]} : vector<2x128xf32> to vector<2x32xf32>
    %310 = vector.extract_strided_slice %307 {offsets = [0, 32], sizes = [2, 32], strides = [1, 1]} : vector<2x128xf32> to vector<2x32xf32>
    %311 = vector.extract_strided_slice %308 {offsets = [0, 64], sizes = [2, 32], strides = [1, 1]} : vector<2x128xf32> to vector<2x32xf32>
    %312 = vector.extract_strided_slice %307 {offsets = [0, 96], sizes = [2, 32], strides = [1, 1]} : vector<2x128xf32> to vector<2x32xf32>
    %313 = arith.mulf %310, %268 : vector<2x32xf32>
    %314 = arith.mulf %309, %311 : vector<2x32xf32>
    %315 = arith.addf %313, %314 : vector<2x32xf32>
    %316 = math.tanh %315 : vector<2x32xf32>
    %317 = arith.mulf %312, %316 : vector<2x32xf32>
    %318 = arith.negf %302 : vector<2x128xf32>
    %319 = math.exp %318 : vector<2x128xf32>
    %cst_72 = arith.constant 1.000000e+00 : f32
    %320 = vector.broadcast %cst_72 : f32 to vector<2x128xf32>
    %321 = arith.addf %320, %319 : vector<2x128xf32>
    %322 = arith.divf %320, %321 : vector<2x128xf32>
    %323 = math.tanh %302 : vector<2x128xf32>
    %324 = vector.extract_strided_slice %322 {offsets = [0, 0], sizes = [2, 32], strides = [1, 1]} : vector<2x128xf32> to vector<2x32xf32>
    %325 = vector.extract_strided_slice %322 {offsets = [0, 32], sizes = [2, 32], strides = [1, 1]} : vector<2x128xf32> to vector<2x32xf32>
    %326 = vector.extract_strided_slice %323 {offsets = [0, 64], sizes = [2, 32], strides = [1, 1]} : vector<2x128xf32> to vector<2x32xf32>
    %327 = vector.extract_strided_slice %322 {offsets = [0, 96], sizes = [2, 32], strides = [1, 1]} : vector<2x128xf32> to vector<2x32xf32>
    %328 = arith.mulf %325, %283 : vector<2x32xf32>
    %329 = arith.mulf %324, %326 : vector<2x32xf32>
    %330 = arith.addf %328, %329 : vector<2x32xf32>
    %331 = math.tanh %330 : vector<2x32xf32>
    %332 = arith.mulf %327, %331 : vector<2x32xf32>
    %c6_73 = arith.constant 6 : index
    %c0_74 = arith.constant 0 : index
    %c0_75 = arith.constant 0 : index
    %333 = vector.load %arg10[%c6_73, %c0_74, %c0_75] : memref<8x2x32xf32, #tpu.memory_space<vmem>>, vector<1x2x32xf32>
    %334 = vector.shape_cast %333 : vector<1x2x32xf32> to vector<2x32xf32>
    %335 = vector.shape_cast %317 : vector<2x32xf32> to vector<1x2x32xf32>
    tpu.vector_store %arg10[%c6_73, %c0_74, %c0_75], %335 {strides = array<i32>} : memref<8x2x32xf32, #tpu.memory_space<vmem>>, vector<1x2x32xf32>,
    %c1_76 = arith.constant 1 : index
    %c0_77 = arith.constant 0 : index
    %c0_78 = arith.constant 0 : index
    %336 = vector.load %arg11[%c1_76, %c0_77, %c0_78] : memref<8x2x32xf32, #tpu.memory_space<vmem>>, vector<1x2x32xf32>
    %337 = vector.shape_cast %336 : vector<1x2x32xf32> to vector<2x32xf32>
    %338 = vector.shape_cast %332 : vector<2x32xf32> to vector<1x2x32xf32>
    tpu.vector_store %arg11[%c1_76, %c0_77, %c0_78], %338 {strides = array<i32>} : memref<8x2x32xf32, #tpu.memory_space<vmem>>, vector<1x2x32xf32>,
    %339 = tpu.concatenate %317, %332 in 1 : vector<2x32xf32>, vector<2x32xf32> -> vector<2x64xf32>
    %c0_79 = arith.constant 0 : index
    %c0_80 = arith.constant 0 : index
    %340 = vector.load %arg2[%c0_79, %c0_80] : memref<64x256xf32, #tpu.memory_space<vmem>>, vector<64x256xf32>
    %cst_81 = arith.constant dense<0.000000e+00> : vector<2x256xf32>
    %341 = tpu.matmul %339, %340, %cst_81 {dimension_numbers = #tpu.dot_dimension_numbers<[1], [0], [0], [1], [0, 0, 1, 1], [], []>} : vector<2x64xf32>, vector<64x256xf32>, vector<2x256xf32> -> vector<2x256xf32>
    %342 = vector.extract_strided_slice %341 {offsets = [0, 0], sizes = [2, 128], strides = [1, 1]} : vector<2x256xf32> to vector<2x128xf32>
    %343 = vector.extract_strided_slice %7 {offsets = [7, 0, 0], sizes = [1, 2, 128], strides = [1, 1, 1]} : vector<8x2x256xf32> to vector<1x2x128xf32>
    %344 = vector.shape_cast %343 : vector<1x2x128xf32> to vector<2x128xf32>
    %345 = arith.addf %342, %344 : vector<2x128xf32>
    %346 = vector.extract_strided_slice %341 {offsets = [0, 128], sizes = [2, 128], strides = [1, 1]} : vector<2x256xf32> to vector<2x128xf32>
    %347 = vector.extract_strided_slice %7 {offsets = [0, 0, 128], sizes = [1, 2, 128], strides = [1, 1, 1]} : vector<8x2x256xf32> to vector<1x2x128xf32>
    %348 = vector.shape_cast %347 : vector<1x2x128xf32> to vector<2x128xf32>
    %349 = arith.addf %346, %348 : vector<2x128xf32>
    %350 = arith.negf %345 : vector<2x128xf32>
    %351 = math.exp %350 : vector<2x128xf32>
    %cst_82 = arith.constant 1.000000e+00 : f32
    %352 = vector.broadcast %cst_82 : f32 to vector<2x128xf32>
    %353 = arith.addf %352, %351 : vector<2x128xf32>
    %354 = arith.divf %352, %353 : vector<2x128xf32>
    %355 = math.tanh %345 : vector<2x128xf32>
    %356 = vector.extract_strided_slice %354 {offsets = [0, 0], sizes = [2, 32], strides = [1, 1]} : vector<2x128xf32> to vector<2x32xf32>
    %357 = vector.extract_strided_slice %354 {offsets = [0, 32], sizes = [2, 32], strides = [1, 1]} : vector<2x128xf32> to vector<2x32xf32>
    %358 = vector.extract_strided_slice %355 {offsets = [0, 64], sizes = [2, 32], strides = [1, 1]} : vector<2x128xf32> to vector<2x32xf32>
    %359 = vector.extract_strided_slice %354 {offsets = [0, 96], sizes = [2, 32], strides = [1, 1]} : vector<2x128xf32> to vector<2x32xf32>
    %360 = arith.mulf %357, %315 : vector<2x32xf32>
    %361 = arith.mulf %356, %358 : vector<2x32xf32>
    %362 = arith.addf %360, %361 : vector<2x32xf32>
    %363 = math.tanh %362 : vector<2x32xf32>
    %364 = arith.mulf %359, %363 : vector<2x32xf32>
    %365 = arith.negf %349 : vector<2x128xf32>
    %366 = math.exp %365 : vector<2x128xf32>
    %cst_83 = arith.constant 1.000000e+00 : f32
    %367 = vector.broadcast %cst_83 : f32 to vector<2x128xf32>
    %368 = arith.addf %367, %366 : vector<2x128xf32>
    %369 = arith.divf %367, %368 : vector<2x128xf32>
    %370 = math.tanh %349 : vector<2x128xf32>
    %371 = vector.extract_strided_slice %369 {offsets = [0, 0], sizes = [2, 32], strides = [1, 1]} : vector<2x128xf32> to vector<2x32xf32>
    %372 = vector.extract_strided_slice %369 {offsets = [0, 32], sizes = [2, 32], strides = [1, 1]} : vector<2x128xf32> to vector<2x32xf32>
    %373 = vector.extract_strided_slice %370 {offsets = [0, 64], sizes = [2, 32], strides = [1, 1]} : vector<2x128xf32> to vector<2x32xf32>
    %374 = vector.extract_strided_slice %369 {offsets = [0, 96], sizes = [2, 32], strides = [1, 1]} : vector<2x128xf32> to vector<2x32xf32>
    %375 = arith.mulf %372, %330 : vector<2x32xf32>
    %376 = arith.mulf %371, %373 : vector<2x32xf32>
    %377 = arith.addf %375, %376 : vector<2x32xf32>
    %378 = math.tanh %377 : vector<2x32xf32>
    %379 = arith.mulf %374, %378 : vector<2x32xf32>
    %c7_84 = arith.constant 7 : index
    %c0_85 = arith.constant 0 : index
    %c0_86 = arith.constant 0 : index
    %380 = vector.load %arg10[%c7_84, %c0_85, %c0_86] : memref<8x2x32xf32, #tpu.memory_space<vmem>>, vector<1x2x32xf32>
    %381 = vector.shape_cast %380 : vector<1x2x32xf32> to vector<2x32xf32>
    %382 = vector.shape_cast %364 : vector<2x32xf32> to vector<1x2x32xf32>
    tpu.vector_store %arg10[%c7_84, %c0_85, %c0_86], %382 {strides = array<i32>} : memref<8x2x32xf32, #tpu.memory_space<vmem>>, vector<1x2x32xf32>,
    %c0_87 = arith.constant 0 : index
    %c0_88 = arith.constant 0 : index
    %c0_89 = arith.constant 0 : index
    %383 = vector.load %arg11[%c0_87, %c0_88, %c0_89] : memref<8x2x32xf32, #tpu.memory_space<vmem>>, vector<1x2x32xf32>
    %384 = vector.shape_cast %383 : vector<1x2x32xf32> to vector<2x32xf32>
    %385 = vector.shape_cast %379 : vector<2x32xf32> to vector<1x2x32xf32>
    tpu.vector_store %arg11[%c0_87, %c0_88, %c0_89], %385 {strides = array<i32>} : memref<8x2x32xf32, #tpu.memory_space<vmem>>, vector<1x2x32xf32>,
    %c0_90 = arith.constant 0 : index
    %c0_91 = arith.constant 0 : index
    %c0_92 = arith.constant 0 : index
    %386 = vector.load %arg10[%c0_90, %c0_91, %c0_92] : memref<8x2x32xf32, #tpu.memory_space<vmem>>, vector<8x2x32xf32>
    %387 = vector.shape_cast %386 : vector<8x2x32xf32> to vector<16x32xf32>
    %c0_93 = arith.constant 0 : index
    %c0_94 = arith.constant 0 : index
    %c0_95 = arith.constant 0 : index
    %388 = vector.load %arg11[%c0_93, %c0_94, %c0_95] : memref<8x2x32xf32, #tpu.memory_space<vmem>>, vector<8x2x32xf32>
    %389 = vector.shape_cast %388 : vector<8x2x32xf32> to vector<16x32xf32>
    %c0_96 = arith.constant 0 : index
    %c0_97 = arith.constant 0 : index
    %390 = vector.load %arg4[%c0_96, %c0_97] : memref<64x256xf32, #tpu.memory_space<vmem>>, vector<32x256xf32>
    %cst_98 = arith.constant dense<0.000000e+00> : vector<16x256xf32>
    %391 = tpu.matmul %387, %390, %cst_98 {dimension_numbers = #tpu.dot_dimension_numbers<[1], [0], [0], [1], [0, 0, 1, 1], [], []>} : vector<16x32xf32>, vector<32x256xf32>, vector<16x256xf32> -> vector<16x256xf32>
    %c32 = arith.constant 32 : index
    %c0_99 = arith.constant 0 : index
    %392 = vector.load %arg4[%c32, %c0_99] : memref<64x256xf32, #tpu.memory_space<vmem>>, vector<32x256xf32>
    %cst_100 = arith.constant dense<0.000000e+00> : vector<16x256xf32>
    %393 = tpu.matmul %389, %392, %cst_100 {dimension_numbers = #tpu.dot_dimension_numbers<[1], [0], [0], [1], [0, 0, 1, 1], [], []>} : vector<16x32xf32>, vector<32x256xf32>, vector<16x256xf32> -> vector<16x256xf32>
    %394 = arith.addf %391, %393 : vector<16x256xf32>
    %c0_101 = arith.constant 0 : index
    %c0_102 = arith.constant 0 : index
    %395 = vector.load %arg6[%c0_101, %c0_102] : memref<1x256xf32, #tpu.memory_space<vmem>>, vector<1x256xf32>
    %396 = vector.broadcast %395 : vector<1x256xf32> to vector<16x256xf32>
    %397 = arith.addf %394, %396 : vector<16x256xf32>
    %398 = vector.shape_cast %397 : vector<16x256xf32> to vector<8x2x256xf32>
    %cst_103 = arith.constant 0.000000e+00 : f32
    %399 = vector.broadcast %cst_103 : f32 to vector<2x64xf32>
    %cst_104 = arith.constant 0.000000e+00 : f32
    %400 = vector.broadcast %cst_104 : f32 to vector<2x32xf32>
    %cst_105 = arith.constant 0.000000e+00 : f32
    %401 = vector.broadcast %cst_105 : f32 to vector<2x32xf32>
    %c0_106 = arith.constant 0 : index
    %c0_107 = arith.constant 0 : index
    %402 = vector.load %arg5[%c0_106, %c0_107] : memref<64x256xf32, #tpu.memory_space<vmem>>, vector<64x256xf32>
    %cst_108 = arith.constant dense<0.000000e+00> : vector<2x256xf32>
    %403 = tpu.matmul %399, %402, %cst_108 {dimension_numbers = #tpu.dot_dimension_numbers<[1], [0], [0], [1], [0, 0, 1, 1], [], []>} : vector<2x64xf32>, vector<64x256xf32>, vector<2x256xf32> -> vector<2x256xf32>
    %404 = vector.extract_strided_slice %403 {offsets = [0, 0], sizes = [2, 128], strides = [1, 1]} : vector<2x256xf32> to vector<2x128xf32>
    %405 = vector.extract_strided_slice %398 {offsets = [0, 0, 0], sizes = [1, 2, 128], strides = [1, 1, 1]} : vector<8x2x256xf32> to vector<1x2x128xf32>
    %406 = vector.shape_cast %405 : vector<1x2x128xf32> to vector<2x128xf32>
    %407 = arith.addf %404, %406 : vector<2x128xf32>
    %408 = vector.extract_strided_slice %403 {offsets = [0, 128], sizes = [2, 128], strides = [1, 1]} : vector<2x256xf32> to vector<2x128xf32>
    %409 = vector.extract_strided_slice %398 {offsets = [7, 0, 128], sizes = [1, 2, 128], strides = [1, 1, 1]} : vector<8x2x256xf32> to vector<1x2x128xf32>
    %410 = vector.shape_cast %409 : vector<1x2x128xf32> to vector<2x128xf32>
    %411 = arith.addf %408, %410 : vector<2x128xf32>
    %412 = arith.negf %407 : vector<2x128xf32>
    %413 = math.exp %412 : vector<2x128xf32>
    %cst_109 = arith.constant 1.000000e+00 : f32
    %414 = vector.broadcast %cst_109 : f32 to vector<2x128xf32>
    %415 = arith.addf %414, %413 : vector<2x128xf32>
    %416 = arith.divf %414, %415 : vector<2x128xf32>
    %417 = math.tanh %407 : vector<2x128xf32>
    %418 = vector.extract_strided_slice %416 {offsets = [0, 0], sizes = [2, 32], strides = [1, 1]} : vector<2x128xf32> to vector<2x32xf32>
    %419 = vector.extract_strided_slice %416 {offsets = [0, 32], sizes = [2, 32], strides = [1, 1]} : vector<2x128xf32> to vector<2x32xf32>
    %420 = vector.extract_strided_slice %417 {offsets = [0, 64], sizes = [2, 32], strides = [1, 1]} : vector<2x128xf32> to vector<2x32xf32>
    %421 = vector.extract_strided_slice %416 {offsets = [0, 96], sizes = [2, 32], strides = [1, 1]} : vector<2x128xf32> to vector<2x32xf32>
    %422 = arith.mulf %419, %400 : vector<2x32xf32>
    %423 = arith.mulf %418, %420 : vector<2x32xf32>
    %424 = arith.addf %422, %423 : vector<2x32xf32>
    %425 = math.tanh %424 : vector<2x32xf32>
    %426 = arith.mulf %421, %425 : vector<2x32xf32>
    %427 = arith.negf %411 : vector<2x128xf32>
    %428 = math.exp %427 : vector<2x128xf32>
    %cst_110 = arith.constant 1.000000e+00 : f32
    %429 = vector.broadcast %cst_110 : f32 to vector<2x128xf32>
    %430 = arith.addf %429, %428 : vector<2x128xf32>
    %431 = arith.divf %429, %430 : vector<2x128xf32>
    %432 = math.tanh %411 : vector<2x128xf32>
    %433 = vector.extract_strided_slice %431 {offsets = [0, 0], sizes = [2, 32], strides = [1, 1]} : vector<2x128xf32> to vector<2x32xf32>
    %434 = vector.extract_strided_slice %431 {offsets = [0, 32], sizes = [2, 32], strides = [1, 1]} : vector<2x128xf32> to vector<2x32xf32>
    %435 = vector.extract_strided_slice %432 {offsets = [0, 64], sizes = [2, 32], strides = [1, 1]} : vector<2x128xf32> to vector<2x32xf32>
    %436 = vector.extract_strided_slice %431 {offsets = [0, 96], sizes = [2, 32], strides = [1, 1]} : vector<2x128xf32> to vector<2x32xf32>
    %437 = arith.mulf %434, %401 : vector<2x32xf32>
    %438 = arith.mulf %433, %435 : vector<2x32xf32>
    %439 = arith.addf %437, %438 : vector<2x32xf32>
    %440 = math.tanh %439 : vector<2x32xf32>
    %441 = arith.mulf %436, %440 : vector<2x32xf32>
    %442 = tpu.concatenate %426, %441 in 1 : vector<2x32xf32>, vector<2x32xf32> -> vector<2x64xf32>
    %c0_111 = arith.constant 0 : index
    %c0_112 = arith.constant 0 : index
    %443 = vector.load %arg5[%c0_111, %c0_112] : memref<64x256xf32, #tpu.memory_space<vmem>>, vector<64x256xf32>
    %cst_113 = arith.constant dense<0.000000e+00> : vector<2x256xf32>
    %444 = tpu.matmul %442, %443, %cst_113 {dimension_numbers = #tpu.dot_dimension_numbers<[1], [0], [0], [1], [0, 0, 1, 1], [], []>} : vector<2x64xf32>, vector<64x256xf32>, vector<2x256xf32> -> vector<2x256xf32>
    %445 = vector.extract_strided_slice %444 {offsets = [0, 0], sizes = [2, 128], strides = [1, 1]} : vector<2x256xf32> to vector<2x128xf32>
    %446 = vector.extract_strided_slice %398 {offsets = [1, 0, 0], sizes = [1, 2, 128], strides = [1, 1, 1]} : vector<8x2x256xf32> to vector<1x2x128xf32>
    %447 = vector.shape_cast %446 : vector<1x2x128xf32> to vector<2x128xf32>
    %448 = arith.addf %445, %447 : vector<2x128xf32>
    %449 = vector.extract_strided_slice %444 {offsets = [0, 128], sizes = [2, 128], strides = [1, 1]} : vector<2x256xf32> to vector<2x128xf32>
    %450 = vector.extract_strided_slice %398 {offsets = [6, 0, 128], sizes = [1, 2, 128], strides = [1, 1, 1]} : vector<8x2x256xf32> to vector<1x2x128xf32>
    %451 = vector.shape_cast %450 : vector<1x2x128xf32> to vector<2x128xf32>
    %452 = arith.addf %449, %451 : vector<2x128xf32>
    %453 = arith.negf %448 : vector<2x128xf32>
    %454 = math.exp %453 : vector<2x128xf32>
    %cst_114 = arith.constant 1.000000e+00 : f32
    %455 = vector.broadcast %cst_114 : f32 to vector<2x128xf32>
    %456 = arith.addf %455, %454 : vector<2x128xf32>
    %457 = arith.divf %455, %456 : vector<2x128xf32>
    %458 = math.tanh %448 : vector<2x128xf32>
    %459 = vector.extract_strided_slice %457 {offsets = [0, 0], sizes = [2, 32], strides = [1, 1]} : vector<2x128xf32> to vector<2x32xf32>
    %460 = vector.extract_strided_slice %457 {offsets = [0, 32], sizes = [2, 32], strides = [1, 1]} : vector<2x128xf32> to vector<2x32xf32>
    %461 = vector.extract_strided_slice %458 {offsets = [0, 64], sizes = [2, 32], strides = [1, 1]} : vector<2x128xf32> to vector<2x32xf32>
    %462 = vector.extract_strided_slice %457 {offsets = [0, 96], sizes = [2, 32], strides = [1, 1]} : vector<2x128xf32> to vector<2x32xf32>
    %463 = arith.mulf %460, %424 : vector<2x32xf32>
    %464 = arith.mulf %459, %461 : vector<2x32xf32>
    %465 = arith.addf %463, %464 : vector<2x32xf32>
    %466 = math.tanh %465 : vector<2x32xf32>
    %467 = arith.mulf %462, %466 : vector<2x32xf32>
    %468 = arith.negf %452 : vector<2x128xf32>
    %469 = math.exp %468 : vector<2x128xf32>
    %cst_115 = arith.constant 1.000000e+00 : f32
    %470 = vector.broadcast %cst_115 : f32 to vector<2x128xf32>
    %471 = arith.addf %470, %469 : vector<2x128xf32>
    %472 = arith.divf %470, %471 : vector<2x128xf32>
    %473 = math.tanh %452 : vector<2x128xf32>
    %474 = vector.extract_strided_slice %472 {offsets = [0, 0], sizes = [2, 32], strides = [1, 1]} : vector<2x128xf32> to vector<2x32xf32>
    %475 = vector.extract_strided_slice %472 {offsets = [0, 32], sizes = [2, 32], strides = [1, 1]} : vector<2x128xf32> to vector<2x32xf32>
    %476 = vector.extract_strided_slice %473 {offsets = [0, 64], sizes = [2, 32], strides = [1, 1]} : vector<2x128xf32> to vector<2x32xf32>
    %477 = vector.extract_strided_slice %472 {offsets = [0, 96], sizes = [2, 32], strides = [1, 1]} : vector<2x128xf32> to vector<2x32xf32>
    %478 = arith.mulf %475, %439 : vector<2x32xf32>
    %479 = arith.mulf %474, %476 : vector<2x32xf32>
    %480 = arith.addf %478, %479 : vector<2x32xf32>
    %481 = math.tanh %480 : vector<2x32xf32>
    %482 = arith.mulf %477, %481 : vector<2x32xf32>
    %483 = tpu.concatenate %467, %482 in 1 : vector<2x32xf32>, vector<2x32xf32> -> vector<2x64xf32>
    %c0_116 = arith.constant 0 : index
    %c0_117 = arith.constant 0 : index
    %484 = vector.load %arg5[%c0_116, %c0_117] : memref<64x256xf32, #tpu.memory_space<vmem>>, vector<64x256xf32>
    %cst_118 = arith.constant dense<0.000000e+00> : vector<2x256xf32>
    %485 = tpu.matmul %483, %484, %cst_118 {dimension_numbers = #tpu.dot_dimension_numbers<[1], [0], [0], [1], [0, 0, 1, 1], [], []>} : vector<2x64xf32>, vector<64x256xf32>, vector<2x256xf32> -> vector<2x256xf32>
    %486 = vector.extract_strided_slice %485 {offsets = [0, 0], sizes = [2, 128], strides = [1, 1]} : vector<2x256xf32> to vector<2x128xf32>
    %487 = vector.extract_strided_slice %398 {offsets = [2, 0, 0], sizes = [1, 2, 128], strides = [1, 1, 1]} : vector<8x2x256xf32> to vector<1x2x128xf32>
    %488 = vector.shape_cast %487 : vector<1x2x128xf32> to vector<2x128xf32>
    %489 = arith.addf %486, %488 : vector<2x128xf32>
    %490 = vector.extract_strided_slice %485 {offsets = [0, 128], sizes = [2, 128], strides = [1, 1]} : vector<2x256xf32> to vector<2x128xf32>
    %491 = vector.extract_strided_slice %398 {offsets = [5, 0, 128], sizes = [1, 2, 128], strides = [1, 1, 1]} : vector<8x2x256xf32> to vector<1x2x128xf32>
    %492 = vector.shape_cast %491 : vector<1x2x128xf32> to vector<2x128xf32>
    %493 = arith.addf %490, %492 : vector<2x128xf32>
    %494 = arith.negf %489 : vector<2x128xf32>
    %495 = math.exp %494 : vector<2x128xf32>
    %cst_119 = arith.constant 1.000000e+00 : f32
    %496 = vector.broadcast %cst_119 : f32 to vector<2x128xf32>
    %497 = arith.addf %496, %495 : vector<2x128xf32>
    %498 = arith.divf %496, %497 : vector<2x128xf32>
    %499 = math.tanh %489 : vector<2x128xf32>
    %500 = vector.extract_strided_slice %498 {offsets = [0, 0], sizes = [2, 32], strides = [1, 1]} : vector<2x128xf32> to vector<2x32xf32>
    %501 = vector.extract_strided_slice %498 {offsets = [0, 32], sizes = [2, 32], strides = [1, 1]} : vector<2x128xf32> to vector<2x32xf32>
    %502 = vector.extract_strided_slice %499 {offsets = [0, 64], sizes = [2, 32], strides = [1, 1]} : vector<2x128xf32> to vector<2x32xf32>
    %503 = vector.extract_strided_slice %498 {offsets = [0, 96], sizes = [2, 32], strides = [1, 1]} : vector<2x128xf32> to vector<2x32xf32>
    %504 = arith.mulf %501, %465 : vector<2x32xf32>
    %505 = arith.mulf %500, %502 : vector<2x32xf32>
    %506 = arith.addf %504, %505 : vector<2x32xf32>
    %507 = math.tanh %506 : vector<2x32xf32>
    %508 = arith.mulf %503, %507 : vector<2x32xf32>
    %509 = arith.negf %493 : vector<2x128xf32>
    %510 = math.exp %509 : vector<2x128xf32>
    %cst_120 = arith.constant 1.000000e+00 : f32
    %511 = vector.broadcast %cst_120 : f32 to vector<2x128xf32>
    %512 = arith.addf %511, %510 : vector<2x128xf32>
    %513 = arith.divf %511, %512 : vector<2x128xf32>
    %514 = math.tanh %493 : vector<2x128xf32>
    %515 = vector.extract_strided_slice %513 {offsets = [0, 0], sizes = [2, 32], strides = [1, 1]} : vector<2x128xf32> to vector<2x32xf32>
    %516 = vector.extract_strided_slice %513 {offsets = [0, 32], sizes = [2, 32], strides = [1, 1]} : vector<2x128xf32> to vector<2x32xf32>
    %517 = vector.extract_strided_slice %514 {offsets = [0, 64], sizes = [2, 32], strides = [1, 1]} : vector<2x128xf32> to vector<2x32xf32>
    %518 = vector.extract_strided_slice %513 {offsets = [0, 96], sizes = [2, 32], strides = [1, 1]} : vector<2x128xf32> to vector<2x32xf32>
    %519 = arith.mulf %516, %480 : vector<2x32xf32>
    %520 = arith.mulf %515, %517 : vector<2x32xf32>
    %521 = arith.addf %519, %520 : vector<2x32xf32>
    %522 = math.tanh %521 : vector<2x32xf32>
    %523 = arith.mulf %518, %522 : vector<2x32xf32>
    %524 = tpu.concatenate %508, %523 in 1 : vector<2x32xf32>, vector<2x32xf32> -> vector<2x64xf32>
    %c0_121 = arith.constant 0 : index
    %c0_122 = arith.constant 0 : index
    %525 = vector.load %arg5[%c0_121, %c0_122] : memref<64x256xf32, #tpu.memory_space<vmem>>, vector<64x256xf32>
    %cst_123 = arith.constant dense<0.000000e+00> : vector<2x256xf32>
    %526 = tpu.matmul %524, %525, %cst_123 {dimension_numbers = #tpu.dot_dimension_numbers<[1], [0], [0], [1], [0, 0, 1, 1], [], []>} : vector<2x64xf32>, vector<64x256xf32>, vector<2x256xf32> -> vector<2x256xf32>
    %527 = vector.extract_strided_slice %526 {offsets = [0, 0], sizes = [2, 128], strides = [1, 1]} : vector<2x256xf32> to vector<2x128xf32>
    %528 = vector.extract_strided_slice %398 {offsets = [3, 0, 0], sizes = [1, 2, 128], strides = [1, 1, 1]} : vector<8x2x256xf32> to vector<1x2x128xf32>
    %529 = vector.shape_cast %528 : vector<1x2x128xf32> to vector<2x128xf32>
    %530 = arith.addf %527, %529 : vector<2x128xf32>
    %531 = vector.extract_strided_slice %526 {offsets = [0, 128], sizes = [2, 128], strides = [1, 1]} : vector<2x256xf32> to vector<2x128xf32>
    %532 = vector.extract_strided_slice %398 {offsets = [4, 0, 128], sizes = [1, 2, 128], strides = [1, 1, 1]} : vector<8x2x256xf32> to vector<1x2x128xf32>
    %533 = vector.shape_cast %532 : vector<1x2x128xf32> to vector<2x128xf32>
    %534 = arith.addf %531, %533 : vector<2x128xf32>
    %535 = arith.negf %530 : vector<2x128xf32>
    %536 = math.exp %535 : vector<2x128xf32>
    %cst_124 = arith.constant 1.000000e+00 : f32
    %537 = vector.broadcast %cst_124 : f32 to vector<2x128xf32>
    %538 = arith.addf %537, %536 : vector<2x128xf32>
    %539 = arith.divf %537, %538 : vector<2x128xf32>
    %540 = math.tanh %530 : vector<2x128xf32>
    %541 = vector.extract_strided_slice %539 {offsets = [0, 0], sizes = [2, 32], strides = [1, 1]} : vector<2x128xf32> to vector<2x32xf32>
    %542 = vector.extract_strided_slice %539 {offsets = [0, 32], sizes = [2, 32], strides = [1, 1]} : vector<2x128xf32> to vector<2x32xf32>
    %543 = vector.extract_strided_slice %540 {offsets = [0, 64], sizes = [2, 32], strides = [1, 1]} : vector<2x128xf32> to vector<2x32xf32>
    %544 = vector.extract_strided_slice %539 {offsets = [0, 96], sizes = [2, 32], strides = [1, 1]} : vector<2x128xf32> to vector<2x32xf32>
    %545 = arith.mulf %542, %506 : vector<2x32xf32>
    %546 = arith.mulf %541, %543 : vector<2x32xf32>
    %547 = arith.addf %545, %546 : vector<2x32xf32>
    %548 = math.tanh %547 : vector<2x32xf32>
    %549 = arith.mulf %544, %548 : vector<2x32xf32>
    %550 = arith.negf %534 : vector<2x128xf32>
    %551 = math.exp %550 : vector<2x128xf32>
    %cst_125 = arith.constant 1.000000e+00 : f32
    %552 = vector.broadcast %cst_125 : f32 to vector<2x128xf32>
    %553 = arith.addf %552, %551 : vector<2x128xf32>
    %554 = arith.divf %552, %553 : vector<2x128xf32>
    %555 = math.tanh %534 : vector<2x128xf32>
    %556 = vector.extract_strided_slice %554 {offsets = [0, 0], sizes = [2, 32], strides = [1, 1]} : vector<2x128xf32> to vector<2x32xf32>
    %557 = vector.extract_strided_slice %554 {offsets = [0, 32], sizes = [2, 32], strides = [1, 1]} : vector<2x128xf32> to vector<2x32xf32>
    %558 = vector.extract_strided_slice %555 {offsets = [0, 64], sizes = [2, 32], strides = [1, 1]} : vector<2x128xf32> to vector<2x32xf32>
    %559 = vector.extract_strided_slice %554 {offsets = [0, 96], sizes = [2, 32], strides = [1, 1]} : vector<2x128xf32> to vector<2x32xf32>
    %560 = arith.mulf %557, %521 : vector<2x32xf32>
    %561 = arith.mulf %556, %558 : vector<2x32xf32>
    %562 = arith.addf %560, %561 : vector<2x32xf32>
    %563 = math.tanh %562 : vector<2x32xf32>
    %564 = arith.mulf %559, %563 : vector<2x32xf32>
    %565 = tpu.concatenate %549, %564 in 1 : vector<2x32xf32>, vector<2x32xf32> -> vector<2x64xf32>
    %c0_126 = arith.constant 0 : index
    %c0_127 = arith.constant 0 : index
    %566 = vector.load %arg5[%c0_126, %c0_127] : memref<64x256xf32, #tpu.memory_space<vmem>>, vector<64x256xf32>
    %cst_128 = arith.constant dense<0.000000e+00> : vector<2x256xf32>
    %567 = tpu.matmul %565, %566, %cst_128 {dimension_numbers = #tpu.dot_dimension_numbers<[1], [0], [0], [1], [0, 0, 1, 1], [], []>} : vector<2x64xf32>, vector<64x256xf32>, vector<2x256xf32> -> vector<2x256xf32>
    %568 = vector.extract_strided_slice %567 {offsets = [0, 0], sizes = [2, 128], strides = [1, 1]} : vector<2x256xf32> to vector<2x128xf32>
    %569 = vector.extract_strided_slice %398 {offsets = [4, 0, 0], sizes = [1, 2, 128], strides = [1, 1, 1]} : vector<8x2x256xf32> to vector<1x2x128xf32>
    %570 = vector.shape_cast %569 : vector<1x2x128xf32> to vector<2x128xf32>
    %571 = arith.addf %568, %570 : vector<2x128xf32>
    %572 = vector.extract_strided_slice %567 {offsets = [0, 128], sizes = [2, 128], strides = [1, 1]} : vector<2x256xf32> to vector<2x128xf32>
    %573 = vector.extract_strided_slice %398 {offsets = [3, 0, 128], sizes = [1, 2, 128], strides = [1, 1, 1]} : vector<8x2x256xf32> to vector<1x2x128xf32>
    %574 = vector.shape_cast %573 : vector<1x2x128xf32> to vector<2x128xf32>
    %575 = arith.addf %572, %574 : vector<2x128xf32>
    %576 = arith.negf %571 : vector<2x128xf32>
    %577 = math.exp %576 : vector<2x128xf32>
    %cst_129 = arith.constant 1.000000e+00 : f32
    %578 = vector.broadcast %cst_129 : f32 to vector<2x128xf32>
    %579 = arith.addf %578, %577 : vector<2x128xf32>
    %580 = arith.divf %578, %579 : vector<2x128xf32>
    %581 = math.tanh %571 : vector<2x128xf32>
    %582 = vector.extract_strided_slice %580 {offsets = [0, 0], sizes = [2, 32], strides = [1, 1]} : vector<2x128xf32> to vector<2x32xf32>
    %583 = vector.extract_strided_slice %580 {offsets = [0, 32], sizes = [2, 32], strides = [1, 1]} : vector<2x128xf32> to vector<2x32xf32>
    %584 = vector.extract_strided_slice %581 {offsets = [0, 64], sizes = [2, 32], strides = [1, 1]} : vector<2x128xf32> to vector<2x32xf32>
    %585 = vector.extract_strided_slice %580 {offsets = [0, 96], sizes = [2, 32], strides = [1, 1]} : vector<2x128xf32> to vector<2x32xf32>
    %586 = arith.mulf %583, %547 : vector<2x32xf32>
    %587 = arith.mulf %582, %584 : vector<2x32xf32>
    %588 = arith.addf %586, %587 : vector<2x32xf32>
    %589 = math.tanh %588 : vector<2x32xf32>
    %590 = arith.mulf %585, %589 : vector<2x32xf32>
    %591 = arith.negf %575 : vector<2x128xf32>
    %592 = math.exp %591 : vector<2x128xf32>
    %cst_130 = arith.constant 1.000000e+00 : f32
    %593 = vector.broadcast %cst_130 : f32 to vector<2x128xf32>
    %594 = arith.addf %593, %592 : vector<2x128xf32>
    %595 = arith.divf %593, %594 : vector<2x128xf32>
    %596 = math.tanh %575 : vector<2x128xf32>
    %597 = vector.extract_strided_slice %595 {offsets = [0, 0], sizes = [2, 32], strides = [1, 1]} : vector<2x128xf32> to vector<2x32xf32>
    %598 = vector.extract_strided_slice %595 {offsets = [0, 32], sizes = [2, 32], strides = [1, 1]} : vector<2x128xf32> to vector<2x32xf32>
    %599 = vector.extract_strided_slice %596 {offsets = [0, 64], sizes = [2, 32], strides = [1, 1]} : vector<2x128xf32> to vector<2x32xf32>
    %600 = vector.extract_strided_slice %595 {offsets = [0, 96], sizes = [2, 32], strides = [1, 1]} : vector<2x128xf32> to vector<2x32xf32>
    %601 = arith.mulf %598, %562 : vector<2x32xf32>
    %602 = arith.mulf %597, %599 : vector<2x32xf32>
    %603 = arith.addf %601, %602 : vector<2x32xf32>
    %604 = math.tanh %603 : vector<2x32xf32>
    %605 = arith.mulf %600, %604 : vector<2x32xf32>
    %606 = tpu.concatenate %590, %605 in 1 : vector<2x32xf32>, vector<2x32xf32> -> vector<2x64xf32>
    %c0_131 = arith.constant 0 : index
    %c0_132 = arith.constant 0 : index
    %607 = vector.load %arg5[%c0_131, %c0_132] : memref<64x256xf32, #tpu.memory_space<vmem>>, vector<64x256xf32>
    %cst_133 = arith.constant dense<0.000000e+00> : vector<2x256xf32>
    %608 = tpu.matmul %606, %607, %cst_133 {dimension_numbers = #tpu.dot_dimension_numbers<[1], [0], [0], [1], [0, 0, 1, 1], [], []>} : vector<2x64xf32>, vector<64x256xf32>, vector<2x256xf32> -> vector<2x256xf32>
    %609 = vector.extract_strided_slice %608 {offsets = [0, 0], sizes = [2, 128], strides = [1, 1]} : vector<2x256xf32> to vector<2x128xf32>
    %610 = vector.extract_strided_slice %398 {offsets = [5, 0, 0], sizes = [1, 2, 128], strides = [1, 1, 1]} : vector<8x2x256xf32> to vector<1x2x128xf32>
    %611 = vector.shape_cast %610 : vector<1x2x128xf32> to vector<2x128xf32>
    %612 = arith.addf %609, %611 : vector<2x128xf32>
    %613 = vector.extract_strided_slice %608 {offsets = [0, 128], sizes = [2, 128], strides = [1, 1]} : vector<2x256xf32> to vector<2x128xf32>
    %614 = vector.extract_strided_slice %398 {offsets = [2, 0, 128], sizes = [1, 2, 128], strides = [1, 1, 1]} : vector<8x2x256xf32> to vector<1x2x128xf32>
    %615 = vector.shape_cast %614 : vector<1x2x128xf32> to vector<2x128xf32>
    %616 = arith.addf %613, %615 : vector<2x128xf32>
    %617 = arith.negf %612 : vector<2x128xf32>
    %618 = math.exp %617 : vector<2x128xf32>
    %cst_134 = arith.constant 1.000000e+00 : f32
    %619 = vector.broadcast %cst_134 : f32 to vector<2x128xf32>
    %620 = arith.addf %619, %618 : vector<2x128xf32>
    %621 = arith.divf %619, %620 : vector<2x128xf32>
    %622 = math.tanh %612 : vector<2x128xf32>
    %623 = vector.extract_strided_slice %621 {offsets = [0, 0], sizes = [2, 32], strides = [1, 1]} : vector<2x128xf32> to vector<2x32xf32>
    %624 = vector.extract_strided_slice %621 {offsets = [0, 32], sizes = [2, 32], strides = [1, 1]} : vector<2x128xf32> to vector<2x32xf32>
    %625 = vector.extract_strided_slice %622 {offsets = [0, 64], sizes = [2, 32], strides = [1, 1]} : vector<2x128xf32> to vector<2x32xf32>
    %626 = vector.extract_strided_slice %621 {offsets = [0, 96], sizes = [2, 32], strides = [1, 1]} : vector<2x128xf32> to vector<2x32xf32>
    %627 = arith.mulf %624, %588 : vector<2x32xf32>
    %628 = arith.mulf %623, %625 : vector<2x32xf32>
    %629 = arith.addf %627, %628 : vector<2x32xf32>
    %630 = math.tanh %629 : vector<2x32xf32>
    %631 = arith.mulf %626, %630 : vector<2x32xf32>
    %632 = arith.negf %616 : vector<2x128xf32>
    %633 = math.exp %632 : vector<2x128xf32>
    %cst_135 = arith.constant 1.000000e+00 : f32
    %634 = vector.broadcast %cst_135 : f32 to vector<2x128xf32>
    %635 = arith.addf %634, %633 : vector<2x128xf32>
    %636 = arith.divf %634, %635 : vector<2x128xf32>
    %637 = math.tanh %616 : vector<2x128xf32>
    %638 = vector.extract_strided_slice %636 {offsets = [0, 0], sizes = [2, 32], strides = [1, 1]} : vector<2x128xf32> to vector<2x32xf32>
    %639 = vector.extract_strided_slice %636 {offsets = [0, 32], sizes = [2, 32], strides = [1, 1]} : vector<2x128xf32> to vector<2x32xf32>
    %640 = vector.extract_strided_slice %637 {offsets = [0, 64], sizes = [2, 32], strides = [1, 1]} : vector<2x128xf32> to vector<2x32xf32>
    %641 = vector.extract_strided_slice %636 {offsets = [0, 96], sizes = [2, 32], strides = [1, 1]} : vector<2x128xf32> to vector<2x32xf32>
    %642 = arith.mulf %639, %603 : vector<2x32xf32>
    %643 = arith.mulf %638, %640 : vector<2x32xf32>
    %644 = arith.addf %642, %643 : vector<2x32xf32>
    %645 = math.tanh %644 : vector<2x32xf32>
    %646 = arith.mulf %641, %645 : vector<2x32xf32>
    %647 = tpu.concatenate %631, %646 in 1 : vector<2x32xf32>, vector<2x32xf32> -> vector<2x64xf32>
    %c0_136 = arith.constant 0 : index
    %c0_137 = arith.constant 0 : index
    %648 = vector.load %arg5[%c0_136, %c0_137] : memref<64x256xf32, #tpu.memory_space<vmem>>, vector<64x256xf32>
    %cst_138 = arith.constant dense<0.000000e+00> : vector<2x256xf32>
    %649 = tpu.matmul %647, %648, %cst_138 {dimension_numbers = #tpu.dot_dimension_numbers<[1], [0], [0], [1], [0, 0, 1, 1], [], []>} : vector<2x64xf32>, vector<64x256xf32>, vector<2x256xf32> -> vector<2x256xf32>
    %650 = vector.extract_strided_slice %649 {offsets = [0, 0], sizes = [2, 128], strides = [1, 1]} : vector<2x256xf32> to vector<2x128xf32>
    %651 = vector.extract_strided_slice %398 {offsets = [6, 0, 0], sizes = [1, 2, 128], strides = [1, 1, 1]} : vector<8x2x256xf32> to vector<1x2x128xf32>
    %652 = vector.shape_cast %651 : vector<1x2x128xf32> to vector<2x128xf32>
    %653 = arith.addf %650, %652 : vector<2x128xf32>
    %654 = vector.extract_strided_slice %649 {offsets = [0, 128], sizes = [2, 128], strides = [1, 1]} : vector<2x256xf32> to vector<2x128xf32>
    %655 = vector.extract_strided_slice %398 {offsets = [1, 0, 128], sizes = [1, 2, 128], strides = [1, 1, 1]} : vector<8x2x256xf32> to vector<1x2x128xf32>
    %656 = vector.shape_cast %655 : vector<1x2x128xf32> to vector<2x128xf32>
    %657 = arith.addf %654, %656 : vector<2x128xf32>
    %658 = arith.negf %653 : vector<2x128xf32>
    %659 = math.exp %658 : vector<2x128xf32>
    %cst_139 = arith.constant 1.000000e+00 : f32
    %660 = vector.broadcast %cst_139 : f32 to vector<2x128xf32>
    %661 = arith.addf %660, %659 : vector<2x128xf32>
    %662 = arith.divf %660, %661 : vector<2x128xf32>
    %663 = math.tanh %653 : vector<2x128xf32>
    %664 = vector.extract_strided_slice %662 {offsets = [0, 0], sizes = [2, 32], strides = [1, 1]} : vector<2x128xf32> to vector<2x32xf32>
    %665 = vector.extract_strided_slice %662 {offsets = [0, 32], sizes = [2, 32], strides = [1, 1]} : vector<2x128xf32> to vector<2x32xf32>
    %666 = vector.extract_strided_slice %663 {offsets = [0, 64], sizes = [2, 32], strides = [1, 1]} : vector<2x128xf32> to vector<2x32xf32>
    %667 = vector.extract_strided_slice %662 {offsets = [0, 96], sizes = [2, 32], strides = [1, 1]} : vector<2x128xf32> to vector<2x32xf32>
    %668 = arith.mulf %665, %629 : vector<2x32xf32>
    %669 = arith.mulf %664, %666 : vector<2x32xf32>
    %670 = arith.addf %668, %669 : vector<2x32xf32>
    %671 = math.tanh %670 : vector<2x32xf32>
    %672 = arith.mulf %667, %671 : vector<2x32xf32>
    %673 = arith.negf %657 : vector<2x128xf32>
    %674 = math.exp %673 : vector<2x128xf32>
    %cst_140 = arith.constant 1.000000e+00 : f32
    %675 = vector.broadcast %cst_140 : f32 to vector<2x128xf32>
    %676 = arith.addf %675, %674 : vector<2x128xf32>
    %677 = arith.divf %675, %676 : vector<2x128xf32>
    %678 = math.tanh %657 : vector<2x128xf32>
    %679 = vector.extract_strided_slice %677 {offsets = [0, 0], sizes = [2, 32], strides = [1, 1]} : vector<2x128xf32> to vector<2x32xf32>
    %680 = vector.extract_strided_slice %677 {offsets = [0, 32], sizes = [2, 32], strides = [1, 1]} : vector<2x128xf32> to vector<2x32xf32>
    %681 = vector.extract_strided_slice %678 {offsets = [0, 64], sizes = [2, 32], strides = [1, 1]} : vector<2x128xf32> to vector<2x32xf32>
    %682 = vector.extract_strided_slice %677 {offsets = [0, 96], sizes = [2, 32], strides = [1, 1]} : vector<2x128xf32> to vector<2x32xf32>
    %683 = arith.mulf %680, %644 : vector<2x32xf32>
    %684 = arith.mulf %679, %681 : vector<2x32xf32>
    %685 = arith.addf %683, %684 : vector<2x32xf32>
    %686 = math.tanh %685 : vector<2x32xf32>
    %687 = arith.mulf %682, %686 : vector<2x32xf32>
    %688 = tpu.concatenate %672, %687 in 1 : vector<2x32xf32>, vector<2x32xf32> -> vector<2x64xf32>
    %c0_141 = arith.constant 0 : index
    %c0_142 = arith.constant 0 : index
    %689 = vector.load %arg5[%c0_141, %c0_142] : memref<64x256xf32, #tpu.memory_space<vmem>>, vector<64x256xf32>
    %cst_143 = arith.constant dense<0.000000e+00> : vector<2x256xf32>
    %690 = tpu.matmul %688, %689, %cst_143 {dimension_numbers = #tpu.dot_dimension_numbers<[1], [0], [0], [1], [0, 0, 1, 1], [], []>} : vector<2x64xf32>, vector<64x256xf32>, vector<2x256xf32> -> vector<2x256xf32>
    %691 = vector.extract_strided_slice %690 {offsets = [0, 0], sizes = [2, 128], strides = [1, 1]} : vector<2x256xf32> to vector<2x128xf32>
    %692 = vector.extract_strided_slice %398 {offsets = [7, 0, 0], sizes = [1, 2, 128], strides = [1, 1, 1]} : vector<8x2x256xf32> to vector<1x2x128xf32>
    %693 = vector.shape_cast %692 : vector<1x2x128xf32> to vector<2x128xf32>
    %694 = arith.addf %691, %693 : vector<2x128xf32>
    %695 = vector.extract_strided_slice %690 {offsets = [0, 128], sizes = [2, 128], strides = [1, 1]} : vector<2x256xf32> to vector<2x128xf32>
    %696 = vector.extract_strided_slice %398 {offsets = [0, 0, 128], sizes = [1, 2, 128], strides = [1, 1, 1]} : vector<8x2x256xf32> to vector<1x2x128xf32>
    %697 = vector.shape_cast %696 : vector<1x2x128xf32> to vector<2x128xf32>
    %698 = arith.addf %695, %697 : vector<2x128xf32>
    %699 = arith.negf %694 : vector<2x128xf32>
    %700 = math.exp %699 : vector<2x128xf32>
    %cst_144 = arith.constant 1.000000e+00 : f32
    %701 = vector.broadcast %cst_144 : f32 to vector<2x128xf32>
    %702 = arith.addf %701, %700 : vector<2x128xf32>
    %703 = arith.divf %701, %702 : vector<2x128xf32>
    %704 = math.tanh %694 : vector<2x128xf32>
    %705 = vector.extract_strided_slice %703 {offsets = [0, 0], sizes = [2, 32], strides = [1, 1]} : vector<2x128xf32> to vector<2x32xf32>
    %706 = vector.extract_strided_slice %703 {offsets = [0, 32], sizes = [2, 32], strides = [1, 1]} : vector<2x128xf32> to vector<2x32xf32>
    %707 = vector.extract_strided_slice %704 {offsets = [0, 64], sizes = [2, 32], strides = [1, 1]} : vector<2x128xf32> to vector<2x32xf32>
    %708 = vector.extract_strided_slice %703 {offsets = [0, 96], sizes = [2, 32], strides = [1, 1]} : vector<2x128xf32> to vector<2x32xf32>
    %709 = arith.mulf %706, %670 : vector<2x32xf32>
    %710 = arith.mulf %705, %707 : vector<2x32xf32>
    %711 = arith.addf %709, %710 : vector<2x32xf32>
    %712 = math.tanh %711 : vector<2x32xf32>
    %713 = arith.mulf %708, %712 : vector<2x32xf32>
    %714 = arith.negf %698 : vector<2x128xf32>
    %715 = math.exp %714 : vector<2x128xf32>
    %cst_145 = arith.constant 1.000000e+00 : f32
    %716 = vector.broadcast %cst_145 : f32 to vector<2x128xf32>
    %717 = arith.addf %716, %715 : vector<2x128xf32>
    %718 = arith.divf %716, %717 : vector<2x128xf32>
    %719 = math.tanh %698 : vector<2x128xf32>
    %720 = vector.extract_strided_slice %718 {offsets = [0, 0], sizes = [2, 32], strides = [1, 1]} : vector<2x128xf32> to vector<2x32xf32>
    %721 = vector.extract_strided_slice %718 {offsets = [0, 32], sizes = [2, 32], strides = [1, 1]} : vector<2x128xf32> to vector<2x32xf32>
    %722 = vector.extract_strided_slice %719 {offsets = [0, 64], sizes = [2, 32], strides = [1, 1]} : vector<2x128xf32> to vector<2x32xf32>
    %723 = vector.extract_strided_slice %718 {offsets = [0, 96], sizes = [2, 32], strides = [1, 1]} : vector<2x128xf32> to vector<2x32xf32>
    %724 = arith.mulf %721, %685 : vector<2x32xf32>
    %725 = arith.mulf %720, %722 : vector<2x32xf32>
    %726 = arith.addf %724, %725 : vector<2x32xf32>
    %727 = math.tanh %726 : vector<2x32xf32>
    %728 = arith.mulf %723, %727 : vector<2x32xf32>
    %729 = tpu.concatenate %426, %728, %713, %441 in 1 : vector<2x32xf32>, vector<2x32xf32>, vector<2x32xf32>, vector<2x32xf32> -> vector<2x128xf32>
    %c0_146 = arith.constant 0 : index
    %c0_147 = arith.constant 0 : index
    %730 = vector.load %arg7[%c0_146, %c0_147] : memref<128x2xf32, #tpu.memory_space<vmem>>, vector<128x2xf32>
    %cst_148 = arith.constant dense<0.000000e+00> : vector<2x2xf32>
    %731 = tpu.matmul %729, %730, %cst_148 {dimension_numbers = #tpu.dot_dimension_numbers<[1], [0], [0], [1], [0, 0, 1, 1], [], []>} : vector<2x128xf32>, vector<128x2xf32>, vector<2x2xf32> -> vector<2x2xf32>
    %c0_149 = arith.constant 0 : index
    %c0_150 = arith.constant 0 : index
    %732 = vector.load %arg8[%c0_149, %c0_150] : memref<1x2xf32, #tpu.memory_space<vmem>>, vector<1x2xf32>
    %733 = vector.broadcast %732 : vector<1x2xf32> to vector<2x2xf32>
    %734 = arith.addf %731, %733 : vector<2x2xf32>
    %c0_151 = arith.constant 0 : index
    %c0_152 = arith.constant 0 : index
    %735 = vector.load %arg9[%c0_151, %c0_152] : memref<2x2xf32, #tpu.memory_space<vmem>>, vector<2x2xf32>
    tpu.vector_store %arg9[%c0_151, %c0_152], %734 {strides = array<i32>} : memref<2x2xf32, #tpu.memory_space<vmem>>, vector<2x2xf32>,
    return
  }
}

</mosaic_0001>

<llo_original>
// kernel: sentiment_net_forward.1
$region0: #{sentiment_net_forward.1}
  #allocation0 [shape = 'u32[]', space=smem, size = 0x4, offset = 0x4, fixed_abs, tag = 'smem constant byte address 0x4 - core index']
  #allocation1 [shape = 'u32[144,128]{1,0:T(1,128)}', space=vmem, size = 0x12000, scoped, tag = 'internal scratch']
  #allocation2 [shape = 'f32[8,2,32]{2,1,0:T(2,128)}', space=vmem, size = 0x2000, scoped, tag = 'scratch operand']
  #allocation3 [shape = 'f32[8,2,32]{2,1,0:T(2,128)}', space=vmem, size = 0x2000, scoped, tag = 'scratch operand']
  %s0 = inlined_call_operand.vmem [shape: f32[8,2,32], index: 0, kind: input, shape index: {}]
  %s1 = inlined_call_operand.vmem [shape: f32[32,256], index: 1, kind: input, shape index: {}]
  %s2 = inlined_call_operand.vmem [shape: f32[64,256], index: 2, kind: input, shape index: {}]
  %s3 = inlined_call_operand.vmem [shape: f32[1,256], index: 3, kind: input, shape index: {}]
  %s4 = inlined_call_operand.vmem [shape: f32[64,256], index: 4, kind: input, shape index: {}]
  %s5 = inlined_call_operand.vmem [shape: f32[64,256], index: 5, kind: input, shape index: {}]
  %s6 = inlined_call_operand.vmem [shape: f32[1,256], index: 6, kind: input, shape index: {}]
  %s7 = inlined_call_operand.vmem [shape: f32[128,2], index: 7, kind: input, shape index: {}]
  %s8 = inlined_call_operand.vmem [shape: f32[1,2], index: 8, kind: input, shape index: {}]
  %s9 = inlined_call_operand.hbm [shape: f32[2,2], index: 9, kind: output, shape index: {}]
  %s10 = sld [smem:[#allocation0]]
  $region46: #{sentiment_net_forward.1} parent=0
    _
  %s12 = ssub.s32 1, %s10
  %s13 = scalar_select 0, %s12, %s10
  $region1: #{sentiment_net_forward.1} parent=0
    #allocation4 [shape = 'u8[1024]{0}', space=vmem, size = 0x400, scoped, tag = 'output window, operand 0, single buffered']
    #allocation5 [shape = 's32[1]{0}', space=sflag, size = 0x4, scoped, tag = 'scoped memory for sentiment_net_forward.1']
    %14 = vsyncpa [#allocation5], 0
    // Predicated region
    $region2: #{sentiment_net_forward.1} parent=1 // pred_check
      _
    $region3: #{sentiment_net_forward.1} parent=1 // pred_check_branch
      %16 = sbr.rel (0) target = $region5
    $region4: #{sentiment_net_forward.1} parent=1 // pred_region
      _
    $region5: #{sentiment_net_forward.1} parent=1 // pred_fallthru
      _
    // Predicated region
    $region6: #{sentiment_net_forward.1} parent=1 // pred_check
      _
    $region7: #{sentiment_net_forward.1} parent=1 // pred_check_branch
      %18 = sbr.rel (0) target = $region9
    $region8: #{sentiment_net_forward.1} parent=1 // pred_region
      _
    $region9: #{sentiment_net_forward.1} parent=1 // pred_fallthru
      _
    // Predicated region
    $region10: #{sentiment_net_forward.1} parent=1 // pred_check
      _
    $region11: #{sentiment_net_forward.1} parent=1 // pred_check_branch
      %20 = sbr.rel (0) target = $region13
    $region12: #{sentiment_net_forward.1} parent=1 // pred_region
      _
    $region13: #{sentiment_net_forward.1} parent=1 // pred_fallthru
      _
    // Predicated region
    $region14: #{sentiment_net_forward.1} parent=1 // pred_check
      _
    $region15: #{sentiment_net_forward.1} parent=1 // pred_check_branch
      %22 = sbr.rel (0) target = $region17
    $region16: #{sentiment_net_forward.1} parent=1 // pred_region
      _
    $region17: #{sentiment_net_forward.1} parent=1 // pred_fallthru
      _
    // Predicated region
    $region18: #{sentiment_net_forward.1} parent=1 // pred_check
      _
    $region19: #{sentiment_net_forward.1} parent=1 // pred_check_branch
      %24 = sbr.rel (0) target = $region21
    $region20: #{sentiment_net_forward.1} parent=1 // pred_region
      _
    $region21: #{sentiment_net_forward.1} parent=1 // pred_fallthru
      _
    // Predicated region
    $region22: #{sentiment_net_forward.1} parent=1 // pred_check
      _
    $region23: #{sentiment_net_forward.1} parent=1 // pred_check_branch
      %26 = sbr.rel (0) target = $region25
    $region24: #{sentiment_net_forward.1} parent=1 // pred_region
      _
    $region25: #{sentiment_net_forward.1} parent=1 // pred_fallthru
      _
    // Predicated region
    $region26: #{sentiment_net_forward.1} parent=1 // pred_check
      _
    $region27: #{sentiment_net_forward.1} parent=1 // pred_check_branch
      %28 = sbr.rel (0) target = $region29
    $region28: #{sentiment_net_forward.1} parent=1 // pred_region
      _
    $region29: #{sentiment_net_forward.1} parent=1 // pred_fallthru
      _
    // Predicated region
    $region30: #{sentiment_net_forward.1} parent=1 // pred_check
      _
    $region31: #{sentiment_net_forward.1} parent=1 // pred_check_branch
      %30 = sbr.rel (0) target = $region33
    $region32: #{sentiment_net_forward.1} parent=1 // pred_region
      _
    $region33: #{sentiment_net_forward.1} parent=1 // pred_fallthru
      _
    // Predicated region
    $region34: #{sentiment_net_forward.1} parent=1 // pred_check
      _
    $region35: #{sentiment_net_forward.1} parent=1 // pred_check_branch
      %32 = sbr.rel (0) target = $region37
    $region36: #{sentiment_net_forward.1} parent=1 // pred_region
      _
    $region37: #{sentiment_net_forward.1} parent=1 // pred_fallthru
      _
    %v33 = vld [vmem:[%s0] sm:$0x3]
    %v34 = vld [vmem:[%s0 + $0x2] sm:$0x3]
    %v35 = vld [vmem:[%s0 + $0x4] sm:$0x3]
    %v36 = vld [vmem:[%s0 + $0x6] sm:$0x3]
    %v37 = vld [vmem:[%s0 + $0x8] sm:$0x3]
    %v38 = vld [vmem:[%s0 + $0xa] sm:$0x3]
    %v39 = vld [vmem:[%s0 + $0xc] sm:$0x3]
    %v40 = vld [vmem:[%s0 + $0xe] sm:$0x3]
    %v41 = vld [vmem:[%s1] sm:$0xff]
    %v42 = vld [vmem:[%s1 + $0x8] sm:$0xff]
    %v43 = vld [vmem:[%s1 + $0x10] sm:$0xff]
    %v44 = vld [vmem:[%s1 + $0x18] sm:$0xff]
    %v45 = vld [vmem:[%s1 + $0x20] sm:$0xff]
    %v46 = vld [vmem:[%s1 + $0x28] sm:$0xff]
    %v47 = vld [vmem:[%s1 + $0x30] sm:$0xff]
    %v48 = vld [vmem:[%s1 + $0x38] sm:$0xff]
    %v49 = vld [vmem:[%s3] sm:$0x3]
    %v51 = vlaneseq
    %v52 = vshrl.u32 %v51, 7
    %v53 = vsub.s32 0, %v52
    %v54 = vrot.slane %v49, %v53
    %v55 = vlaneseq
    %v56 = vshrl.u32 %v55, 7
    %v57 = vsub.s32 1, %v56
    %v58 = vrot.slane %v49, %v57
    %v69 = vcombine.low %v33, %v34
    %v70 = vcombine.low %v35, %v36
    %v72 = vunpack.c.l.s4 1983009808
    %v73 = vunpack.c.0.s8 %v72
    %v74 = vlaneseq
    %v75 = vshrl.u32 %v74, 7
    %v76 = vsub.s32 %v73, %v75
    %v77 = vrot.slane %v69, %v76
    %v79 = vunpack.c.l.s4 1983009808
    %v80 = vunpack.c.0.s8 %v79
    %v81 = vlaneseq
    %v82 = vshrl.u32 %v81, 7
    %v83 = vsub.s32 %v80, %v82
    %v84 = vrot.slane %v70, %v83
    %v85 = vcombine.low %v77, %v84
    %v86 = vcombine.low %v37, %v38
    %v87 = vcombine.low %v39, %v40
    %v89 = vunpack.c.l.s4 1983009808
    %v90 = vunpack.c.0.s8 %v89
    %v91 = vlaneseq
    %v92 = vshrl.u32 %v91, 7
    %v93 = vsub.s32 %v90, %v92
    %v94 = vrot.slane %v86, %v93
    %v96 = vunpack.c.l.s4 1983009808
    %v97 = vunpack.c.0.s8 %v96
    %v98 = vlaneseq
    %v99 = vshrl.u32 %v98, 7
    %v100 = vsub.s32 %v97, %v99
    %v101 = vrot.slane %v87, %v100
    %v102 = vcombine.low %v94, %v101
    %vm103 = vcmask 261120
    %v104 = vsel %vm103, %v85, 0
    %v106 = vsel %vm103, %v102, 0
    %108 = vmatprep.subr.mxu0 0.0
    %109 = vmatpush1.msra.mxu0 0.0
    %110 = vmatprep.subr.mxu0 0.0
    %111 = vmatpush1.msra.mxu0 0.0
    %112 = vmatprep.subr.mxu0 0.0
    %113 = vmatpush1.msra.mxu0 0.0
    %114 = vmatprep.subr.mxu0 0.0
    %115 = vmatpush1.msra.mxu0 0.0
    %116 = vmatprep.subr.mxu0 0.0
    %117 = vmatpush1.msra.mxu0 0.0
    %118 = vmatprep.subr.mxu0 0.0
    %119 = vmatpush1.msra.mxu0 0.0
    %120 = vmatprep.subr.mxu0 0.0
    %121 = vmatpush1.msra.mxu0 0.0
    %122 = vmatprep.subr.mxu0 0.0
    %123 = vmatpush1.msra.mxu0 0.0
    %124 = vmatprep.subr.mxu0 0.0
    %125 = vmatpush1.msra.mxu0 0.0
    %126 = vmatprep.subr.mxu0 0.0
    %127 = vmatpush1.msra.mxu0 0.0
    %128 = vmatprep.subr.mxu0 0.0
    %129 = vmatpush1.msra.mxu0 0.0
    %130 = vmatprep.subr.mxu0 0.0
    %131 = vmatpush1.msra.mxu0 0.0
    %132 = vmatprep.subr.mxu0 %v48
    %133 = vmatpush1.msra.mxu0 %v47
    %134 = vmatprep.subr.mxu0 %v46
    %135 = vmatpush1.msra.mxu0 %v45
    %136 = vmatprep.subr.mxu0 %v44
    %137 = vmatpush1.msra.mxu0 %v43
    %138 = vmatprep.subr.mxu0 %v42
    %139 = vmatpush1.msra.mxu0 %v41
    %140 = vmatprep.subr.mxu0 0.0
    %141 = vmatpush2.msra.mxu0 0.0
    %142 = vmatprep.subr.mxu0 0.0
    %143 = vmatpush2.msra.mxu0 0.0
    %144 = vmatprep.subr.mxu0 0.0
    %145 = vmatpush2.msra.mxu0 0.0
    %146 = vmatprep.subr.mxu0 0.0
    %147 = vmatpush2.msra.mxu0 0.0
    %148 = vmatprep.subr.mxu0 0.0
    %149 = vmatpush2.msra.mxu0 0.0
    %150 = vmatprep.subr.mxu0 0.0
    %151 = vmatpush2.msra.mxu0 0.0
    %152 = vmatprep.subr.mxu0 0.0
    %153 = vmatpush2.msra.mxu0 0.0
    %154 = vmatprep.subr.mxu0 0.0
    %155 = vmatpush2.msra.mxu0 0.0
    %156 = vmatprep.subr.mxu0 0.0
    %157 = vmatpush2.msra.mxu0 0.0
    %158 = vmatprep.subr.mxu0 0.0
    %159 = vmatpush2.msra.mxu0 0.0
    %160 = vmatprep.subr.mxu0 0.0
    %161 = vmatpush2.msra.mxu0 0.0
    %162 = vmatprep.subr.mxu0 0.0
    %163 = vmatpush2.msra.mxu0 0.0
    %164 = vmatprep.subr.mxu0 0.0
    %165 = vmatpush2.msra.mxu0 0.0
    %166 = vmatprep.subr.mxu0 0.0
    %167 = vmatpush2.msra.mxu0 0.0
    %168 = vmatprep.subr.mxu0 0.0
    %169 = vmatpush2.msra.mxu0 0.0
    %170 = vmatprep.subr.mxu0 0.0
    %171 = vmatpush2.msra.mxu0 0.0
    %172 = vmatprep.mubr.f32.mxu0 0.0
    %173 = vmatmul.mubr.f32.gmra.mxu0 %v104
    %v174 = vpop.f32.mrf.mxu0
    %v175 = vadd.f32 %v54, %v174
    %v176 = vpop.f32.mrf.mxu0
    %v177 = vadd.f32 %v58, %v176
    %178 = vmatprep.mubr.f32.mxu0 0.0
    %179 = vmatmul.mubr.f32.gmra.mxu0 %v106
    %v180 = vpop.f32.mrf.mxu0
    %v181 = vadd.f32 %v54, %v180
    %v182 = vpop.f32.mrf.mxu0
    %v183 = vadd.f32 %v58, %v182
    %184 = vdwg.mxu0
    %v189 = vcombine.low %v175, %v177
    %v190 = vcombine.high %v175, %v177
    %v192 = vunpack.c.l.s4 1983009808
    %v193 = vunpack.c.0.s8 %v192
    %v194 = vlaneseq
    %v195 = vshrl.u32 %v194, 7
    %v196 = vsub.s32 %v193, %v195
    %v197 = vrot.slane %v189, %v196
    %v199 = vunpack.c.l.s4 1983009808
    %v200 = vunpack.c.0.s8 %v199
    %v201 = vlaneseq
    %v202 = vshrl.u32 %v201, 7
    %v203 = vsub.s32 %v200, %v202
    %v204 = vrot.slane %v190, %v203
    %v205 = vcombine.high %v197, %v197
    %v206 = vcombine.high %v204, %v204
    %v207 = vcombine.low %v181, %v183
    %v208 = vcombine.high %v181, %v183
    %v210 = vunpack.c.l.s4 1983009808
    %v211 = vunpack.c.0.s8 %v210
    %v212 = vlaneseq
    %v213 = vshrl.u32 %v212, 7
    %v214 = vsub.s32 %v211, %v213
    %v215 = vrot.slane %v207, %v214
    %v217 = vunpack.c.l.s4 1983009808
    %v218 = vunpack.c.0.s8 %v217
    %v219 = vlaneseq
    %v220 = vshrl.u32 %v219, 7
    %v221 = vsub.s32 %v218, %v220
    %v222 = vrot.slane %v208, %v221
    %v223 = vcombine.high %v215, %v215
    %v224 = vcombine.high %v222, %v222
    %v233 = vld [vmem:[%s2] sm:$0xff]
    %v234 = vld [vmem:[%s2 + $0x8] sm:$0xff]
    %v235 = vld [vmem:[%s2 + $0x10] sm:$0xff]
    %v236 = vld [vmem:[%s2 + $0x18] sm:$0xff]
    %v237 = vld [vmem:[%s2 + $0x20] sm:$0xff]
    %v238 = vld [vmem:[%s2 + $0x28] sm:$0xff]
    %v239 = vld [vmem:[%s2 + $0x30] sm:$0xff]
    %v240 = vld [vmem:[%s2 + $0x38] sm:$0xff]
    %v241 = vld [vmem:[%s2 + $0x40] sm:$0xff]
    %v242 = vld [vmem:[%s2 + $0x48] sm:$0xff]
    %v243 = vld [vmem:[%s2 + $0x50] sm:$0xff]
    %v244 = vld [vmem:[%s2 + $0x58] sm:$0xff]
    %v245 = vld [vmem:[%s2 + $0x60] sm:$0xff]
    %v246 = vld [vmem:[%s2 + $0x68] sm:$0xff]
    %v247 = vld [vmem:[%s2 + $0x70] sm:$0xff]
    %v248 = vld [vmem:[%s2 + $0x78] sm:$0xff]
    %vm249 = vcmask 523264
    %v251 = vsel %vm249, 0.0, 0
    %253 = vmatprep.subr.mxu0 0.0
    %254 = vmatpush1.msra.mxu0 0.0
    %255 = vmatprep.subr.mxu0 0.0
    %256 = vmatpush1.msra.mxu0 0.0
    %257 = vmatprep.subr.mxu0 0.0
    %258 = vmatpush1.msra.mxu0 0.0
    %259 = vmatprep.subr.mxu0 0.0
    %260 = vmatpush1.msra.mxu0 0.0
    %261 = vmatprep.subr.mxu0 0.0
    %262 = vmatpush1.msra.mxu0 0.0
    %263 = vmatprep.subr.mxu0 0.0
    %264 = vmatpush1.msra.mxu0 0.0
    %265 = vmatprep.subr.mxu0 0.0
    %266 = vmatpush1.msra.mxu0 0.0
    %267 = vmatprep.subr.mxu0 0.0
    %268 = vmatpush1.msra.mxu0 0.0
    %269 = vmatprep.subr.mxu0 %v248
    %270 = vmatpush1.msra.mxu0 %v247
    %271 = vmatprep.subr.mxu0 %v246
    %272 = vmatpush1.msra.mxu0 %v245
    %273 = vmatprep.subr.mxu0 %v244
    %274 = vmatpush1.msra.mxu0 %v243
    %275 = vmatprep.subr.mxu0 %v242
    %276 = vmatpush1.msra.mxu0 %v241
    %277 = vmatprep.subr.mxu0 %v240
    %278 = vmatpush1.msra.mxu0 %v239
    %279 = vmatprep.subr.mxu0 %v238
    %280 = vmatpush1.msra.mxu0 %v237
    %281 = vmatprep.subr.mxu0 %v236
    %282 = vmatpush1.msra.mxu0 %v235
    %283 = vmatprep.subr.mxu0 %v234
    %284 = vmatpush1.msra.mxu0 %v233
    %285 = vmatprep.subr.mxu0 0.0
    %286 = vmatpush2.msra.mxu0 0.0
    %287 = vmatprep.subr.mxu0 0.0
    %288 = vmatpush2.msra.mxu0 0.0
    %289 = vmatprep.subr.mxu0 0.0
    %290 = vmatpush2.msra.mxu0 0.0
    %291 = vmatprep.subr.mxu0 0.0
    %292 = vmatpush2.msra.mxu0 0.0
    %293 = vmatprep.subr.mxu0 0.0
    %294 = vmatpush2.msra.mxu0 0.0
    %295 = vmatprep.subr.mxu0 0.0
    %296 = vmatpush2.msra.mxu0 0.0
    %297 = vmatprep.subr.mxu0 0.0
    %298 = vmatpush2.msra.mxu0 0.0
    %299 = vmatprep.subr.mxu0 0.0
    %300 = vmatpush2.msra.mxu0 0.0
    %301 = vmatprep.subr.mxu0 0.0
    %302 = vmatpush2.msra.mxu0 0.0
    %303 = vmatprep.subr.mxu0 0.0
    %304 = vmatpush2.msra.mxu0 0.0
    %305 = vmatprep.subr.mxu0 0.0
    %306 = vmatpush2.msra.mxu0 0.0
    %307 = vmatprep.subr.mxu0 0.0
    %308 = vmatpush2.msra.mxu0 0.0
    %309 = vmatprep.subr.mxu0 0.0
    %310 = vmatpush2.msra.mxu0 0.0
    %311 = vmatprep.subr.mxu0 0.0
    %312 = vmatpush2.msra.mxu0 0.0
    %313 = vmatprep.subr.mxu0 0.0
    %314 = vmatpush2.msra.mxu0 0.0
    %315 = vmatprep.subr.mxu0 0.0
    %316 = vmatpush2.msra.mxu0 0.0
    %317 = vmatprep.mubr.f32.mxu0 0.0
    %318 = vmatmul.mubr.f32.gmra.mxu0 %v251
    %v319 = vpop.f32.mrf.mxu0
    %v320 = vadd.f32 0.0, %v319
    %v321 = vpop.f32.mrf.mxu0
    %v322 = vadd.f32 0.0, %v321
    %323 = vdwg.mxu0
    %v324 = vadd.f32 %v320, %v197
    %v325 = vrot.slane %v224, 2
    %v327 = vadd.f32 %v322, %v325
    %v328 = vxor.u32 %v324, 2147483648
    %v329 = vmul.f32 %v328, 1.442695
    %v330 = vpow.pop %v329
    %v331 = vadd.f32 %v330, 1.0
    %v332 = vrcp.pop %v331
    %v333 = vmul.f32 1.0, %v332
    %v334 = vtanh.pop %v324
    %v335 = vmul.f32 %v333, 0.0
    %337 = vrot.lane.b32.xlu0 %v334, 64
    %v338 = vpop.permute.xlu0 %337
    %v340 = vmul.f32 %v333, %v338
    %342 = vrot.lane.b32.xlu0 %v340, 32
    %v343 = vpop.permute.xlu0 %342
    %v345 = vadd.f32 %v335, %v343
    %v346 = vtanh.pop %v345
    %348 = vrot.lane.b32.xlu0 %v346, 64
    %v349 = vpop.permute.xlu0 %348
    %v351 = vmul.f32 %v333, %v349
    %v352 = vxor.u32 %v327, 2147483648
    %v353 = vmul.f32 %v352, 1.442695
    %v354 = vpow.pop %v353
    %v355 = vadd.f32 %v354, 1.0
    %v356 = vrcp.pop %v355
    %v357 = vmul.f32 1.0, %v356
    %v358 = vtanh.pop %v327
    %v359 = vmul.f32 %v357, 0.0
    %361 = vrot.lane.b32.xlu0 %v358, 64
    %v362 = vpop.permute.xlu0 %361
    %v364 = vmul.f32 %v357, %v362
    %366 = vrot.lane.b32.xlu0 %v364, 32
    %v367 = vpop.permute.xlu0 %366
    %v369 = vadd.f32 %v359, %v367
    %v370 = vtanh.pop %v369
    %372 = vrot.lane.b32.xlu0 %v370, 64
    %v373 = vpop.permute.xlu0 %372
    %v375 = vmul.f32 %v357, %v373
    %377 = vrot.lane.b32.xlu0 %v351, 32
    %v378 = vpop.permute.xlu0 %377
    %vm380 = vcmask 254976
    %381 = vst.msk [vmem:[#allocation2] sm:$0x3] %vm380, %v378
    %383 = vrot.lane.b32.xlu0 %v375, 32
    %v384 = vpop.permute.xlu0 %383
    %s386 = scalar_lea.vmem [#allocation3], 14
    %387 = vst.msk [vmem:[%s386] sm:$0x3] %vm380, %v384
    %388 = vrot.lane.b32.xlu0 %v375, 64
    %v389 = vpop.permute.xlu0 %388
    %v391 = vsel %vm103, %v378, %v389
    %v392 = vld [vmem:[%s2] sm:$0xff]
    %v393 = vld [vmem:[%s2 + $0x8] sm:$0xff]
    %v394 = vld [vmem:[%s2 + $0x10] sm:$0xff]
    %v395 = vld [vmem:[%s2 + $0x18] sm:$0xff]
    %v396 = vld [vmem:[%s2 + $0x20] sm:$0xff]
    %v397 = vld [vmem:[%s2 + $0x28] sm:$0xff]
    %v398 = vld [vmem:[%s2 + $0x30] sm:$0xff]
    %v399 = vld [vmem:[%s2 + $0x38] sm:$0xff]
    %v400 = vld [vmem:[%s2 + $0x40] sm:$0xff]
    %v401 = vld [vmem:[%s2 + $0x48] sm:$0xff]
    %v402 = vld [vmem:[%s2 + $0x50] sm:$0xff]
    %v403 = vld [vmem:[%s2 + $0x58] sm:$0xff]
    %v404 = vld [vmem:[%s2 + $0x60] sm:$0xff]
    %v405 = vld [vmem:[%s2 + $0x68] sm:$0xff]
    %v406 = vld [vmem:[%s2 + $0x70] sm:$0xff]
    %v407 = vld [vmem:[%s2 + $0x78] sm:$0xff]
    %v409 = vsel %vm249, %v391, 0
    %411 = vmatprep.subr.mxu0 0.0
    %412 = vmatpush1.msra.mxu0 0.0
    %413 = vmatprep.subr.mxu0 0.0
    %414 = vmatpush1.msra.mxu0 0.0
    %415 = vmatprep.subr.mxu0 0.0
    %416 = vmatpush1.msra.mxu0 0.0
    %417 = vmatprep.subr.mxu0 0.0
    %418 = vmatpush1.msra.mxu0 0.0
    %419 = vmatprep.subr.mxu0 0.0
    %420 = vmatpush1.msra.mxu0 0.0
    %421 = vmatprep.subr.mxu0 0.0
    %422 = vmatpush1.msra.mxu0 0.0
    %423 = vmatprep.subr.mxu0 0.0
    %424 = vmatpush1.msra.mxu0 0.0
    %425 = vmatprep.subr.mxu0 0.0
    %426 = vmatpush1.msra.mxu0 0.0
    %427 = vmatprep.subr.mxu0 %v407
    %428 = vmatpush1.msra.mxu0 %v406
    %429 = vmatprep.subr.mxu0 %v405
    %430 = vmatpush1.msra.mxu0 %v404
    %431 = vmatprep.subr.mxu0 %v403
    %432 = vmatpush1.msra.mxu0 %v402
    %433 = vmatprep.subr.mxu0 %v401
    %434 = vmatpush1.msra.mxu0 %v400
    %435 = vmatprep.subr.mxu0 %v399
    %436 = vmatpush1.msra.mxu0 %v398
    %437 = vmatprep.subr.mxu0 %v397
    %438 = vmatpush1.msra.mxu0 %v396
    %439 = vmatprep.subr.mxu0 %v395
    %440 = vmatpush1.msra.mxu0 %v394
    %441 = vmatprep.subr.mxu0 %v393
    %442 = vmatpush1.msra.mxu0 %v392
    %443 = vmatprep.subr.mxu0 0.0
    %444 = vmatpush2.msra.mxu0 0.0
    %445 = vmatprep.subr.mxu0 0.0
    %446 = vmatpush2.msra.mxu0 0.0
    %447 = vmatprep.subr.mxu0 0.0
    %448 = vmatpush2.msra.mxu0 0.0
    %449 = vmatprep.subr.mxu0 0.0
    %450 = vmatpush2.msra.mxu0 0.0
    %451 = vmatprep.subr.mxu0 0.0
    %452 = vmatpush2.msra.mxu0 0.0
    %453 = vmatprep.subr.mxu0 0.0
    %454 = vmatpush2.msra.mxu0 0.0
    %455 = vmatprep.subr.mxu0 0.0
    %456 = vmatpush2.msra.mxu0 0.0
    %457 = vmatprep.subr.mxu0 0.0
    %458 = vmatpush2.msra.mxu0 0.0
    %459 = vmatprep.subr.mxu0 0.0
    %460 = vmatpush2.msra.mxu0 0.0
    %461 = vmatprep.subr.mxu0 0.0
    %462 = vmatpush2.msra.mxu0 0.0
    %463 = vmatprep.subr.mxu0 0.0
    %464 = vmatpush2.msra.mxu0 0.0
    %465 = vmatprep.subr.mxu0 0.0
    %466 = vmatpush2.msra.mxu0 0.0
    %467 = vmatprep.subr.mxu0 0.0
    %468 = vmatpush2.msra.mxu0 0.0
    %469 = vmatprep.subr.mxu0 0.0
    %470 = vmatpush2.msra.mxu0 0.0
    %471 = vmatprep.subr.mxu0 0.0
    %472 = vmatpush2.msra.mxu0 0.0
    %473 = vmatprep.subr.mxu0 0.0
    %474 = vmatpush2.msra.mxu0 0.0
    %475 = vmatprep.mubr.f32.mxu0 0.0
    %476 = vmatmul.mubr.f32.gmra.mxu0 %v409
    %v477 = vpop.f32.mrf.mxu0
    %v478 = vadd.f32 0.0, %v477
    %v479 = vpop.f32.mrf.mxu0
    %v480 = vadd.f32 0.0, %v479
    %481 = vdwg.mxu0
    %v482 = vadd.f32 %v478, %v205
    %v483 = vrot.slane %v222, 2
    %v485 = vadd.f32 %v480, %v483
    %v486 = vxor.u32 %v482, 2147483648
    %v487 = vmul.f32 %v486, 1.442695
    %v488 = vpow.pop %v487
    %v489 = vadd.f32 %v488, 1.0
    %v490 = vrcp.pop %v489
    %v491 = vmul.f32 1.0, %v490
    %v492 = vtanh.pop %v482
    %v493 = vmul.f32 %v491, %v345
    %495 = vrot.lane.b32.xlu0 %v492, 64
    %v496 = vpop.permute.xlu0 %495
    %v498 = vmul.f32 %v491, %v496
    %500 = vrot.lane.b32.xlu0 %v498, 32
    %v501 = vpop.permute.xlu0 %500
    %v503 = vadd.f32 %v493, %v501
    %v504 = vtanh.pop %v503
    %506 = vrot.lane.b32.xlu0 %v504, 64
    %v507 = vpop.permute.xlu0 %506
    %v509 = vmul.f32 %v491, %v507
    %v510 = vxor.u32 %v485, 2147483648
    %v511 = vmul.f32 %v510, 1.442695
    %v512 = vpow.pop %v511
    %v513 = vadd.f32 %v512, 1.0
    %v514 = vrcp.pop %v513
    %v515 = vmul.f32 1.0, %v514
    %v516 = vtanh.pop %v485
    %v517 = vmul.f32 %v515, %v369
    %519 = vrot.lane.b32.xlu0 %v516, 64
    %v520 = vpop.permute.xlu0 %519
    %v522 = vmul.f32 %v515, %v520
    %524 = vrot.lane.b32.xlu0 %v522, 32
    %v525 = vpop.permute.xlu0 %524
    %v527 = vadd.f32 %v517, %v525
    %v528 = vtanh.pop %v527
    %530 = vrot.lane.b32.xlu0 %v528, 64
    %v531 = vpop.permute.xlu0 %530
    %v533 = vmul.f32 %v515, %v531
    %535 = vrot.lane.b32.xlu0 %v509, 32
    %v536 = vpop.permute.xlu0 %535
    %s538 = scalar_lea.vmem [#allocation2], 2
    %539 = vst.msk [vmem:[%s538] sm:$0x3] %vm380, %v536
    %541 = vrot.lane.b32.xlu0 %v533, 32
    %v542 = vpop.permute.xlu0 %541
    %s544 = scalar_lea.vmem [#allocation3], 12
    %545 = vst.msk [vmem:[%s544] sm:$0x3] %vm380, %v542
    %546 = vrot.lane.b32.xlu0 %v533, 64
    %v547 = vpop.permute.xlu0 %546
    %v549 = vsel %vm103, %v536, %v547
    %v550 = vld [vmem:[%s2] sm:$0xff]
    %v551 = vld [vmem:[%s2 + $0x8] sm:$0xff]
    %v552 = vld [vmem:[%s2 + $0x10] sm:$0xff]
    %v553 = vld [vmem:[%s2 + $0x18] sm:$0xff]
    %v554 = vld [vmem:[%s2 + $0x20] sm:$0xff]
    %v555 = vld [vmem:[%s2 + $0x28] sm:$0xff]
    %v556 = vld [vmem:[%s2 + $0x30] sm:$0xff]
    %v557 = vld [vmem:[%s2 + $0x38] sm:$0xff]
    %v558 = vld [vmem:[%s2 + $0x40] sm:$0xff]
    %v559 = vld [vmem:[%s2 + $0x48] sm:$0xff]
    %v560 = vld [vmem:[%s2 + $0x50] sm:$0xff]
    %v561 = vld [vmem:[%s2 + $0x58] sm:$0xff]
    %v562 = vld [vmem:[%s2 + $0x60] sm:$0xff]
    %v563 = vld [vmem:[%s2 + $0x68] sm:$0xff]
    %v564 = vld [vmem:[%s2 + $0x70] sm:$0xff]
    %v565 = vld [vmem:[%s2 + $0x78] sm:$0xff]
    %v567 = vsel %vm249, %v549, 0
    %569 = vmatprep.subr.mxu0 0.0
    %570 = vmatpush1.msra.mxu0 0.0
    %571 = vmatprep.subr.mxu0 0.0
    %572 = vmatpush1.msra.mxu0 0.0
    %573 = vmatprep.subr.mxu0 0.0
    %574 = vmatpush1.msra.mxu0 0.0
    %575 = vmatprep.subr.mxu0 0.0
    %576 = vmatpush1.msra.mxu0 0.0
    %577 = vmatprep.subr.mxu0 0.0
    %578 = vmatpush1.msra.mxu0 0.0
    %579 = vmatprep.subr.mxu0 0.0
    %580 = vmatpush1.msra.mxu0 0.0
    %581 = vmatprep.subr.mxu0 0.0
    %582 = vmatpush1.msra.mxu0 0.0
    %583 = vmatprep.subr.mxu0 0.0
    %584 = vmatpush1.msra.mxu0 0.0
    %585 = vmatprep.subr.mxu0 %v565
    %586 = vmatpush1.msra.mxu0 %v564
    %587 = vmatprep.subr.mxu0 %v563
    %588 = vmatpush1.msra.mxu0 %v562
    %589 = vmatprep.subr.mxu0 %v561
    %590 = vmatpush1.msra.mxu0 %v560
    %591 = vmatprep.subr.mxu0 %v559
    %592 = vmatpush1.msra.mxu0 %v558
    %593 = vmatprep.subr.mxu0 %v557
    %594 = vmatpush1.msra.mxu0 %v556
    %595 = vmatprep.subr.mxu0 %v555
    %596 = vmatpush1.msra.mxu0 %v554
    %597 = vmatprep.subr.mxu0 %v553
    %598 = vmatpush1.msra.mxu0 %v552
    %599 = vmatprep.subr.mxu0 %v551
    %600 = vmatpush1.msra.mxu0 %v550
    %601 = vmatprep.subr.mxu0 0.0
    %602 = vmatpush2.msra.mxu0 0.0
    %603 = vmatprep.subr.mxu0 0.0
    %604 = vmatpush2.msra.mxu0 0.0
    %605 = vmatprep.subr.mxu0 0.0
    %606 = vmatpush2.msra.mxu0 0.0
    %607 = vmatprep.subr.mxu0 0.0
    %608 = vmatpush2.msra.mxu0 0.0
    %609 = vmatprep.subr.mxu0 0.0
    %610 = vmatpush2.msra.mxu0 0.0
    %611 = vmatprep.subr.mxu0 0.0
    %612 = vmatpush2.msra.mxu0 0.0
    %613 = vmatprep.subr.mxu0 0.0
    %614 = vmatpush2.msra.mxu0 0.0
    %615 = vmatprep.subr.mxu0 0.0
    %616 = vmatpush2.msra.mxu0 0.0
    %617 = vmatprep.subr.mxu0 0.0
    %618 = vmatpush2.msra.mxu0 0.0
    %619 = vmatprep.subr.mxu0 0.0
    %620 = vmatpush2.msra.mxu0 0.0
    %621 = vmatprep.subr.mxu0 0.0
    %622 = vmatpush2.msra.mxu0 0.0
    %623 = vmatprep.subr.mxu0 0.0
    %624 = vmatpush2.msra.mxu0 0.0
    %625 = vmatprep.subr.mxu0 0.0
    %626 = vmatpush2.msra.mxu0 0.0
    %627 = vmatprep.subr.mxu0 0.0
    %628 = vmatpush2.msra.mxu0 0.0
    %629 = vmatprep.subr.mxu0 0.0
    %630 = vmatpush2.msra.mxu0 0.0
    %631 = vmatprep.subr.mxu0 0.0
    %632 = vmatpush2.msra.mxu0 0.0
    %633 = vmatprep.mubr.f32.mxu0 0.0
    %634 = vmatmul.mubr.f32.gmra.mxu0 %v567
    %v635 = vpop.f32.mrf.mxu0
    %v636 = vadd.f32 0.0, %v635
    %v637 = vpop.f32.mrf.mxu0
    %v638 = vadd.f32 0.0, %v637
    %639 = vdwg.mxu0
    %v640 = vadd.f32 %v636, %v204
    %v641 = vrot.slane %v223, 2
    %v643 = vadd.f32 %v638, %v641
    %v644 = vxor.u32 %v640, 2147483648
    %v645 = vmul.f32 %v644, 1.442695
    %v646 = vpow.pop %v645
    %v647 = vadd.f32 %v646, 1.0
    %v648 = vrcp.pop %v647
    %v649 = vmul.f32 1.0, %v648
    %v650 = vtanh.pop %v640
    %v651 = vmul.f32 %v649, %v503
    %653 = vrot.lane.b32.xlu0 %v650, 64
    %v654 = vpop.permute.xlu0 %653
    %v656 = vmul.f32 %v649, %v654
    %658 = vrot.lane.b32.xlu0 %v656, 32
    %v659 = vpop.permute.xlu0 %658
    %v661 = vadd.f32 %v651, %v659
    %v662 = vtanh.pop %v661
    %664 = vrot.lane.b32.xlu0 %v662, 64
    %v665 = vpop.permute.xlu0 %664
    %v667 = vmul.f32 %v649, %v665
    %v668 = vxor.u32 %v643, 2147483648
    %v669 = vmul.f32 %v668, 1.442695
    %v670 = vpow.pop %v669
    %v671 = vadd.f32 %v670, 1.0
    %v672 = vrcp.pop %v671
    %v673 = vmul.f32 1.0, %v672
    %v674 = vtanh.pop %v643
    %v675 = vmul.f32 %v673, %v527
    %677 = vrot.lane.b32.xlu0 %v674, 64
    %v678 = vpop.permute.xlu0 %677
    %v680 = vmul.f32 %v673, %v678
    %682 = vrot.lane.b32.xlu0 %v680, 32
    %v683 = vpop.permute.xlu0 %682
    %v685 = vadd.f32 %v675, %v683
    %v686 = vtanh.pop %v685
    %688 = vrot.lane.b32.xlu0 %v686, 64
    %v689 = vpop.permute.xlu0 %688
    %v691 = vmul.f32 %v673, %v689
    %693 = vrot.lane.b32.xlu0 %v667, 32
    %v694 = vpop.permute.xlu0 %693
    %s696 = scalar_lea.vmem [#allocation2], 4
    %697 = vst.msk [vmem:[%s696] sm:$0x3] %vm380, %v694
    %699 = vrot.lane.b32.xlu0 %v691, 32
    %v700 = vpop.permute.xlu0 %699
    %s702 = scalar_lea.vmem [#allocation3], 10
    %703 = vst.msk [vmem:[%s702] sm:$0x3] %vm380, %v700
    %704 = vrot.lane.b32.xlu0 %v691, 64
    %v705 = vpop.permute.xlu0 %704
    %v707 = vsel %vm103, %v694, %v705
    %v708 = vld [vmem:[%s2] sm:$0xff]
    %v709 = vld [vmem:[%s2 + $0x8] sm:$0xff]
    %v710 = vld [vmem:[%s2 + $0x10] sm:$0xff]
    %v711 = vld [vmem:[%s2 + $0x18] sm:$0xff]
    %v712 = vld [vmem:[%s2 + $0x20] sm:$0xff]
    %v713 = vld [vmem:[%s2 + $0x28] sm:$0xff]
    %v714 = vld [vmem:[%s2 + $0x30] sm:$0xff]
    %v715 = vld [vmem:[%s2 + $0x38] sm:$0xff]
    %v716 = vld [vmem:[%s2 + $0x40] sm:$0xff]
    %v717 = vld [vmem:[%s2 + $0x48] sm:$0xff]
    %v718 = vld [vmem:[%s2 + $0x50] sm:$0xff]
    %v719 = vld [vmem:[%s2 + $0x58] sm:$0xff]
    %v720 = vld [vmem:[%s2 + $0x60] sm:$0xff]
    %v721 = vld [vmem:[%s2 + $0x68] sm:$0xff]
    %v722 = vld [vmem:[%s2 + $0x70] sm:$0xff]
    %v723 = vld [vmem:[%s2 + $0x78] sm:$0xff]
    %v725 = vsel %vm249, %v707, 0
    %727 = vmatprep.subr.mxu0 0.0
    %728 = vmatpush1.msra.mxu0 0.0
    %729 = vmatprep.subr.mxu0 0.0
    %730 = vmatpush1.msra.mxu0 0.0
    %731 = vmatprep.subr.mxu0 0.0
    %732 = vmatpush1.msra.mxu0 0.0
    %733 = vmatprep.subr.mxu0 0.0
    %734 = vmatpush1.msra.mxu0 0.0
    %735 = vmatprep.subr.mxu0 0.0
    %736 = vmatpush1.msra.mxu0 0.0
    %737 = vmatprep.subr.mxu0 0.0
    %738 = vmatpush1.msra.mxu0 0.0
    %739 = vmatprep.subr.mxu0 0.0
    %740 = vmatpush1.msra.mxu0 0.0
    %741 = vmatprep.subr.mxu0 0.0
    %742 = vmatpush1.msra.mxu0 0.0
    %743 = vmatprep.subr.mxu0 %v723
    %744 = vmatpush1.msra.mxu0 %v722
    %745 = vmatprep.subr.mxu0 %v721
    %746 = vmatpush1.msra.mxu0 %v720
    %747 = vmatprep.subr.mxu0 %v719
    %748 = vmatpush1.msra.mxu0 %v718
    %749 = vmatprep.subr.mxu0 %v717
    %750 = vmatpush1.msra.mxu0 %v716
    %751 = vmatprep.subr.mxu0 %v715
    %752 = vmatpush1.msra.mxu0 %v714
    %753 = vmatprep.subr.mxu0 %v713
    %754 = vmatpush1.msra.mxu0 %v712
    %755 = vmatprep.subr.mxu0 %v711
    %756 = vmatpush1.msra.mxu0 %v710
    %757 = vmatprep.subr.mxu0 %v709
    %758 = vmatpush1.msra.mxu0 %v708
    %759 = vmatprep.subr.mxu0 0.0
    %760 = vmatpush2.msra.mxu0 0.0
    %761 = vmatprep.subr.mxu0 0.0
    %762 = vmatpush2.msra.mxu0 0.0
    %763 = vmatprep.subr.mxu0 0.0
    %764 = vmatpush2.msra.mxu0 0.0
    %765 = vmatprep.subr.mxu0 0.0
    %766 = vmatpush2.msra.mxu0 0.0
    %767 = vmatprep.subr.mxu0 0.0
    %768 = vmatpush2.msra.mxu0 0.0
    %769 = vmatprep.subr.mxu0 0.0
    %770 = vmatpush2.msra.mxu0 0.0
    %771 = vmatprep.subr.mxu0 0.0
    %772 = vmatpush2.msra.mxu0 0.0
    %773 = vmatprep.subr.mxu0 0.0
    %774 = vmatpush2.msra.mxu0 0.0
    %775 = vmatprep.subr.mxu0 0.0
    %776 = vmatpush2.msra.mxu0 0.0
    %777 = vmatprep.subr.mxu0 0.0
    %778 = vmatpush2.msra.mxu0 0.0
    %779 = vmatprep.subr.mxu0 0.0
    %780 = vmatpush2.msra.mxu0 0.0
    %781 = vmatprep.subr.mxu0 0.0
    %782 = vmatpush2.msra.mxu0 0.0
    %783 = vmatprep.subr.mxu0 0.0
    %784 = vmatpush2.msra.mxu0 0.0
    %785 = vmatprep.subr.mxu0 0.0
    %786 = vmatpush2.msra.mxu0 0.0
    %787 = vmatprep.subr.mxu0 0.0
    %788 = vmatpush2.msra.mxu0 0.0
    %789 = vmatprep.subr.mxu0 0.0
    %790 = vmatpush2.msra.mxu0 0.0
    %791 = vmatprep.mubr.f32.mxu0 0.0
    %792 = vmatmul.mubr.f32.gmra.mxu0 %v725
    %v793 = vpop.f32.mrf.mxu0
    %v794 = vadd.f32 0.0, %v793
    %v795 = vpop.f32.mrf.mxu0
    %v796 = vadd.f32 0.0, %v795
    %797 = vdwg.mxu0
    %v798 = vadd.f32 %v794, %v206
    %v799 = vrot.slane %v215, 2
    %v801 = vadd.f32 %v796, %v799
    %v802 = vxor.u32 %v798, 2147483648
    %v803 = vmul.f32 %v802, 1.442695
    %v804 = vpow.pop %v803
    %v805 = vadd.f32 %v804, 1.0
    %v806 = vrcp.pop %v805
    %v807 = vmul.f32 1.0, %v806
    %v808 = vtanh.pop %v798
    %v809 = vmul.f32 %v807, %v661
    %811 = vrot.lane.b32.xlu0 %v808, 64
    %v812 = vpop.permute.xlu0 %811
    %v814 = vmul.f32 %v807, %v812
    %816 = vrot.lane.b32.xlu0 %v814, 32
    %v817 = vpop.permute.xlu0 %816
    %v819 = vadd.f32 %v809, %v817
    %v820 = vtanh.pop %v819
    %822 = vrot.lane.b32.xlu0 %v820, 64
    %v823 = vpop.permute.xlu0 %822
    %v825 = vmul.f32 %v807, %v823
    %v826 = vxor.u32 %v801, 2147483648
    %v827 = vmul.f32 %v826, 1.442695
    %v828 = vpow.pop %v827
    %v829 = vadd.f32 %v828, 1.0
    %v830 = vrcp.pop %v829
    %v831 = vmul.f32 1.0, %v830
    %v832 = vtanh.pop %v801
    %v833 = vmul.f32 %v831, %v685
    %835 = vrot.lane.b32.xlu0 %v832, 64
    %v836 = vpop.permute.xlu0 %835
    %v838 = vmul.f32 %v831, %v836
    %840 = vrot.lane.b32.xlu0 %v838, 32
    %v841 = vpop.permute.xlu0 %840
    %v843 = vadd.f32 %v833, %v841
    %v844 = vtanh.pop %v843
    %846 = vrot.lane.b32.xlu0 %v844, 64
    %v847 = vpop.permute.xlu0 %846
    %v849 = vmul.f32 %v831, %v847
    %851 = vrot.lane.b32.xlu0 %v825, 32
    %v852 = vpop.permute.xlu0 %851
    %s854 = scalar_lea.vmem [#allocation2], 6
    %855 = vst.msk [vmem:[%s854] sm:$0x3] %vm380, %v852
    %857 = vrot.lane.b32.xlu0 %v849, 32
    %v858 = vpop.permute.xlu0 %857
    %s860 = scalar_lea.vmem [#allocation3], 8
    %861 = vst.msk [vmem:[%s860] sm:$0x3] %vm380, %v858
    %862 = vrot.lane.b32.xlu0 %v849, 64
    %v863 = vpop.permute.xlu0 %862
    %v865 = vsel %vm103, %v852, %v863
    %v866 = vld [vmem:[%s2] sm:$0xff]
    %v867 = vld [vmem:[%s2 + $0x8] sm:$0xff]
    %v868 = vld [vmem:[%s2 + $0x10] sm:$0xff]
    %v869 = vld [vmem:[%s2 + $0x18] sm:$0xff]
    %v870 = vld [vmem:[%s2 + $0x20] sm:$0xff]
    %v871 = vld [vmem:[%s2 + $0x28] sm:$0xff]
    %v872 = vld [vmem:[%s2 + $0x30] sm:$0xff]
    %v873 = vld [vmem:[%s2 + $0x38] sm:$0xff]
    %v874 = vld [vmem:[%s2 + $0x40] sm:$0xff]
    %v875 = vld [vmem:[%s2 + $0x48] sm:$0xff]
    %v876 = vld [vmem:[%s2 + $0x50] sm:$0xff]
    %v877 = vld [vmem:[%s2 + $0x58] sm:$0xff]
    %v878 = vld [vmem:[%s2 + $0x60] sm:$0xff]
    %v879 = vld [vmem:[%s2 + $0x68] sm:$0xff]
    %v880 = vld [vmem:[%s2 + $0x70] sm:$0xff]
    %v881 = vld [vmem:[%s2 + $0x78] sm:$0xff]
    %v883 = vsel %vm249, %v865, 0
    %885 = vmatprep.subr.mxu0 0.0
    %886 = vmatpush1.msra.mxu0 0.0
    %887 = vmatprep.subr.mxu0 0.0
    %888 = vmatpush1.msra.mxu0 0.0
    %889 = vmatprep.subr.mxu0 0.0
    %890 = vmatpush1.msra.mxu0 0.0
    %891 = vmatprep.subr.mxu0 0.0
    %892 = vmatpush1.msra.mxu0 0.0
    %893 = vmatprep.subr.mxu0 0.0
    %894 = vmatpush1.msra.mxu0 0.0
    %895 = vmatprep.subr.mxu0 0.0
    %896 = vmatpush1.msra.mxu0 0.0
    %897 = vmatprep.subr.mxu0 0.0
    %898 = vmatpush1.msra.mxu0 0.0
    %899 = vmatprep.subr.mxu0 0.0
    %900 = vmatpush1.msra.mxu0 0.0
    %901 = vmatprep.subr.mxu0 %v881
    %902 = vmatpush1.msra.mxu0 %v880
    %903 = vmatprep.subr.mxu0 %v879
    %904 = vmatpush1.msra.mxu0 %v878
    %905 = vmatprep.subr.mxu0 %v877
    %906 = vmatpush1.msra.mxu0 %v876
    %907 = vmatprep.subr.mxu0 %v875
    %908 = vmatpush1.msra.mxu0 %v874
    %909 = vmatprep.subr.mxu0 %v873
    %910 = vmatpush1.msra.mxu0 %v872
    %911 = vmatprep.subr.mxu0 %v871
    %912 = vmatpush1.msra.mxu0 %v870
    %913 = vmatprep.subr.mxu0 %v869
    %914 = vmatpush1.msra.mxu0 %v868
    %915 = vmatprep.subr.mxu0 %v867
    %916 = vmatpush1.msra.mxu0 %v866
    %917 = vmatprep.subr.mxu0 0.0
    %918 = vmatpush2.msra.mxu0 0.0
    %919 = vmatprep.subr.mxu0 0.0
    %920 = vmatpush2.msra.mxu0 0.0
    %921 = vmatprep.subr.mxu0 0.0
    %922 = vmatpush2.msra.mxu0 0.0
    %923 = vmatprep.subr.mxu0 0.0
    %924 = vmatpush2.msra.mxu0 0.0
    %925 = vmatprep.subr.mxu0 0.0
    %926 = vmatpush2.msra.mxu0 0.0
    %927 = vmatprep.subr.mxu0 0.0
    %928 = vmatpush2.msra.mxu0 0.0
    %929 = vmatprep.subr.mxu0 0.0
    %930 = vmatpush2.msra.mxu0 0.0
    %931 = vmatprep.subr.mxu0 0.0
    %932 = vmatpush2.msra.mxu0 0.0
    %933 = vmatprep.subr.mxu0 0.0
    %934 = vmatpush2.msra.mxu0 0.0
    %935 = vmatprep.subr.mxu0 0.0
    %936 = vmatpush2.msra.mxu0 0.0
    %937 = vmatprep.subr.mxu0 0.0
    %938 = vmatpush2.msra.mxu0 0.0
    %939 = vmatprep.subr.mxu0 0.0
    %940 = vmatpush2.msra.mxu0 0.0
    %941 = vmatprep.subr.mxu0 0.0
    %942 = vmatpush2.msra.mxu0 0.0
    %943 = vmatprep.subr.mxu0 0.0
    %944 = vmatpush2.msra.mxu0 0.0
    %945 = vmatprep.subr.mxu0 0.0
    %946 = vmatpush2.msra.mxu0 0.0
    %947 = vmatprep.subr.mxu0 0.0
    %948 = vmatpush2.msra.mxu0 0.0
    %949 = vmatprep.mubr.f32.mxu0 0.0
    %950 = vmatmul.mubr.f32.gmra.mxu0 %v883
    %v951 = vpop.f32.mrf.mxu0
    %v952 = vadd.f32 0.0, %v951
    %v953 = vpop.f32.mrf.mxu0
    %v954 = vadd.f32 0.0, %v953
    %955 = vdwg.mxu0
    %v956 = vadd.f32 %v952, %v215
    %v957 = vrot.slane %v206, 2
    %v959 = vadd.f32 %v954, %v957
    %v960 = vxor.u32 %v956, 2147483648
    %v961 = vmul.f32 %v960, 1.442695
    %v962 = vpow.pop %v961
    %v963 = vadd.f32 %v962, 1.0
    %v964 = vrcp.pop %v963
    %v965 = vmul.f32 1.0, %v964
    %v966 = vtanh.pop %v956
    %v967 = vmul.f32 %v965, %v819
    %969 = vrot.lane.b32.xlu0 %v966, 64
    %v970 = vpop.permute.xlu0 %969
    %v972 = vmul.f32 %v965, %v970
    %974 = vrot.lane.b32.xlu0 %v972, 32
    %v975 = vpop.permute.xlu0 %974
    %v977 = vadd.f32 %v967, %v975
    %v978 = vtanh.pop %v977
    %980 = vrot.lane.b32.xlu0 %v978, 64
    %v981 = vpop.permute.xlu0 %980
    %v983 = vmul.f32 %v965, %v981
    %v984 = vxor.u32 %v959, 2147483648
    %v985 = vmul.f32 %v984, 1.442695
    %v986 = vpow.pop %v985
    %v987 = vadd.f32 %v986, 1.0
    %v988 = vrcp.pop %v987
    %v989 = vmul.f32 1.0, %v988
    %v990 = vtanh.pop %v959
    %v991 = vmul.f32 %v989, %v843
    %993 = vrot.lane.b32.xlu0 %v990, 64
    %v994 = vpop.permute.xlu0 %993
    %v996 = vmul.f32 %v989, %v994
    %998 = vrot.lane.b32.xlu0 %v996, 32
    %v999 = vpop.permute.xlu0 %998
    %v1001 = vadd.f32 %v991, %v999
    %v1002 = vtanh.pop %v1001
    %1004 = vrot.lane.b32.xlu0 %v1002, 64
    %v1005 = vpop.permute.xlu0 %1004
    %v1007 = vmul.f32 %v989, %v1005
    %1009 = vrot.lane.b32.xlu0 %v983, 32
    %v1010 = vpop.permute.xlu0 %1009
    %s1012 = scalar_lea.vmem [#allocation2], 8
    %1013 = vst.msk [vmem:[%s1012] sm:$0x3] %vm380, %v1010
    %1015 = vrot.lane.b32.xlu0 %v1007, 32
    %v1016 = vpop.permute.xlu0 %1015
    %s1018 = scalar_lea.vmem [#allocation3], 6
    %1019 = vst.msk [vmem:[%s1018] sm:$0x3] %vm380, %v1016
    %1020 = vrot.lane.b32.xlu0 %v1007, 64
    %v1021 = vpop.permute.xlu0 %1020
    %v1023 = vsel %vm103, %v1010, %v1021
    %v1024 = vld [vmem:[%s2] sm:$0xff]
    %v1025 = vld [vmem:[%s2 + $0x8] sm:$0xff]
    %v1026 = vld [vmem:[%s2 + $0x10] sm:$0xff]
    %v1027 = vld [vmem:[%s2 + $0x18] sm:$0xff]
    %v1028 = vld [vmem:[%s2 + $0x20] sm:$0xff]
    %v1029 = vld [vmem:[%s2 + $0x28] sm:$0xff]
    %v1030 = vld [vmem:[%s2 + $0x30] sm:$0xff]
    %v1031 = vld [vmem:[%s2 + $0x38] sm:$0xff]
    %v1032 = vld [vmem:[%s2 + $0x40] sm:$0xff]
    %v1033 = vld [vmem:[%s2 + $0x48] sm:$0xff]
    %v1034 = vld [vmem:[%s2 + $0x50] sm:$0xff]
    %v1035 = vld [vmem:[%s2 + $0x58] sm:$0xff]
    %v1036 = vld [vmem:[%s2 + $0x60] sm:$0xff]
    %v1037 = vld [vmem:[%s2 + $0x68] sm:$0xff]
    %v1038 = vld [vmem:[%s2 + $0x70] sm:$0xff]
    %v1039 = vld [vmem:[%s2 + $0x78] sm:$0xff]
    %v1041 = vsel %vm249, %v1023, 0
    %1043 = vmatprep.subr.mxu0 0.0
    %1044 = vmatpush1.msra.mxu0 0.0
    %1045 = vmatprep.subr.mxu0 0.0
    %1046 = vmatpush1.msra.mxu0 0.0
    %1047 = vmatprep.subr.mxu0 0.0
    %1048 = vmatpush1.msra.mxu0 0.0
    %1049 = vmatprep.subr.mxu0 0.0
    %1050 = vmatpush1.msra.mxu0 0.0
    %1051 = vmatprep.subr.mxu0 0.0
    %1052 = vmatpush1.msra.mxu0 0.0
    %1053 = vmatprep.subr.mxu0 0.0
    %1054 = vmatpush1.msra.mxu0 0.0
    %1055 = vmatprep.subr.mxu0 0.0
    %1056 = vmatpush1.msra.mxu0 0.0
    %1057 = vmatprep.subr.mxu0 0.0
    %1058 = vmatpush1.msra.mxu0 0.0
    %1059 = vmatprep.subr.mxu0 %v1039
    %1060 = vmatpush1.msra.mxu0 %v1038
    %1061 = vmatprep.subr.mxu0 %v1037
    %1062 = vmatpush1.msra.mxu0 %v1036
    %1063 = vmatprep.subr.mxu0 %v1035
    %1064 = vmatpush1.msra.mxu0 %v1034
    %1065 = vmatprep.subr.mxu0 %v1033
    %1066 = vmatpush1.msra.mxu0 %v1032
    %1067 = vmatprep.subr.mxu0 %v1031
    %1068 = vmatpush1.msra.mxu0 %v1030
    %1069 = vmatprep.subr.mxu0 %v1029
    %1070 = vmatpush1.msra.mxu0 %v1028
    %1071 = vmatprep.subr.mxu0 %v1027
    %1072 = vmatpush1.msra.mxu0 %v1026
    %1073 = vmatprep.subr.mxu0 %v1025
    %1074 = vmatpush1.msra.mxu0 %v1024
    %1075 = vmatprep.subr.mxu0 0.0
    %1076 = vmatpush2.msra.mxu0 0.0
    %1077 = vmatprep.subr.mxu0 0.0
    %1078 = vmatpush2.msra.mxu0 0.0
    %1079 = vmatprep.subr.mxu0 0.0
    %1080 = vmatpush2.msra.mxu0 0.0
    %1081 = vmatprep.subr.mxu0 0.0
    %1082 = vmatpush2.msra.mxu0 0.0
    %1083 = vmatprep.subr.mxu0 0.0
    %1084 = vmatpush2.msra.mxu0 0.0
    %1085 = vmatprep.subr.mxu0 0.0
    %1086 = vmatpush2.msra.mxu0 0.0
    %1087 = vmatprep.subr.mxu0 0.0
    %1088 = vmatpush2.msra.mxu0 0.0
    %1089 = vmatprep.subr.mxu0 0.0
    %1090 = vmatpush2.msra.mxu0 0.0
    %1091 = vmatprep.subr.mxu0 0.0
    %1092 = vmatpush2.msra.mxu0 0.0
    %1093 = vmatprep.subr.mxu0 0.0
    %1094 = vmatpush2.msra.mxu0 0.0
    %1095 = vmatprep.subr.mxu0 0.0
    %1096 = vmatpush2.msra.mxu0 0.0
    %1097 = vmatprep.subr.mxu0 0.0
    %1098 = vmatpush2.msra.mxu0 0.0
    %1099 = vmatprep.subr.mxu0 0.0
    %1100 = vmatpush2.msra.mxu0 0.0
    %1101 = vmatprep.subr.mxu0 0.0
    %1102 = vmatpush2.msra.mxu0 0.0
    %1103 = vmatprep.subr.mxu0 0.0
    %1104 = vmatpush2.msra.mxu0 0.0
    %1105 = vmatprep.subr.mxu0 0.0
    %1106 = vmatpush2.msra.mxu0 0.0
    %1107 = vmatprep.mubr.f32.mxu0 0.0
    %1108 = vmatmul.mubr.f32.gmra.mxu0 %v1041
    %v1109 = vpop.f32.mrf.mxu0
    %v1110 = vadd.f32 0.0, %v1109
    %v1111 = vpop.f32.mrf.mxu0
    %v1112 = vadd.f32 0.0, %v1111
    %1113 = vdwg.mxu0
    %v1114 = vadd.f32 %v1110, %v223
    %v1115 = vrot.slane %v204, 2
    %v1117 = vadd.f32 %v1112, %v1115
    %v1118 = vxor.u32 %v1114, 2147483648
    %v1119 = vmul.f32 %v1118, 1.442695
    %v1120 = vpow.pop %v1119
    %v1121 = vadd.f32 %v1120, 1.0
    %v1122 = vrcp.pop %v1121
    %v1123 = vmul.f32 1.0, %v1122
    %v1124 = vtanh.pop %v1114
    %v1125 = vmul.f32 %v1123, %v977
    %1127 = vrot.lane.b32.xlu0 %v1124, 64
    %v1128 = vpop.permute.xlu0 %1127
    %v1130 = vmul.f32 %v1123, %v1128
    %1132 = vrot.lane.b32.xlu0 %v1130, 32
    %v1133 = vpop.permute.xlu0 %1132
    %v1135 = vadd.f32 %v1125, %v1133
    %v1136 = vtanh.pop %v1135
    %1138 = vrot.lane.b32.xlu0 %v1136, 64
    %v1139 = vpop.permute.xlu0 %1138
    %v1141 = vmul.f32 %v1123, %v1139
    %v1142 = vxor.u32 %v1117, 2147483648
    %v1143 = vmul.f32 %v1142, 1.442695
    %v1144 = vpow.pop %v1143
    %v1145 = vadd.f32 %v1144, 1.0
    %v1146 = vrcp.pop %v1145
    %v1147 = vmul.f32 1.0, %v1146
    %v1148 = vtanh.pop %v1117
    %v1149 = vmul.f32 %v1147, %v1001
    %1151 = vrot.lane.b32.xlu0 %v1148, 64
    %v1152 = vpop.permute.xlu0 %1151
    %v1154 = vmul.f32 %v1147, %v1152
    %1156 = vrot.lane.b32.xlu0 %v1154, 32
    %v1157 = vpop.permute.xlu0 %1156
    %v1159 = vadd.f32 %v1149, %v1157
    %v1160 = vtanh.pop %v1159
    %1162 = vrot.lane.b32.xlu0 %v1160, 64
    %v1163 = vpop.permute.xlu0 %1162
    %v1165 = vmul.f32 %v1147, %v1163
    %1167 = vrot.lane.b32.xlu0 %v1141, 32
    %v1168 = vpop.permute.xlu0 %1167
    %s1170 = scalar_lea.vmem [#allocation2], 10
    %1171 = vst.msk [vmem:[%s1170] sm:$0x3] %vm380, %v1168
    %1173 = vrot.lane.b32.xlu0 %v1165, 32
    %v1174 = vpop.permute.xlu0 %1173
    %s1176 = scalar_lea.vmem [#allocation3], 4
    %1177 = vst.msk [vmem:[%s1176] sm:$0x3] %vm380, %v1174
    %1178 = vrot.lane.b32.xlu0 %v1165, 64
    %v1179 = vpop.permute.xlu0 %1178
    %v1181 = vsel %vm103, %v1168, %v1179
    %v1182 = vld [vmem:[%s2] sm:$0xff]
    %v1183 = vld [vmem:[%s2 + $0x8] sm:$0xff]
    %v1184 = vld [vmem:[%s2 + $0x10] sm:$0xff]
    %v1185 = vld [vmem:[%s2 + $0x18] sm:$0xff]
    %v1186 = vld [vmem:[%s2 + $0x20] sm:$0xff]
    %v1187 = vld [vmem:[%s2 + $0x28] sm:$0xff]
    %v1188 = vld [vmem:[%s2 + $0x30] sm:$0xff]
    %v1189 = vld [vmem:[%s2 + $0x38] sm:$0xff]
    %v1190 = vld [vmem:[%s2 + $0x40] sm:$0xff]
    %v1191 = vld [vmem:[%s2 + $0x48] sm:$0xff]
    %v1192 = vld [vmem:[%s2 + $0x50] sm:$0xff]
    %v1193 = vld [vmem:[%s2 + $0x58] sm:$0xff]
    %v1194 = vld [vmem:[%s2 + $0x60] sm:$0xff]
    %v1195 = vld [vmem:[%s2 + $0x68] sm:$0xff]
    %v1196 = vld [vmem:[%s2 + $0x70] sm:$0xff]
    %v1197 = vld [vmem:[%s2 + $0x78] sm:$0xff]
    %v1199 = vsel %vm249, %v1181, 0
    %1201 = vmatprep.subr.mxu0 0.0
    %1202 = vmatpush1.msra.mxu0 0.0
    %1203 = vmatprep.subr.mxu0 0.0
    %1204 = vmatpush1.msra.mxu0 0.0
    %1205 = vmatprep.subr.mxu0 0.0
    %1206 = vmatpush1.msra.mxu0 0.0
    %1207 = vmatprep.subr.mxu0 0.0
    %1208 = vmatpush1.msra.mxu0 0.0
    %1209 = vmatprep.subr.mxu0 0.0
    %1210 = vmatpush1.msra.mxu0 0.0
    %1211 = vmatprep.subr.mxu0 0.0
    %1212 = vmatpush1.msra.mxu0 0.0
    %1213 = vmatprep.subr.mxu0 0.0
    %1214 = vmatpush1.msra.mxu0 0.0
    %1215 = vmatprep.subr.mxu0 0.0
    %1216 = vmatpush1.msra.mxu0 0.0
    %1217 = vmatprep.subr.mxu0 %v1197
    %1218 = vmatpush1.msra.mxu0 %v1196
    %1219 = vmatprep.subr.mxu0 %v1195
    %1220 = vmatpush1.msra.mxu0 %v1194
    %1221 = vmatprep.subr.mxu0 %v1193
    %1222 = vmatpush1.msra.mxu0 %v1192
    %1223 = vmatprep.subr.mxu0 %v1191
    %1224 = vmatpush1.msra.mxu0 %v1190
    %1225 = vmatprep.subr.mxu0 %v1189
    %1226 = vmatpush1.msra.mxu0 %v1188
    %1227 = vmatprep.subr.mxu0 %v1187
    %1228 = vmatpush1.msra.mxu0 %v1186
    %1229 = vmatprep.subr.mxu0 %v1185
    %1230 = vmatpush1.msra.mxu0 %v1184
    %1231 = vmatprep.subr.mxu0 %v1183
    %1232 = vmatpush1.msra.mxu0 %v1182
    %1233 = vmatprep.subr.mxu0 0.0
    %1234 = vmatpush2.msra.mxu0 0.0
    %1235 = vmatprep.subr.mxu0 0.0
    %1236 = vmatpush2.msra.mxu0 0.0
    %1237 = vmatprep.subr.mxu0 0.0
    %1238 = vmatpush2.msra.mxu0 0.0
    %1239 = vmatprep.subr.mxu0 0.0
    %1240 = vmatpush2.msra.mxu0 0.0
    %1241 = vmatprep.subr.mxu0 0.0
    %1242 = vmatpush2.msra.mxu0 0.0
    %1243 = vmatprep.subr.mxu0 0.0
    %1244 = vmatpush2.msra.mxu0 0.0
    %1245 = vmatprep.subr.mxu0 0.0
    %1246 = vmatpush2.msra.mxu0 0.0
    %1247 = vmatprep.subr.mxu0 0.0
    %1248 = vmatpush2.msra.mxu0 0.0
    %1249 = vmatprep.subr.mxu0 0.0
    %1250 = vmatpush2.msra.mxu0 0.0
    %1251 = vmatprep.subr.mxu0 0.0
    %1252 = vmatpush2.msra.mxu0 0.0
    %1253 = vmatprep.subr.mxu0 0.0
    %1254 = vmatpush2.msra.mxu0 0.0
    %1255 = vmatprep.subr.mxu0 0.0
    %1256 = vmatpush2.msra.mxu0 0.0
    %1257 = vmatprep.subr.mxu0 0.0
    %1258 = vmatpush2.msra.mxu0 0.0
    %1259 = vmatprep.subr.mxu0 0.0
    %1260 = vmatpush2.msra.mxu0 0.0
    %1261 = vmatprep.subr.mxu0 0.0
    %1262 = vmatpush2.msra.mxu0 0.0
    %1263 = vmatprep.subr.mxu0 0.0
    %1264 = vmatpush2.msra.mxu0 0.0
    %1265 = vmatprep.mubr.f32.mxu0 0.0
    %1266 = vmatmul.mubr.f32.gmra.mxu0 %v1199
    %v1267 = vpop.f32.mrf.mxu0
    %v1268 = vadd.f32 0.0, %v1267
    %v1269 = vpop.f32.mrf.mxu0
    %v1270 = vadd.f32 0.0, %v1269
    %1271 = vdwg.mxu0
    %v1272 = vadd.f32 %v1268, %v222
    %v1273 = vrot.slane %v205, 2
    %v1275 = vadd.f32 %v1270, %v1273
    %v1276 = vxor.u32 %v1272, 2147483648
    %v1277 = vmul.f32 %v1276, 1.442695
    %v1278 = vpow.pop %v1277
    %v1279 = vadd.f32 %v1278, 1.0
    %v1280 = vrcp.pop %v1279
    %v1281 = vmul.f32 1.0, %v1280
    %v1282 = vtanh.pop %v1272
    %v1283 = vmul.f32 %v1281, %v1135
    %1285 = vrot.lane.b32.xlu0 %v1282, 64
    %v1286 = vpop.permute.xlu0 %1285
    %v1288 = vmul.f32 %v1281, %v1286
    %1290 = vrot.lane.b32.xlu0 %v1288, 32
    %v1291 = vpop.permute.xlu0 %1290
    %v1293 = vadd.f32 %v1283, %v1291
    %v1294 = vtanh.pop %v1293
    %1296 = vrot.lane.b32.xlu0 %v1294, 64
    %v1297 = vpop.permute.xlu0 %1296
    %v1299 = vmul.f32 %v1281, %v1297
    %v1300 = vxor.u32 %v1275, 2147483648
    %v1301 = vmul.f32 %v1300, 1.442695
    %v1302 = vpow.pop %v1301
    %v1303 = vadd.f32 %v1302, 1.0
    %v1304 = vrcp.pop %v1303
    %v1305 = vmul.f32 1.0, %v1304
    %v1306 = vtanh.pop %v1275
    %v1307 = vmul.f32 %v1305, %v1159
    %1309 = vrot.lane.b32.xlu0 %v1306, 64
    %v1310 = vpop.permute.xlu0 %1309
    %v1312 = vmul.f32 %v1305, %v1310
    %1314 = vrot.lane.b32.xlu0 %v1312, 32
    %v1315 = vpop.permute.xlu0 %1314
    %v1317 = vadd.f32 %v1307, %v1315
    %v1318 = vtanh.pop %v1317
    %1320 = vrot.lane.b32.xlu0 %v1318, 64
    %v1321 = vpop.permute.xlu0 %1320
    %v1323 = vmul.f32 %v1305, %v1321
    %1325 = vrot.lane.b32.xlu0 %v1299, 32
    %v1326 = vpop.permute.xlu0 %1325
    %s1328 = scalar_lea.vmem [#allocation2], 12
    %1329 = vst.msk [vmem:[%s1328] sm:$0x3] %vm380, %v1326
    %1331 = vrot.lane.b32.xlu0 %v1323, 32
    %v1332 = vpop.permute.xlu0 %1331
    %s1334 = scalar_lea.vmem [#allocation3], 2
    %1335 = vst.msk [vmem:[%s1334] sm:$0x3] %vm380, %v1332
    %1336 = vrot.lane.b32.xlu0 %v1323, 64
    %v1337 = vpop.permute.xlu0 %1336
    %v1339 = vsel %vm103, %v1326, %v1337
    %v1340 = vld [vmem:[%s2] sm:$0xff]
    %v1341 = vld [vmem:[%s2 + $0x8] sm:$0xff]
    %v1342 = vld [vmem:[%s2 + $0x10] sm:$0xff]
    %v1343 = vld [vmem:[%s2 + $0x18] sm:$0xff]
    %v1344 = vld [vmem:[%s2 + $0x20] sm:$0xff]
    %v1345 = vld [vmem:[%s2 + $0x28] sm:$0xff]
    %v1346 = vld [vmem:[%s2 + $0x30] sm:$0xff]
    %v1347 = vld [vmem:[%s2 + $0x38] sm:$0xff]
    %v1348 = vld [vmem:[%s2 + $0x40] sm:$0xff]
    %v1349 = vld [vmem:[%s2 + $0x48] sm:$0xff]
    %v1350 = vld [vmem:[%s2 + $0x50] sm:$0xff]
    %v1351 = vld [vmem:[%s2 + $0x58] sm:$0xff]
    %v1352 = vld [vmem:[%s2 + $0x60] sm:$0xff]
    %v1353 = vld [vmem:[%s2 + $0x68] sm:$0xff]
    %v1354 = vld [vmem:[%s2 + $0x70] sm:$0xff]
    %v1355 = vld [vmem:[%s2 + $0x78] sm:$0xff]
    %v1357 = vsel %vm249, %v1339, 0
    %1359 = vmatprep.subr.mxu0 0.0
    %1360 = vmatpush1.msra.mxu0 0.0
    %1361 = vmatprep.subr.mxu0 0.0
    %1362 = vmatpush1.msra.mxu0 0.0
    %1363 = vmatprep.subr.mxu0 0.0
    %1364 = vmatpush1.msra.mxu0 0.0
    %1365 = vmatprep.subr.mxu0 0.0
    %1366 = vmatpush1.msra.mxu0 0.0
    %1367 = vmatprep.subr.mxu0 0.0
    %1368 = vmatpush1.msra.mxu0 0.0
    %1369 = vmatprep.subr.mxu0 0.0
    %1370 = vmatpush1.msra.mxu0 0.0
    %1371 = vmatprep.subr.mxu0 0.0
    %1372 = vmatpush1.msra.mxu0 0.0
    %1373 = vmatprep.subr.mxu0 0.0
    %1374 = vmatpush1.msra.mxu0 0.0
    %1375 = vmatprep.subr.mxu0 %v1355
    %1376 = vmatpush1.msra.mxu0 %v1354
    %1377 = vmatprep.subr.mxu0 %v1353
    %1378 = vmatpush1.msra.mxu0 %v1352
    %1379 = vmatprep.subr.mxu0 %v1351
    %1380 = vmatpush1.msra.mxu0 %v1350
    %1381 = vmatprep.subr.mxu0 %v1349
    %1382 = vmatpush1.msra.mxu0 %v1348
    %1383 = vmatprep.subr.mxu0 %v1347
    %1384 = vmatpush1.msra.mxu0 %v1346
    %1385 = vmatprep.subr.mxu0 %v1345
    %1386 = vmatpush1.msra.mxu0 %v1344
    %1387 = vmatprep.subr.mxu0 %v1343
    %1388 = vmatpush1.msra.mxu0 %v1342
    %1389 = vmatprep.subr.mxu0 %v1341
    %1390 = vmatpush1.msra.mxu0 %v1340
    %1391 = vmatprep.subr.mxu0 0.0
    %1392 = vmatpush2.msra.mxu0 0.0
    %1393 = vmatprep.subr.mxu0 0.0
    %1394 = vmatpush2.msra.mxu0 0.0
    %1395 = vmatprep.subr.mxu0 0.0
    %1396 = vmatpush2.msra.mxu0 0.0
    %1397 = vmatprep.subr.mxu0 0.0
    %1398 = vmatpush2.msra.mxu0 0.0
    %1399 = vmatprep.subr.mxu0 0.0
    %1400 = vmatpush2.msra.mxu0 0.0
    %1401 = vmatprep.subr.mxu0 0.0
    %1402 = vmatpush2.msra.mxu0 0.0
    %1403 = vmatprep.subr.mxu0 0.0
    %1404 = vmatpush2.msra.mxu0 0.0
    %1405 = vmatprep.subr.mxu0 0.0
    %1406 = vmatpush2.msra.mxu0 0.0
    %1407 = vmatprep.subr.mxu0 0.0
    %1408 = vmatpush2.msra.mxu0 0.0
    %1409 = vmatprep.subr.mxu0 0.0
    %1410 = vmatpush2.msra.mxu0 0.0
    %1411 = vmatprep.subr.mxu0 0.0
    %1412 = vmatpush2.msra.mxu0 0.0
    %1413 = vmatprep.subr.mxu0 0.0
    %1414 = vmatpush2.msra.mxu0 0.0
    %1415 = vmatprep.subr.mxu0 0.0
    %1416 = vmatpush2.msra.mxu0 0.0
    %1417 = vmatprep.subr.mxu0 0.0
    %1418 = vmatpush2.msra.mxu0 0.0
    %1419 = vmatprep.subr.mxu0 0.0
    %1420 = vmatpush2.msra.mxu0 0.0
    %1421 = vmatprep.subr.mxu0 0.0
    %1422 = vmatpush2.msra.mxu0 0.0
    %1423 = vmatprep.mubr.f32.mxu0 0.0
    %1424 = vmatmul.mubr.f32.gmra.mxu0 %v1357
    %v1425 = vpop.f32.mrf.mxu0
    %v1426 = vadd.f32 0.0, %v1425
    %v1427 = vpop.f32.mrf.mxu0
    %v1428 = vadd.f32 0.0, %v1427
    %1429 = vdwg.mxu0
    %v1430 = vadd.f32 %v1426, %v224
    %v1431 = vrot.slane %v197, 2
    %v1433 = vadd.f32 %v1428, %v1431
    %v1434 = vxor.u32 %v1430, 2147483648
    %v1435 = vmul.f32 %v1434, 1.442695
    %v1436 = vpow.pop %v1435
    %v1437 = vadd.f32 %v1436, 1.0
    %v1438 = vrcp.pop %v1437
    %v1439 = vmul.f32 1.0, %v1438
    %v1440 = vtanh.pop %v1430
    %v1441 = vmul.f32 %v1439, %v1293
    %1443 = vrot.lane.b32.xlu0 %v1440, 64
    %v1444 = vpop.permute.xlu0 %1443
    %v1446 = vmul.f32 %v1439, %v1444
    %1448 = vrot.lane.b32.xlu0 %v1446, 32
    %v1449 = vpop.permute.xlu0 %1448
    %v1451 = vadd.f32 %v1441, %v1449
    %v1452 = vtanh.pop %v1451
    %1454 = vrot.lane.b32.xlu0 %v1452, 64
    %v1455 = vpop.permute.xlu0 %1454
    %v1457 = vmul.f32 %v1439, %v1455
    %v1458 = vxor.u32 %v1433, 2147483648
    %v1459 = vmul.f32 %v1458, 1.442695
    %v1460 = vpow.pop %v1459
    %v1461 = vadd.f32 %v1460, 1.0
    %v1462 = vrcp.pop %v1461
    %v1463 = vmul.f32 1.0, %v1462
    %v1464 = vtanh.pop %v1433
    %v1465 = vmul.f32 %v1463, %v1317
    %1467 = vrot.lane.b32.xlu0 %v1464, 64
    %v1468 = vpop.permute.xlu0 %1467
    %v1470 = vmul.f32 %v1463, %v1468
    %1472 = vrot.lane.b32.xlu0 %v1470, 32
    %v1473 = vpop.permute.xlu0 %1472
    %v1475 = vadd.f32 %v1465, %v1473
    %v1476 = vtanh.pop %v1475
    %1478 = vrot.lane.b32.xlu0 %v1476, 64
    %v1479 = vpop.permute.xlu0 %1478
    %v1481 = vmul.f32 %v1463, %v1479
    %1483 = vrot.lane.b32.xlu0 %v1457, 32
    %v1484 = vpop.permute.xlu0 %1483
    %s1486 = scalar_lea.vmem [#allocation2], 14
    %1487 = vst.msk [vmem:[%s1486] sm:$0x3] %vm380, %v1484
    %1489 = vrot.lane.b32.xlu0 %v1481, 32
    %v1490 = vpop.permute.xlu0 %1489
    %1492 = vst.msk [vmem:[#allocation3] sm:$0x3] %vm380, %v1490
    %v1493 = vld [vmem:[#allocation2] sm:$0x3]
    %v1494 = vld [vmem:[#allocation2 + $0x2] sm:$0x3]
    %v1495 = vld [vmem:[#allocation2 + $0x4] sm:$0x3]
    %v1496 = vld [vmem:[#allocation2 + $0x6] sm:$0x3]
    %v1497 = vld [vmem:[#allocation2 + $0x8] sm:$0x3]
    %v1498 = vld [vmem:[#allocation2 + $0xa] sm:$0x3]
    %v1499 = vld [vmem:[#allocation2 + $0xc] sm:$0x3]
    %v1500 = vld [vmem:[#allocation2 + $0xe] sm:$0x3]
    %v1501 = vld [vmem:[#allocation3] sm:$0x3]
    %v1502 = vld [vmem:[#allocation3 + $0x2] sm:$0x3]
    %v1503 = vld [vmem:[#allocation3 + $0x4] sm:$0x3]
    %v1504 = vld [vmem:[#allocation3 + $0x6] sm:$0x3]
    %v1505 = vld [vmem:[#allocation3 + $0x8] sm:$0x3]
    %v1506 = vld [vmem:[#allocation3 + $0xa] sm:$0x3]
    %v1507 = vld [vmem:[#allocation3 + $0xc] sm:$0x3]
    %v1508 = vld [vmem:[#allocation3 + $0xe] sm:$0x3]
    %v1509 = vld [vmem:[%s4] sm:$0xff]
    %v1510 = vld [vmem:[%s4 + $0x8] sm:$0xff]
    %v1511 = vld [vmem:[%s4 + $0x10] sm:$0xff]
    %v1512 = vld [vmem:[%s4 + $0x18] sm:$0xff]
    %v1513 = vld [vmem:[%s4 + $0x20] sm:$0xff]
    %v1514 = vld [vmem:[%s4 + $0x28] sm:$0xff]
    %v1515 = vld [vmem:[%s4 + $0x30] sm:$0xff]
    %v1516 = vld [vmem:[%s4 + $0x38] sm:$0xff]
    %v1517 = vld [vmem:[%s4 + $0x40] sm:$0xff]
    %v1518 = vld [vmem:[%s4 + $0x48] sm:$0xff]
    %v1519 = vld [vmem:[%s4 + $0x50] sm:$0xff]
    %v1520 = vld [vmem:[%s4 + $0x58] sm:$0xff]
    %v1521 = vld [vmem:[%s4 + $0x60] sm:$0xff]
    %v1522 = vld [vmem:[%s4 + $0x68] sm:$0xff]
    %v1523 = vld [vmem:[%s4 + $0x70] sm:$0xff]
    %v1524 = vld [vmem:[%s4 + $0x78] sm:$0xff]
    %v1533 = vcombine.low %v1501, %v1502
    %v1534 = vcombine.low %v1503, %v1504
    %v1536 = vunpack.c.l.s4 1983009808
    %v1537 = vunpack.c.0.s8 %v1536
    %v1538 = vlaneseq
    %v1539 = vshrl.u32 %v1538, 7
    %v1540 = vsub.s32 %v1537, %v1539
    %v1541 = vrot.slane %v1533, %v1540
    %v1543 = vunpack.c.l.s4 1983009808
    %v1544 = vunpack.c.0.s8 %v1543
    %v1545 = vlaneseq
    %v1546 = vshrl.u32 %v1545, 7
    %v1547 = vsub.s32 %v1544, %v1546
    %v1548 = vrot.slane %v1534, %v1547
    %v1549 = vcombine.low %v1541, %v1548
    %v1550 = vcombine.low %v1505, %v1506
    %v1551 = vcombine.low %v1507, %v1508
    %v1553 = vunpack.c.l.s4 1983009808
    %v1554 = vunpack.c.0.s8 %v1553
    %v1555 = vlaneseq
    %v1556 = vshrl.u32 %v1555, 7
    %v1557 = vsub.s32 %v1554, %v1556
    %v1558 = vrot.slane %v1550, %v1557
    %v1560 = vunpack.c.l.s4 1983009808
    %v1561 = vunpack.c.0.s8 %v1560
    %v1562 = vlaneseq
    %v1563 = vshrl.u32 %v1562, 7
    %v1564 = vsub.s32 %v1561, %v1563
    %v1565 = vrot.slane %v1551, %v1564
    %v1566 = vcombine.low %v1558, %v1565
    %v1567 = vsel %vm103, %v1549, 0
    %v1569 = vsel %vm103, %v1566, 0
    %1571 = vmatprep.subr.mxu0 0.0
    %1572 = vmatpush1.msra.mxu0 0.0
    %1573 = vmatprep.subr.mxu0 0.0
    %1574 = vmatpush1.msra.mxu0 0.0
    %1575 = vmatprep.subr.mxu0 0.0
    %1576 = vmatpush1.msra.mxu0 0.0
    %1577 = vmatprep.subr.mxu0 0.0
    %1578 = vmatpush1.msra.mxu0 0.0
    %1579 = vmatprep.subr.mxu0 0.0
    %1580 = vmatpush1.msra.mxu0 0.0
    %1581 = vmatprep.subr.mxu0 0.0
    %1582 = vmatpush1.msra.mxu0 0.0
    %1583 = vmatprep.subr.mxu0 0.0
    %1584 = vmatpush1.msra.mxu0 0.0
    %1585 = vmatprep.subr.mxu0 0.0
    %1586 = vmatpush1.msra.mxu0 0.0
    %1587 = vmatprep.subr.mxu0 0.0
    %1588 = vmatpush1.msra.mxu0 0.0
    %1589 = vmatprep.subr.mxu0 0.0
    %1590 = vmatpush1.msra.mxu0 0.0
    %1591 = vmatprep.subr.mxu0 0.0
    %1592 = vmatpush1.msra.mxu0 0.0
    %1593 = vmatprep.subr.mxu0 0.0
    %1594 = vmatpush1.msra.mxu0 0.0
    %1595 = vmatprep.subr.mxu0 %v1524
    %1596 = vmatpush1.msra.mxu0 %v1523
    %1597 = vmatprep.subr.mxu0 %v1522
    %1598 = vmatpush1.msra.mxu0 %v1521
    %1599 = vmatprep.subr.mxu0 %v1520
    %1600 = vmatpush1.msra.mxu0 %v1519
    %1601 = vmatprep.subr.mxu0 %v1518
    %1602 = vmatpush1.msra.mxu0 %v1517
    %1603 = vmatprep.subr.mxu0 0.0
    %1604 = vmatpush2.msra.mxu0 0.0
    %1605 = vmatprep.subr.mxu0 0.0
    %1606 = vmatpush2.msra.mxu0 0.0
    %1607 = vmatprep.subr.mxu0 0.0
    %1608 = vmatpush2.msra.mxu0 0.0
    %1609 = vmatprep.subr.mxu0 0.0
    %1610 = vmatpush2.msra.mxu0 0.0
    %1611 = vmatprep.subr.mxu0 0.0
    %1612 = vmatpush2.msra.mxu0 0.0
    %1613 = vmatprep.subr.mxu0 0.0
    %1614 = vmatpush2.msra.mxu0 0.0
    %1615 = vmatprep.subr.mxu0 0.0
    %1616 = vmatpush2.msra.mxu0 0.0
    %1617 = vmatprep.subr.mxu0 0.0
    %1618 = vmatpush2.msra.mxu0 0.0
    %1619 = vmatprep.subr.mxu0 0.0
    %1620 = vmatpush2.msra.mxu0 0.0
    %1621 = vmatprep.subr.mxu0 0.0
    %1622 = vmatpush2.msra.mxu0 0.0
    %1623 = vmatprep.subr.mxu0 0.0
    %1624 = vmatpush2.msra.mxu0 0.0
    %1625 = vmatprep.subr.mxu0 0.0
    %1626 = vmatpush2.msra.mxu0 0.0
    %1627 = vmatprep.subr.mxu0 0.0
    %1628 = vmatpush2.msra.mxu0 0.0
    %1629 = vmatprep.subr.mxu0 0.0
    %1630 = vmatpush2.msra.mxu0 0.0
    %1631 = vmatprep.subr.mxu0 0.0
    %1632 = vmatpush2.msra.mxu0 0.0
    %1633 = vmatprep.subr.mxu0 0.0
    %1634 = vmatpush2.msra.mxu0 0.0
    %1635 = vmatprep.mubr.f32.mxu0 0.0
    %1636 = vmatmul.mubr.f32.gmra.mxu0 %v1567
    %v1637 = vpop.f32.mrf.mxu0
    %v1638 = vadd.f32 0.0, %v1637
    %v1639 = vpop.f32.mrf.mxu0
    %v1640 = vadd.f32 0.0, %v1639
    %1641 = vmatprep.mubr.f32.mxu0 0.0
    %1642 = vmatmul.mubr.f32.gmra.mxu0 %v1569
    %v1643 = vpop.f32.mrf.mxu0
    %v1644 = vadd.f32 0.0, %v1643
    %v1645 = vpop.f32.mrf.mxu0
    %v1646 = vadd.f32 0.0, %v1645
    %1647 = vdwg.mxu0
    %v1656 = vcombine.low %v1493, %v1494
    %v1657 = vcombine.low %v1495, %v1496
    %v1659 = vunpack.c.l.s4 1983009808
    %v1660 = vunpack.c.0.s8 %v1659
    %v1661 = vlaneseq
    %v1662 = vshrl.u32 %v1661, 7
    %v1663 = vsub.s32 %v1660, %v1662
    %v1664 = vrot.slane %v1656, %v1663
    %v1666 = vunpack.c.l.s4 1983009808
    %v1667 = vunpack.c.0.s8 %v1666
    %v1668 = vlaneseq
    %v1669 = vshrl.u32 %v1668, 7
    %v1670 = vsub.s32 %v1667, %v1669
    %v1671 = vrot.slane %v1657, %v1670
    %v1672 = vcombine.low %v1664, %v1671
    %v1673 = vcombine.low %v1497, %v1498
    %v1674 = vcombine.low %v1499, %v1500
    %v1676 = vunpack.c.l.s4 1983009808
    %v1677 = vunpack.c.0.s8 %v1676
    %v1678 = vlaneseq
    %v1679 = vshrl.u32 %v1678, 7
    %v1680 = vsub.s32 %v1677, %v1679
    %v1681 = vrot.slane %v1673, %v1680
    %v1683 = vunpack.c.l.s4 1983009808
    %v1684 = vunpack.c.0.s8 %v1683
    %v1685 = vlaneseq
    %v1686 = vshrl.u32 %v1685, 7
    %v1687 = vsub.s32 %v1684, %v1686
    %v1688 = vrot.slane %v1674, %v1687
    %v1689 = vcombine.low %v1681, %v1688
    %v1690 = vsel %vm103, %v1672, 0
    %v1692 = vsel %vm103, %v1689, 0
    %1694 = vmatprep.subr.mxu0 0.0
    %1695 = vmatpush1.msra.mxu0 0.0
    %1696 = vmatprep.subr.mxu0 0.0
    %1697 = vmatpush1.msra.mxu0 0.0
    %1698 = vmatprep.subr.mxu0 0.0
    %1699 = vmatpush1.msra.mxu0 0.0
    %1700 = vmatprep.subr.mxu0 0.0
    %1701 = vmatpush1.msra.mxu0 0.0
    %1702 = vmatprep.subr.mxu0 0.0
    %1703 = vmatpush1.msra.mxu0 0.0
    %1704 = vmatprep.subr.mxu0 0.0
    %1705 = vmatpush1.msra.mxu0 0.0
    %1706 = vmatprep.subr.mxu0 0.0
    %1707 = vmatpush1.msra.mxu0 0.0
    %1708 = vmatprep.subr.mxu0 0.0
    %1709 = vmatpush1.msra.mxu0 0.0
    %1710 = vmatprep.subr.mxu0 0.0
    %1711 = vmatpush1.msra.mxu0 0.0
    %1712 = vmatprep.subr.mxu0 0.0
    %1713 = vmatpush1.msra.mxu0 0.0
    %1714 = vmatprep.subr.mxu0 0.0
    %1715 = vmatpush1.msra.mxu0 0.0
    %1716 = vmatprep.subr.mxu0 0.0
    %1717 = vmatpush1.msra.mxu0 0.0
    %1718 = vmatprep.subr.mxu0 %v1516
    %1719 = vmatpush1.msra.mxu0 %v1515
    %1720 = vmatprep.subr.mxu0 %v1514
    %1721 = vmatpush1.msra.mxu0 %v1513
    %1722 = vmatprep.subr.mxu0 %v1512
    %1723 = vmatpush1.msra.mxu0 %v1511
    %1724 = vmatprep.subr.mxu0 %v1510
    %1725 = vmatpush1.msra.mxu0 %v1509
    %1726 = vmatprep.subr.mxu0 0.0
    %1727 = vmatpush2.msra.mxu0 0.0
    %1728 = vmatprep.subr.mxu0 0.0
    %1729 = vmatpush2.msra.mxu0 0.0
    %1730 = vmatprep.subr.mxu0 0.0
    %1731 = vmatpush2.msra.mxu0 0.0
    %1732 = vmatprep.subr.mxu0 0.0
    %1733 = vmatpush2.msra.mxu0 0.0
    %1734 = vmatprep.subr.mxu0 0.0
    %1735 = vmatpush2.msra.mxu0 0.0
    %1736 = vmatprep.subr.mxu0 0.0
    %1737 = vmatpush2.msra.mxu0 0.0
    %1738 = vmatprep.subr.mxu0 0.0
    %1739 = vmatpush2.msra.mxu0 0.0
    %1740 = vmatprep.subr.mxu0 0.0
    %1741 = vmatpush2.msra.mxu0 0.0
    %1742 = vmatprep.subr.mxu0 0.0
    %1743 = vmatpush2.msra.mxu0 0.0
    %1744 = vmatprep.subr.mxu0 0.0
    %1745 = vmatpush2.msra.mxu0 0.0
    %1746 = vmatprep.subr.mxu0 0.0
    %1747 = vmatpush2.msra.mxu0 0.0
    %1748 = vmatprep.subr.mxu0 0.0
    %1749 = vmatpush2.msra.mxu0 0.0
    %1750 = vmatprep.subr.mxu0 0.0
    %1751 = vmatpush2.msra.mxu0 0.0
    %1752 = vmatprep.subr.mxu0 0.0
    %1753 = vmatpush2.msra.mxu0 0.0
    %1754 = vmatprep.subr.mxu0 0.0
    %1755 = vmatpush2.msra.mxu0 0.0
    %1756 = vmatprep.subr.mxu0 0.0
    %1757 = vmatpush2.msra.mxu0 0.0
    %1758 = vmatprep.mubr.f32.mxu0 0.0
    %1759 = vmatmul.mubr.f32.gmra.mxu0 %v1690
    %v1760 = vpop.f32.mrf.mxu0
    %v1761 = vadd.f32 %v1638, %v1760
    %v1762 = vpop.f32.mrf.mxu0
    %v1763 = vadd.f32 %v1640, %v1762
    %1764 = vmatprep.mubr.f32.mxu0 0.0
    %1765 = vmatmul.mubr.f32.gmra.mxu0 %v1692
    %v1766 = vpop.f32.mrf.mxu0
    %v1767 = vadd.f32 %v1644, %v1766
    %v1768 = vpop.f32.mrf.mxu0
    %v1769 = vadd.f32 %v1646, %v1768
    %1770 = vdwg.mxu0
    %v1771 = vld [vmem:[%s6] sm:$0x3]
    %v1773 = vlaneseq
    %v1774 = vshrl.u32 %v1773, 7
    %v1775 = vsub.s32 0, %v1774
    %v1776 = vrot.slane %v1771, %v1775
    %v1777 = vlaneseq
    %v1778 = vshrl.u32 %v1777, 7
    %v1779 = vsub.s32 1, %v1778
    %v1780 = vrot.slane %v1771, %v1779
    %v1783 = vadd.f32 %v1761, %v1776
    %v1784 = vadd.f32 %v1763, %v1780
    %v1785 = vadd.f32 %v1767, %v1776
    %v1786 = vadd.f32 %v1769, %v1780
    %v1791 = vcombine.low %v1783, %v1784
    %v1792 = vcombine.high %v1783, %v1784
    %v1794 = vunpack.c.l.s4 1983009808
    %v1795 = vunpack.c.0.s8 %v1794
    %v1796 = vlaneseq
    %v1797 = vshrl.u32 %v1796, 7
    %v1798 = vsub.s32 %v1795, %v1797
    %v1799 = vrot.slane %v1791, %v1798
    %v1801 = vunpack.c.l.s4 1983009808
    %v1802 = vunpack.c.0.s8 %v1801
    %v1803 = vlaneseq
    %v1804 = vshrl.u32 %v1803, 7
    %v1805 = vsub.s32 %v1802, %v1804
    %v1806 = vrot.slane %v1792, %v1805
    %v1807 = vcombine.high %v1799, %v1799
    %v1808 = vcombine.high %v1806, %v1806
    %v1809 = vcombine.low %v1785, %v1786
    %v1810 = vcombine.high %v1785, %v1786
    %v1812 = vunpack.c.l.s4 1983009808
    %v1813 = vunpack.c.0.s8 %v1812
    %v1814 = vlaneseq
    %v1815 = vshrl.u32 %v1814, 7
    %v1816 = vsub.s32 %v1813, %v1815
    %v1817 = vrot.slane %v1809, %v1816
    %v1819 = vunpack.c.l.s4 1983009808
    %v1820 = vunpack.c.0.s8 %v1819
    %v1821 = vlaneseq
    %v1822 = vshrl.u32 %v1821, 7
    %v1823 = vsub.s32 %v1820, %v1822
    %v1824 = vrot.slane %v1810, %v1823
    %v1825 = vcombine.high %v1817, %v1817
    %v1826 = vcombine.high %v1824, %v1824
    %v1835 = vld [vmem:[%s5] sm:$0xff]
    %v1836 = vld [vmem:[%s5 + $0x8] sm:$0xff]
    %v1837 = vld [vmem:[%s5 + $0x10] sm:$0xff]
    %v1838 = vld [vmem:[%s5 + $0x18] sm:$0xff]
    %v1839 = vld [vmem:[%s5 + $0x20] sm:$0xff]
    %v1840 = vld [vmem:[%s5 + $0x28] sm:$0xff]
    %v1841 = vld [vmem:[%s5 + $0x30] sm:$0xff]
    %v1842 = vld [vmem:[%s5 + $0x38] sm:$0xff]
    %v1843 = vld [vmem:[%s5 + $0x40] sm:$0xff]
    %v1844 = vld [vmem:[%s5 + $0x48] sm:$0xff]
    %v1845 = vld [vmem:[%s5 + $0x50] sm:$0xff]
    %v1846 = vld [vmem:[%s5 + $0x58] sm:$0xff]
    %v1847 = vld [vmem:[%s5 + $0x60] sm:$0xff]
    %v1848 = vld [vmem:[%s5 + $0x68] sm:$0xff]
    %v1849 = vld [vmem:[%s5 + $0x70] sm:$0xff]
    %v1850 = vld [vmem:[%s5 + $0x78] sm:$0xff]
    %1851 = vmatprep.subr.mxu0 0.0
    %1852 = vmatpush1.msra.mxu0 0.0
    %1853 = vmatprep.subr.mxu0 0.0
    %1854 = vmatpush1.msra.mxu0 0.0
    %1855 = vmatprep.subr.mxu0 0.0
    %1856 = vmatpush1.msra.mxu0 0.0
    %1857 = vmatprep.subr.mxu0 0.0
    %1858 = vmatpush1.msra.mxu0 0.0
    %1859 = vmatprep.subr.mxu0 0.0
    %1860 = vmatpush1.msra.mxu0 0.0
    %1861 = vmatprep.subr.mxu0 0.0
    %1862 = vmatpush1.msra.mxu0 0.0
    %1863 = vmatprep.subr.mxu0 0.0
    %1864 = vmatpush1.msra.mxu0 0.0
    %1865 = vmatprep.subr.mxu0 0.0
    %1866 = vmatpush1.msra.mxu0 0.0
    %1867 = vmatprep.subr.mxu0 %v1850
    %1868 = vmatpush1.msra.mxu0 %v1849
    %1869 = vmatprep.subr.mxu0 %v1848
    %1870 = vmatpush1.msra.mxu0 %v1847
    %1871 = vmatprep.subr.mxu0 %v1846
    %1872 = vmatpush1.msra.mxu0 %v1845
    %1873 = vmatprep.subr.mxu0 %v1844
    %1874 = vmatpush1.msra.mxu0 %v1843
    %1875 = vmatprep.subr.mxu0 %v1842
    %1876 = vmatpush1.msra.mxu0 %v1841
    %1877 = vmatprep.subr.mxu0 %v1840
    %1878 = vmatpush1.msra.mxu0 %v1839
    %1879 = vmatprep.subr.mxu0 %v1838
    %1880 = vmatpush1.msra.mxu0 %v1837
    %1881 = vmatprep.subr.mxu0 %v1836
    %1882 = vmatpush1.msra.mxu0 %v1835
    %1883 = vmatprep.subr.mxu0 0.0
    %1884 = vmatpush2.msra.mxu0 0.0
    %1885 = vmatprep.subr.mxu0 0.0
    %1886 = vmatpush2.msra.mxu0 0.0
    %1887 = vmatprep.subr.mxu0 0.0
    %1888 = vmatpush2.msra.mxu0 0.0
    %1889 = vmatprep.subr.mxu0 0.0
    %1890 = vmatpush2.msra.mxu0 0.0
    %1891 = vmatprep.subr.mxu0 0.0
    %1892 = vmatpush2.msra.mxu0 0.0
    %1893 = vmatprep.subr.mxu0 0.0
    %1894 = vmatpush2.msra.mxu0 0.0
    %1895 = vmatprep.subr.mxu0 0.0
    %1896 = vmatpush2.msra.mxu0 0.0
    %1897 = vmatprep.subr.mxu0 0.0
    %1898 = vmatpush2.msra.mxu0 0.0
    %1899 = vmatprep.subr.mxu0 0.0
    %1900 = vmatpush2.msra.mxu0 0.0
    %1901 = vmatprep.subr.mxu0 0.0
    %1902 = vmatpush2.msra.mxu0 0.0
    %1903 = vmatprep.subr.mxu0 0.0
    %1904 = vmatpush2.msra.mxu0 0.0
    %1905 = vmatprep.subr.mxu0 0.0
    %1906 = vmatpush2.msra.mxu0 0.0
    %1907 = vmatprep.subr.mxu0 0.0
    %1908 = vmatpush2.msra.mxu0 0.0
    %1909 = vmatprep.subr.mxu0 0.0
    %1910 = vmatpush2.msra.mxu0 0.0
    %1911 = vmatprep.subr.mxu0 0.0
    %1912 = vmatpush2.msra.mxu0 0.0
    %1913 = vmatprep.subr.mxu0 0.0
    %1914 = vmatpush2.msra.mxu0 0.0
    %1915 = vmatprep.mubr.f32.mxu0 0.0
    %1916 = vmatmul.mubr.f32.gmra.mxu0 %v251
    %v1917 = vpop.f32.mrf.mxu0
    %v1918 = vadd.f32 0.0, %v1917
    %v1919 = vpop.f32.mrf.mxu0
    %v1920 = vadd.f32 0.0, %v1919
    %1921 = vdwg.mxu0
    %v1922 = vadd.f32 %v1918, %v1799
    %v1923 = vrot.slane %v1826, 2
    %v1925 = vadd.f32 %v1920, %v1923
    %v1926 = vxor.u32 %v1922, 2147483648
    %v1927 = vmul.f32 %v1926, 1.442695
    %v1928 = vpow.pop %v1927
    %v1929 = vadd.f32 %v1928, 1.0
    %v1930 = vrcp.pop %v1929
    %v1931 = vmul.f32 1.0, %v1930
    %v1932 = vtanh.pop %v1922
    %v1933 = vmul.f32 %v1931, 0.0
    %1935 = vrot.lane.b32.xlu0 %v1932, 64
    %v1936 = vpop.permute.xlu0 %1935
    %v1938 = vmul.f32 %v1931, %v1936
    %1940 = vrot.lane.b32.xlu0 %v1938, 32
    %v1941 = vpop.permute.xlu0 %1940
    %v1943 = vadd.f32 %v1933, %v1941
    %v1944 = vtanh.pop %v1943
    %1946 = vrot.lane.b32.xlu0 %v1944, 64
    %v1947 = vpop.permute.xlu0 %1946
    %v1949 = vmul.f32 %v1931, %v1947
    %v1950 = vxor.u32 %v1925, 2147483648
    %v1951 = vmul.f32 %v1950, 1.442695
    %v1952 = vpow.pop %v1951
    %v1953 = vadd.f32 %v1952, 1.0
    %v1954 = vrcp.pop %v1953
    %v1955 = vmul.f32 1.0, %v1954
    %v1956 = vtanh.pop %v1925
    %v1957 = vmul.f32 %v1955, 0.0
    %1959 = vrot.lane.b32.xlu0 %v1956, 64
    %v1960 = vpop.permute.xlu0 %1959
    %v1962 = vmul.f32 %v1955, %v1960
    %1964 = vrot.lane.b32.xlu0 %v1962, 32
    %v1965 = vpop.permute.xlu0 %1964
    %v1967 = vadd.f32 %v1957, %v1965
    %v1968 = vtanh.pop %v1967
    %1970 = vrot.lane.b32.xlu0 %v1968, 64
    %v1971 = vpop.permute.xlu0 %1970
    %v1973 = vmul.f32 %v1955, %v1971
    %1975 = vrot.lane.b32.xlu0 %v1949, 32
    %v1976 = vpop.permute.xlu0 %1975
    %1979 = vrot.lane.b32.xlu0 %v1973, 64
    %v1980 = vpop.permute.xlu0 %1979
    %v1982 = vsel %vm103, %v1976, %v1980
    %v1984 = vsel %vm249, %v1982, 0
    %1986 = vmatprep.subr.mxu0 0.0
    %1987 = vmatpush1.msra.mxu0 0.0
    %1988 = vmatprep.subr.mxu0 0.0
    %1989 = vmatpush1.msra.mxu0 0.0
    %1990 = vmatprep.subr.mxu0 0.0
    %1991 = vmatpush1.msra.mxu0 0.0
    %1992 = vmatprep.subr.mxu0 0.0
    %1993 = vmatpush1.msra.mxu0 0.0
    %1994 = vmatprep.subr.mxu0 0.0
    %1995 = vmatpush1.msra.mxu0 0.0
    %1996 = vmatprep.subr.mxu0 0.0
    %1997 = vmatpush1.msra.mxu0 0.0
    %1998 = vmatprep.subr.mxu0 0.0
    %1999 = vmatpush1.msra.mxu0 0.0
    %2000 = vmatprep.subr.mxu0 0.0
    %2001 = vmatpush1.msra.mxu0 0.0
    %2002 = vmatprep.subr.mxu0 %v1850
    %2003 = vmatpush1.msra.mxu0 %v1849
    %2004 = vmatprep.subr.mxu0 %v1848
    %2005 = vmatpush1.msra.mxu0 %v1847
    %2006 = vmatprep.subr.mxu0 %v1846
    %2007 = vmatpush1.msra.mxu0 %v1845
    %2008 = vmatprep.subr.mxu0 %v1844
    %2009 = vmatpush1.msra.mxu0 %v1843
    %2010 = vmatprep.subr.mxu0 %v1842
    %2011 = vmatpush1.msra.mxu0 %v1841
    %2012 = vmatprep.subr.mxu0 %v1840
    %2013 = vmatpush1.msra.mxu0 %v1839
    %2014 = vmatprep.subr.mxu0 %v1838
    %2015 = vmatpush1.msra.mxu0 %v1837
    %2016 = vmatprep.subr.mxu0 %v1836
    %2017 = vmatpush1.msra.mxu0 %v1835
    %2018 = vmatprep.subr.mxu0 0.0
    %2019 = vmatpush2.msra.mxu0 0.0
    %2020 = vmatprep.subr.mxu0 0.0
    %2021 = vmatpush2.msra.mxu0 0.0
    %2022 = vmatprep.subr.mxu0 0.0
    %2023 = vmatpush2.msra.mxu0 0.0
    %2024 = vmatprep.subr.mxu0 0.0
    %2025 = vmatpush2.msra.mxu0 0.0
    %2026 = vmatprep.subr.mxu0 0.0
    %2027 = vmatpush2.msra.mxu0 0.0
    %2028 = vmatprep.subr.mxu0 0.0
    %2029 = vmatpush2.msra.mxu0 0.0
    %2030 = vmatprep.subr.mxu0 0.0
    %2031 = vmatpush2.msra.mxu0 0.0
    %2032 = vmatprep.subr.mxu0 0.0
    %2033 = vmatpush2.msra.mxu0 0.0
    %2034 = vmatprep.subr.mxu0 0.0
    %2035 = vmatpush2.msra.mxu0 0.0
    %2036 = vmatprep.subr.mxu0 0.0
    %2037 = vmatpush2.msra.mxu0 0.0
    %2038 = vmatprep.subr.mxu0 0.0
    %2039 = vmatpush2.msra.mxu0 0.0
    %2040 = vmatprep.subr.mxu0 0.0
    %2041 = vmatpush2.msra.mxu0 0.0
    %2042 = vmatprep.subr.mxu0 0.0
    %2043 = vmatpush2.msra.mxu0 0.0
    %2044 = vmatprep.subr.mxu0 0.0
    %2045 = vmatpush2.msra.mxu0 0.0
    %2046 = vmatprep.subr.mxu0 0.0
    %2047 = vmatpush2.msra.mxu0 0.0
    %2048 = vmatprep.subr.mxu0 0.0
    %2049 = vmatpush2.msra.mxu0 0.0
    %2050 = vmatprep.mubr.f32.mxu0 0.0
    %2051 = vmatmul.mubr.f32.gmra.mxu0 %v1984
    %v2052 = vpop.f32.mrf.mxu0
    %v2053 = vadd.f32 0.0, %v2052
    %v2054 = vpop.f32.mrf.mxu0
    %v2055 = vadd.f32 0.0, %v2054
    %2056 = vdwg.mxu0
    %v2057 = vadd.f32 %v2053, %v1807
    %v2058 = vrot.slane %v1824, 2
    %v2060 = vadd.f32 %v2055, %v2058
    %v2061 = vxor.u32 %v2057, 2147483648
    %v2062 = vmul.f32 %v2061, 1.442695
    %v2063 = vpow.pop %v2062
    %v2064 = vadd.f32 %v2063, 1.0
    %v2065 = vrcp.pop %v2064
    %v2066 = vmul.f32 1.0, %v2065
    %v2067 = vtanh.pop %v2057
    %v2068 = vmul.f32 %v2066, %v1943
    %2070 = vrot.lane.b32.xlu0 %v2067, 64
    %v2071 = vpop.permute.xlu0 %2070
    %v2073 = vmul.f32 %v2066, %v2071
    %2075 = vrot.lane.b32.xlu0 %v2073, 32
    %v2076 = vpop.permute.xlu0 %2075
    %v2078 = vadd.f32 %v2068, %v2076
    %v2079 = vtanh.pop %v2078
    %2081 = vrot.lane.b32.xlu0 %v2079, 64
    %v2082 = vpop.permute.xlu0 %2081
    %v2084 = vmul.f32 %v2066, %v2082
    %v2085 = vxor.u32 %v2060, 2147483648
    %v2086 = vmul.f32 %v2085, 1.442695
    %v2087 = vpow.pop %v2086
    %v2088 = vadd.f32 %v2087, 1.0
    %v2089 = vrcp.pop %v2088
    %v2090 = vmul.f32 1.0, %v2089
    %v2091 = vtanh.pop %v2060
    %v2092 = vmul.f32 %v2090, %v1967
    %2094 = vrot.lane.b32.xlu0 %v2091, 64
    %v2095 = vpop.permute.xlu0 %2094
    %v2097 = vmul.f32 %v2090, %v2095
    %2099 = vrot.lane.b32.xlu0 %v2097, 32
    %v2100 = vpop.permute.xlu0 %2099
    %v2102 = vadd.f32 %v2092, %v2100
    %v2103 = vtanh.pop %v2102
    %2105 = vrot.lane.b32.xlu0 %v2103, 64
    %v2106 = vpop.permute.xlu0 %2105
    %v2108 = vmul.f32 %v2090, %v2106
    %2110 = vrot.lane.b32.xlu0 %v2084, 32
    %v2111 = vpop.permute.xlu0 %2110
    %2114 = vrot.lane.b32.xlu0 %v2108, 64
    %v2115 = vpop.permute.xlu0 %2114
    %v2117 = vsel %vm103, %v2111, %v2115
    %v2119 = vsel %vm249, %v2117, 0
    %2121 = vmatprep.subr.mxu0 0.0
    %2122 = vmatpush1.msra.mxu0 0.0
    %2123 = vmatprep.subr.mxu0 0.0
    %2124 = vmatpush1.msra.mxu0 0.0
    %2125 = vmatprep.subr.mxu0 0.0
    %2126 = vmatpush1.msra.mxu0 0.0
    %2127 = vmatprep.subr.mxu0 0.0
    %2128 = vmatpush1.msra.mxu0 0.0
    %2129 = vmatprep.subr.mxu0 0.0
    %2130 = vmatpush1.msra.mxu0 0.0
    %2131 = vmatprep.subr.mxu0 0.0
    %2132 = vmatpush1.msra.mxu0 0.0
    %2133 = vmatprep.subr.mxu0 0.0
    %2134 = vmatpush1.msra.mxu0 0.0
    %2135 = vmatprep.subr.mxu0 0.0
    %2136 = vmatpush1.msra.mxu0 0.0
    %2137 = vmatprep.subr.mxu0 %v1850
    %2138 = vmatpush1.msra.mxu0 %v1849
    %2139 = vmatprep.subr.mxu0 %v1848
    %2140 = vmatpush1.msra.mxu0 %v1847
    %2141 = vmatprep.subr.mxu0 %v1846
    %2142 = vmatpush1.msra.mxu0 %v1845
    %2143 = vmatprep.subr.mxu0 %v1844
    %2144 = vmatpush1.msra.mxu0 %v1843
    %2145 = vmatprep.subr.mxu0 %v1842
    %2146 = vmatpush1.msra.mxu0 %v1841
    %2147 = vmatprep.subr.mxu0 %v1840
    %2148 = vmatpush1.msra.mxu0 %v1839
    %2149 = vmatprep.subr.mxu0 %v1838
    %2150 = vmatpush1.msra.mxu0 %v1837
    %2151 = vmatprep.subr.mxu0 %v1836
    %2152 = vmatpush1.msra.mxu0 %v1835
    %2153 = vmatprep.subr.mxu0 0.0
    %2154 = vmatpush2.msra.mxu0 0.0
    %2155 = vmatprep.subr.mxu0 0.0
    %2156 = vmatpush2.msra.mxu0 0.0
    %2157 = vmatprep.subr.mxu0 0.0
    %2158 = vmatpush2.msra.mxu0 0.0
    %2159 = vmatprep.subr.mxu0 0.0
    %2160 = vmatpush2.msra.mxu0 0.0
    %2161 = vmatprep.subr.mxu0 0.0
    %2162 = vmatpush2.msra.mxu0 0.0
    %2163 = vmatprep.subr.mxu0 0.0
    %2164 = vmatpush2.msra.mxu0 0.0
    %2165 = vmatprep.subr.mxu0 0.0
    %2166 = vmatpush2.msra.mxu0 0.0
    %2167 = vmatprep.subr.mxu0 0.0
    %2168 = vmatpush2.msra.mxu0 0.0
    %2169 = vmatprep.subr.mxu0 0.0
    %2170 = vmatpush2.msra.mxu0 0.0
    %2171 = vmatprep.subr.mxu0 0.0
    %2172 = vmatpush2.msra.mxu0 0.0
    %2173 = vmatprep.subr.mxu0 0.0
    %2174 = vmatpush2.msra.mxu0 0.0
    %2175 = vmatprep.subr.mxu0 0.0
    %2176 = vmatpush2.msra.mxu0 0.0
    %2177 = vmatprep.subr.mxu0 0.0
    %2178 = vmatpush2.msra.mxu0 0.0
    %2179 = vmatprep.subr.mxu0 0.0
    %2180 = vmatpush2.msra.mxu0 0.0
    %2181 = vmatprep.subr.mxu0 0.0
    %2182 = vmatpush2.msra.mxu0 0.0
    %2183 = vmatprep.subr.mxu0 0.0
    %2184 = vmatpush2.msra.mxu0 0.0
    %2185 = vmatprep.mubr.f32.mxu0 0.0
    %2186 = vmatmul.mubr.f32.gmra.mxu0 %v2119
    %v2187 = vpop.f32.mrf.mxu0
    %v2188 = vadd.f32 0.0, %v2187
    %v2189 = vpop.f32.mrf.mxu0
    %v2190 = vadd.f32 0.0, %v2189
    %2191 = vdwg.mxu0
    %v2192 = vadd.f32 %v2188, %v1806
    %v2193 = vrot.slane %v1825, 2
    %v2195 = vadd.f32 %v2190, %v2193
    %v2196 = vxor.u32 %v2192, 2147483648
    %v2197 = vmul.f32 %v2196, 1.442695
    %v2198 = vpow.pop %v2197
    %v2199 = vadd.f32 %v2198, 1.0
    %v2200 = vrcp.pop %v2199
    %v2201 = vmul.f32 1.0, %v2200
    %v2202 = vtanh.pop %v2192
    %v2203 = vmul.f32 %v2201, %v2078
    %2205 = vrot.lane.b32.xlu0 %v2202, 64
    %v2206 = vpop.permute.xlu0 %2205
    %v2208 = vmul.f32 %v2201, %v2206
    %2210 = vrot.lane.b32.xlu0 %v2208, 32
    %v2211 = vpop.permute.xlu0 %2210
    %v2213 = vadd.f32 %v2203, %v2211
    %v2214 = vtanh.pop %v2213
    %2216 = vrot.lane.b32.xlu0 %v2214, 64
    %v2217 = vpop.permute.xlu0 %2216
    %v2219 = vmul.f32 %v2201, %v2217
    %v2220 = vxor.u32 %v2195, 2147483648
    %v2221 = vmul.f32 %v2220, 1.442695
    %v2222 = vpow.pop %v2221
    %v2223 = vadd.f32 %v2222, 1.0
    %v2224 = vrcp.pop %v2223
    %v2225 = vmul.f32 1.0, %v2224
    %v2226 = vtanh.pop %v2195
    %v2227 = vmul.f32 %v2225, %v2102
    %2229 = vrot.lane.b32.xlu0 %v2226, 64
    %v2230 = vpop.permute.xlu0 %2229
    %v2232 = vmul.f32 %v2225, %v2230
    %2234 = vrot.lane.b32.xlu0 %v2232, 32
    %v2235 = vpop.permute.xlu0 %2234
    %v2237 = vadd.f32 %v2227, %v2235
    %v2238 = vtanh.pop %v2237
    %2240 = vrot.lane.b32.xlu0 %v2238, 64
    %v2241 = vpop.permute.xlu0 %2240
    %v2243 = vmul.f32 %v2225, %v2241
    %2245 = vrot.lane.b32.xlu0 %v2219, 32
    %v2246 = vpop.permute.xlu0 %2245
    %2249 = vrot.lane.b32.xlu0 %v2243, 64
    %v2250 = vpop.permute.xlu0 %2249
    %v2252 = vsel %vm103, %v2246, %v2250
    %v2254 = vsel %vm249, %v2252, 0
    %2256 = vmatprep.subr.mxu0 0.0
    %2257 = vmatpush1.msra.mxu0 0.0
    %2258 = vmatprep.subr.mxu0 0.0
    %2259 = vmatpush1.msra.mxu0 0.0
    %2260 = vmatprep.subr.mxu0 0.0
    %2261 = vmatpush1.msra.mxu0 0.0
    %2262 = vmatprep.subr.mxu0 0.0
    %2263 = vmatpush1.msra.mxu0 0.0
    %2264 = vmatprep.subr.mxu0 0.0
    %2265 = vmatpush1.msra.mxu0 0.0
    %2266 = vmatprep.subr.mxu0 0.0
    %2267 = vmatpush1.msra.mxu0 0.0
    %2268 = vmatprep.subr.mxu0 0.0
    %2269 = vmatpush1.msra.mxu0 0.0
    %2270 = vmatprep.subr.mxu0 0.0
    %2271 = vmatpush1.msra.mxu0 0.0
    %2272 = vmatprep.subr.mxu0 %v1850
    %2273 = vmatpush1.msra.mxu0 %v1849
    %2274 = vmatprep.subr.mxu0 %v1848
    %2275 = vmatpush1.msra.mxu0 %v1847
    %2276 = vmatprep.subr.mxu0 %v1846
    %2277 = vmatpush1.msra.mxu0 %v1845
    %2278 = vmatprep.subr.mxu0 %v1844
    %2279 = vmatpush1.msra.mxu0 %v1843
    %2280 = vmatprep.subr.mxu0 %v1842
    %2281 = vmatpush1.msra.mxu0 %v1841
    %2282 = vmatprep.subr.mxu0 %v1840
    %2283 = vmatpush1.msra.mxu0 %v1839
    %2284 = vmatprep.subr.mxu0 %v1838
    %2285 = vmatpush1.msra.mxu0 %v1837
    %2286 = vmatprep.subr.mxu0 %v1836
    %2287 = vmatpush1.msra.mxu0 %v1835
    %2288 = vmatprep.subr.mxu0 0.0
    %2289 = vmatpush2.msra.mxu0 0.0
    %2290 = vmatprep.subr.mxu0 0.0
    %2291 = vmatpush2.msra.mxu0 0.0
    %2292 = vmatprep.subr.mxu0 0.0
    %2293 = vmatpush2.msra.mxu0 0.0
    %2294 = vmatprep.subr.mxu0 0.0
    %2295 = vmatpush2.msra.mxu0 0.0
    %2296 = vmatprep.subr.mxu0 0.0
    %2297 = vmatpush2.msra.mxu0 0.0
    %2298 = vmatprep.subr.mxu0 0.0
    %2299 = vmatpush2.msra.mxu0 0.0
    %2300 = vmatprep.subr.mxu0 0.0
    %2301 = vmatpush2.msra.mxu0 0.0
    %2302 = vmatprep.subr.mxu0 0.0
    %2303 = vmatpush2.msra.mxu0 0.0
    %2304 = vmatprep.subr.mxu0 0.0
    %2305 = vmatpush2.msra.mxu0 0.0
    %2306 = vmatprep.subr.mxu0 0.0
    %2307 = vmatpush2.msra.mxu0 0.0
    %2308 = vmatprep.subr.mxu0 0.0
    %2309 = vmatpush2.msra.mxu0 0.0
    %2310 = vmatprep.subr.mxu0 0.0
    %2311 = vmatpush2.msra.mxu0 0.0
    %2312 = vmatprep.subr.mxu0 0.0
    %2313 = vmatpush2.msra.mxu0 0.0
    %2314 = vmatprep.subr.mxu0 0.0
    %2315 = vmatpush2.msra.mxu0 0.0
    %2316 = vmatprep.subr.mxu0 0.0
    %2317 = vmatpush2.msra.mxu0 0.0
    %2318 = vmatprep.subr.mxu0 0.0
    %2319 = vmatpush2.msra.mxu0 0.0
    %2320 = vmatprep.mubr.f32.mxu0 0.0
    %2321 = vmatmul.mubr.f32.gmra.mxu0 %v2254
    %v2322 = vpop.f32.mrf.mxu0
    %v2323 = vadd.f32 0.0, %v2322
    %v2324 = vpop.f32.mrf.mxu0
    %v2325 = vadd.f32 0.0, %v2324
    %2326 = vdwg.mxu0
    %v2327 = vadd.f32 %v2323, %v1808
    %v2328 = vrot.slane %v1817, 2
    %v2330 = vadd.f32 %v2325, %v2328
    %v2331 = vxor.u32 %v2327, 2147483648
    %v2332 = vmul.f32 %v2331, 1.442695
    %v2333 = vpow.pop %v2332
    %v2334 = vadd.f32 %v2333, 1.0
    %v2335 = vrcp.pop %v2334
    %v2336 = vmul.f32 1.0, %v2335
    %v2337 = vtanh.pop %v2327
    %v2338 = vmul.f32 %v2336, %v2213
    %2340 = vrot.lane.b32.xlu0 %v2337, 64
    %v2341 = vpop.permute.xlu0 %2340
    %v2343 = vmul.f32 %v2336, %v2341
    %2345 = vrot.lane.b32.xlu0 %v2343, 32
    %v2346 = vpop.permute.xlu0 %2345
    %v2348 = vadd.f32 %v2338, %v2346
    %v2349 = vtanh.pop %v2348
    %2351 = vrot.lane.b32.xlu0 %v2349, 64
    %v2352 = vpop.permute.xlu0 %2351
    %v2354 = vmul.f32 %v2336, %v2352
    %v2355 = vxor.u32 %v2330, 2147483648
    %v2356 = vmul.f32 %v2355, 1.442695
    %v2357 = vpow.pop %v2356
    %v2358 = vadd.f32 %v2357, 1.0
    %v2359 = vrcp.pop %v2358
    %v2360 = vmul.f32 1.0, %v2359
    %v2361 = vtanh.pop %v2330
    %v2362 = vmul.f32 %v2360, %v2237
    %2364 = vrot.lane.b32.xlu0 %v2361, 64
    %v2365 = vpop.permute.xlu0 %2364
    %v2367 = vmul.f32 %v2360, %v2365
    %2369 = vrot.lane.b32.xlu0 %v2367, 32
    %v2370 = vpop.permute.xlu0 %2369
    %v2372 = vadd.f32 %v2362, %v2370
    %v2373 = vtanh.pop %v2372
    %2375 = vrot.lane.b32.xlu0 %v2373, 64
    %v2376 = vpop.permute.xlu0 %2375
    %v2378 = vmul.f32 %v2360, %v2376
    %2380 = vrot.lane.b32.xlu0 %v2354, 32
    %v2381 = vpop.permute.xlu0 %2380
    %2384 = vrot.lane.b32.xlu0 %v2378, 64
    %v2385 = vpop.permute.xlu0 %2384
    %v2387 = vsel %vm103, %v2381, %v2385
    %v2389 = vsel %vm249, %v2387, 0
    %2391 = vmatprep.subr.mxu0 0.0
    %2392 = vmatpush1.msra.mxu0 0.0
    %2393 = vmatprep.subr.mxu0 0.0
    %2394 = vmatpush1.msra.mxu0 0.0
    %2395 = vmatprep.subr.mxu0 0.0
    %2396 = vmatpush1.msra.mxu0 0.0
    %2397 = vmatprep.subr.mxu0 0.0
    %2398 = vmatpush1.msra.mxu0 0.0
    %2399 = vmatprep.subr.mxu0 0.0
    %2400 = vmatpush1.msra.mxu0 0.0
    %2401 = vmatprep.subr.mxu0 0.0
    %2402 = vmatpush1.msra.mxu0 0.0
    %2403 = vmatprep.subr.mxu0 0.0
    %2404 = vmatpush1.msra.mxu0 0.0
    %2405 = vmatprep.subr.mxu0 0.0
    %2406 = vmatpush1.msra.mxu0 0.0
    %2407 = vmatprep.subr.mxu0 %v1850
    %2408 = vmatpush1.msra.mxu0 %v1849
    %2409 = vmatprep.subr.mxu0 %v1848
    %2410 = vmatpush1.msra.mxu0 %v1847
    %2411 = vmatprep.subr.mxu0 %v1846
    %2412 = vmatpush1.msra.mxu0 %v1845
    %2413 = vmatprep.subr.mxu0 %v1844
    %2414 = vmatpush1.msra.mxu0 %v1843
    %2415 = vmatprep.subr.mxu0 %v1842
    %2416 = vmatpush1.msra.mxu0 %v1841
    %2417 = vmatprep.subr.mxu0 %v1840
    %2418 = vmatpush1.msra.mxu0 %v1839
    %2419 = vmatprep.subr.mxu0 %v1838
    %2420 = vmatpush1.msra.mxu0 %v1837
    %2421 = vmatprep.subr.mxu0 %v1836
    %2422 = vmatpush1.msra.mxu0 %v1835
    %2423 = vmatprep.subr.mxu0 0.0
    %2424 = vmatpush2.msra.mxu0 0.0
    %2425 = vmatprep.subr.mxu0 0.0
    %2426 = vmatpush2.msra.mxu0 0.0
    %2427 = vmatprep.subr.mxu0 0.0
    %2428 = vmatpush2.msra.mxu0 0.0
    %2429 = vmatprep.subr.mxu0 0.0
    %2430 = vmatpush2.msra.mxu0 0.0
    %2431 = vmatprep.subr.mxu0 0.0
    %2432 = vmatpush2.msra.mxu0 0.0
    %2433 = vmatprep.subr.mxu0 0.0
    %2434 = vmatpush2.msra.mxu0 0.0
    %2435 = vmatprep.subr.mxu0 0.0
    %2436 = vmatpush2.msra.mxu0 0.0
    %2437 = vmatprep.subr.mxu0 0.0
    %2438 = vmatpush2.msra.mxu0 0.0
    %2439 = vmatprep.subr.mxu0 0.0
    %2440 = vmatpush2.msra.mxu0 0.0
    %2441 = vmatprep.subr.mxu0 0.0
    %2442 = vmatpush2.msra.mxu0 0.0
    %2443 = vmatprep.subr.mxu0 0.0
    %2444 = vmatpush2.msra.mxu0 0.0
    %2445 = vmatprep.subr.mxu0 0.0
    %2446 = vmatpush2.msra.mxu0 0.0
    %2447 = vmatprep.subr.mxu0 0.0
    %2448 = vmatpush2.msra.mxu0 0.0
    %2449 = vmatprep.subr.mxu0 0.0
    %2450 = vmatpush2.msra.mxu0 0.0
    %2451 = vmatprep.subr.mxu0 0.0
    %2452 = vmatpush2.msra.mxu0 0.0
    %2453 = vmatprep.subr.mxu0 0.0
    %2454 = vmatpush2.msra.mxu0 0.0
    %2455 = vmatprep.mubr.f32.mxu0 0.0
    %2456 = vmatmul.mubr.f32.gmra.mxu0 %v2389
    %v2457 = vpop.f32.mrf.mxu0
    %v2458 = vadd.f32 0.0, %v2457
    %v2459 = vpop.f32.mrf.mxu0
    %v2460 = vadd.f32 0.0, %v2459
    %2461 = vdwg.mxu0
    %v2462 = vadd.f32 %v2458, %v1817
    %v2463 = vrot.slane %v1808, 2
    %v2465 = vadd.f32 %v2460, %v2463
    %v2466 = vxor.u32 %v2462, 2147483648
    %v2467 = vmul.f32 %v2466, 1.442695
    %v2468 = vpow.pop %v2467
    %v2469 = vadd.f32 %v2468, 1.0
    %v2470 = vrcp.pop %v2469
    %v2471 = vmul.f32 1.0, %v2470
    %v2472 = vtanh.pop %v2462
    %v2473 = vmul.f32 %v2471, %v2348
    %2475 = vrot.lane.b32.xlu0 %v2472, 64
    %v2476 = vpop.permute.xlu0 %2475
    %v2478 = vmul.f32 %v2471, %v2476
    %2480 = vrot.lane.b32.xlu0 %v2478, 32
    %v2481 = vpop.permute.xlu0 %2480
    %v2483 = vadd.f32 %v2473, %v2481
    %v2484 = vtanh.pop %v2483
    %2486 = vrot.lane.b32.xlu0 %v2484, 64
    %v2487 = vpop.permute.xlu0 %2486
    %v2489 = vmul.f32 %v2471, %v2487
    %v2490 = vxor.u32 %v2465, 2147483648
    %v2491 = vmul.f32 %v2490, 1.442695
    %v2492 = vpow.pop %v2491
    %v2493 = vadd.f32 %v2492, 1.0
    %v2494 = vrcp.pop %v2493
    %v2495 = vmul.f32 1.0, %v2494
    %v2496 = vtanh.pop %v2465
    %v2497 = vmul.f32 %v2495, %v2372
    %2499 = vrot.lane.b32.xlu0 %v2496, 64
    %v2500 = vpop.permute.xlu0 %2499
    %v2502 = vmul.f32 %v2495, %v2500
    %2504 = vrot.lane.b32.xlu0 %v2502, 32
    %v2505 = vpop.permute.xlu0 %2504
    %v2507 = vadd.f32 %v2497, %v2505
    %v2508 = vtanh.pop %v2507
    %2510 = vrot.lane.b32.xlu0 %v2508, 64
    %v2511 = vpop.permute.xlu0 %2510
    %v2513 = vmul.f32 %v2495, %v2511
    %2515 = vrot.lane.b32.xlu0 %v2489, 32
    %v2516 = vpop.permute.xlu0 %2515
    %2519 = vrot.lane.b32.xlu0 %v2513, 64
    %v2520 = vpop.permute.xlu0 %2519
    %v2522 = vsel %vm103, %v2516, %v2520
    %v2524 = vsel %vm249, %v2522, 0
    %2526 = vmatprep.subr.mxu0 0.0
    %2527 = vmatpush1.msra.mxu0 0.0
    %2528 = vmatprep.subr.mxu0 0.0
    %2529 = vmatpush1.msra.mxu0 0.0
    %2530 = vmatprep.subr.mxu0 0.0
    %2531 = vmatpush1.msra.mxu0 0.0
    %2532 = vmatprep.subr.mxu0 0.0
    %2533 = vmatpush1.msra.mxu0 0.0
    %2534 = vmatprep.subr.mxu0 0.0
    %2535 = vmatpush1.msra.mxu0 0.0
    %2536 = vmatprep.subr.mxu0 0.0
    %2537 = vmatpush1.msra.mxu0 0.0
    %2538 = vmatprep.subr.mxu0 0.0
    %2539 = vmatpush1.msra.mxu0 0.0
    %2540 = vmatprep.subr.mxu0 0.0
    %2541 = vmatpush1.msra.mxu0 0.0
    %2542 = vmatprep.subr.mxu0 %v1850
    %2543 = vmatpush1.msra.mxu0 %v1849
    %2544 = vmatprep.subr.mxu0 %v1848
    %2545 = vmatpush1.msra.mxu0 %v1847
    %2546 = vmatprep.subr.mxu0 %v1846
    %2547 = vmatpush1.msra.mxu0 %v1845
    %2548 = vmatprep.subr.mxu0 %v1844
    %2549 = vmatpush1.msra.mxu0 %v1843
    %2550 = vmatprep.subr.mxu0 %v1842
    %2551 = vmatpush1.msra.mxu0 %v1841
    %2552 = vmatprep.subr.mxu0 %v1840
    %2553 = vmatpush1.msra.mxu0 %v1839
    %2554 = vmatprep.subr.mxu0 %v1838
    %2555 = vmatpush1.msra.mxu0 %v1837
    %2556 = vmatprep.subr.mxu0 %v1836
    %2557 = vmatpush1.msra.mxu0 %v1835
    %2558 = vmatprep.subr.mxu0 0.0
    %2559 = vmatpush2.msra.mxu0 0.0
    %2560 = vmatprep.subr.mxu0 0.0
    %2561 = vmatpush2.msra.mxu0 0.0
    %2562 = vmatprep.subr.mxu0 0.0
    %2563 = vmatpush2.msra.mxu0 0.0
    %2564 = vmatprep.subr.mxu0 0.0
    %2565 = vmatpush2.msra.mxu0 0.0
    %2566 = vmatprep.subr.mxu0 0.0
    %2567 = vmatpush2.msra.mxu0 0.0
    %2568 = vmatprep.subr.mxu0 0.0
    %2569 = vmatpush2.msra.mxu0 0.0
    %2570 = vmatprep.subr.mxu0 0.0
    %2571 = vmatpush2.msra.mxu0 0.0
    %2572 = vmatprep.subr.mxu0 0.0
    %2573 = vmatpush2.msra.mxu0 0.0
    %2574 = vmatprep.subr.mxu0 0.0
    %2575 = vmatpush2.msra.mxu0 0.0
    %2576 = vmatprep.subr.mxu0 0.0
    %2577 = vmatpush2.msra.mxu0 0.0
    %2578 = vmatprep.subr.mxu0 0.0
    %2579 = vmatpush2.msra.mxu0 0.0
    %2580 = vmatprep.subr.mxu0 0.0
    %2581 = vmatpush2.msra.mxu0 0.0
    %2582 = vmatprep.subr.mxu0 0.0
    %2583 = vmatpush2.msra.mxu0 0.0
    %2584 = vmatprep.subr.mxu0 0.0
    %2585 = vmatpush2.msra.mxu0 0.0
    %2586 = vmatprep.subr.mxu0 0.0
    %2587 = vmatpush2.msra.mxu0 0.0
    %2588 = vmatprep.subr.mxu0 0.0
    %2589 = vmatpush2.msra.mxu0 0.0
    %2590 = vmatprep.mubr.f32.mxu0 0.0
    %2591 = vmatmul.mubr.f32.gmra.mxu0 %v2524
    %v2592 = vpop.f32.mrf.mxu0
    %v2593 = vadd.f32 0.0, %v2592
    %v2594 = vpop.f32.mrf.mxu0
    %v2595 = vadd.f32 0.0, %v2594
    %2596 = vdwg.mxu0
    %v2597 = vadd.f32 %v2593, %v1825
    %v2598 = vrot.slane %v1806, 2
    %v2600 = vadd.f32 %v2595, %v2598
    %v2601 = vxor.u32 %v2597, 2147483648
    %v2602 = vmul.f32 %v2601, 1.442695
    %v2603 = vpow.pop %v2602
    %v2604 = vadd.f32 %v2603, 1.0
    %v2605 = vrcp.pop %v2604
    %v2606 = vmul.f32 1.0, %v2605
    %v2607 = vtanh.pop %v2597
    %v2608 = vmul.f32 %v2606, %v2483
    %2610 = vrot.lane.b32.xlu0 %v2607, 64
    %v2611 = vpop.permute.xlu0 %2610
    %v2613 = vmul.f32 %v2606, %v2611
    %2615 = vrot.lane.b32.xlu0 %v2613, 32
    %v2616 = vpop.permute.xlu0 %2615
    %v2618 = vadd.f32 %v2608, %v2616
    %v2619 = vtanh.pop %v2618
    %2621 = vrot.lane.b32.xlu0 %v2619, 64
    %v2622 = vpop.permute.xlu0 %2621
    %v2624 = vmul.f32 %v2606, %v2622
    %v2625 = vxor.u32 %v2600, 2147483648
    %v2626 = vmul.f32 %v2625, 1.442695
    %v2627 = vpow.pop %v2626
    %v2628 = vadd.f32 %v2627, 1.0
    %v2629 = vrcp.pop %v2628
    %v2630 = vmul.f32 1.0, %v2629
    %v2631 = vtanh.pop %v2600
    %v2632 = vmul.f32 %v2630, %v2507
    %2634 = vrot.lane.b32.xlu0 %v2631, 64
    %v2635 = vpop.permute.xlu0 %2634
    %v2637 = vmul.f32 %v2630, %v2635
    %2639 = vrot.lane.b32.xlu0 %v2637, 32
    %v2640 = vpop.permute.xlu0 %2639
    %v2642 = vadd.f32 %v2632, %v2640
    %v2643 = vtanh.pop %v2642
    %2645 = vrot.lane.b32.xlu0 %v2643, 64
    %v2646 = vpop.permute.xlu0 %2645
    %v2648 = vmul.f32 %v2630, %v2646
    %2650 = vrot.lane.b32.xlu0 %v2624, 32
    %v2651 = vpop.permute.xlu0 %2650
    %2654 = vrot.lane.b32.xlu0 %v2648, 64
    %v2655 = vpop.permute.xlu0 %2654
    %v2657 = vsel %vm103, %v2651, %v2655
    %v2659 = vsel %vm249, %v2657, 0
    %2661 = vmatprep.subr.mxu0 0.0
    %2662 = vmatpush1.msra.mxu0 0.0
    %2663 = vmatprep.subr.mxu0 0.0
    %2664 = vmatpush1.msra.mxu0 0.0
    %2665 = vmatprep.subr.mxu0 0.0
    %2666 = vmatpush1.msra.mxu0 0.0
    %2667 = vmatprep.subr.mxu0 0.0
    %2668 = vmatpush1.msra.mxu0 0.0
    %2669 = vmatprep.subr.mxu0 0.0
    %2670 = vmatpush1.msra.mxu0 0.0
    %2671 = vmatprep.subr.mxu0 0.0
    %2672 = vmatpush1.msra.mxu0 0.0
    %2673 = vmatprep.subr.mxu0 0.0
    %2674 = vmatpush1.msra.mxu0 0.0
    %2675 = vmatprep.subr.mxu0 0.0
    %2676 = vmatpush1.msra.mxu0 0.0
    %2677 = vmatprep.subr.mxu0 %v1850
    %2678 = vmatpush1.msra.mxu0 %v1849
    %2679 = vmatprep.subr.mxu0 %v1848
    %2680 = vmatpush1.msra.mxu0 %v1847
    %2681 = vmatprep.subr.mxu0 %v1846
    %2682 = vmatpush1.msra.mxu0 %v1845
    %2683 = vmatprep.subr.mxu0 %v1844
    %2684 = vmatpush1.msra.mxu0 %v1843
    %2685 = vmatprep.subr.mxu0 %v1842
    %2686 = vmatpush1.msra.mxu0 %v1841
    %2687 = vmatprep.subr.mxu0 %v1840
    %2688 = vmatpush1.msra.mxu0 %v1839
    %2689 = vmatprep.subr.mxu0 %v1838
    %2690 = vmatpush1.msra.mxu0 %v1837
    %2691 = vmatprep.subr.mxu0 %v1836
    %2692 = vmatpush1.msra.mxu0 %v1835
    %2693 = vmatprep.subr.mxu0 0.0
    %2694 = vmatpush2.msra.mxu0 0.0
    %2695 = vmatprep.subr.mxu0 0.0
    %2696 = vmatpush2.msra.mxu0 0.0
    %2697 = vmatprep.subr.mxu0 0.0
    %2698 = vmatpush2.msra.mxu0 0.0
    %2699 = vmatprep.subr.mxu0 0.0
    %2700 = vmatpush2.msra.mxu0 0.0
    %2701 = vmatprep.subr.mxu0 0.0
    %2702 = vmatpush2.msra.mxu0 0.0
    %2703 = vmatprep.subr.mxu0 0.0
    %2704 = vmatpush2.msra.mxu0 0.0
    %2705 = vmatprep.subr.mxu0 0.0
    %2706 = vmatpush2.msra.mxu0 0.0
    %2707 = vmatprep.subr.mxu0 0.0
    %2708 = vmatpush2.msra.mxu0 0.0
    %2709 = vmatprep.subr.mxu0 0.0
    %2710 = vmatpush2.msra.mxu0 0.0
    %2711 = vmatprep.subr.mxu0 0.0
    %2712 = vmatpush2.msra.mxu0 0.0
    %2713 = vmatprep.subr.mxu0 0.0
    %2714 = vmatpush2.msra.mxu0 0.0
    %2715 = vmatprep.subr.mxu0 0.0
    %2716 = vmatpush2.msra.mxu0 0.0
    %2717 = vmatprep.subr.mxu0 0.0
    %2718 = vmatpush2.msra.mxu0 0.0
    %2719 = vmatprep.subr.mxu0 0.0
    %2720 = vmatpush2.msra.mxu0 0.0
    %2721 = vmatprep.subr.mxu0 0.0
    %2722 = vmatpush2.msra.mxu0 0.0
    %2723 = vmatprep.subr.mxu0 0.0
    %2724 = vmatpush2.msra.mxu0 0.0
    %2725 = vmatprep.mubr.f32.mxu0 0.0
    %2726 = vmatmul.mubr.f32.gmra.mxu0 %v2659
    %v2727 = vpop.f32.mrf.mxu0
    %v2728 = vadd.f32 0.0, %v2727
    %v2729 = vpop.f32.mrf.mxu0
    %v2730 = vadd.f32 0.0, %v2729
    %2731 = vdwg.mxu0
    %v2732 = vadd.f32 %v2728, %v1824
    %v2733 = vrot.slane %v1807, 2
    %v2735 = vadd.f32 %v2730, %v2733
    %v2736 = vxor.u32 %v2732, 2147483648
    %v2737 = vmul.f32 %v2736, 1.442695
    %v2738 = vpow.pop %v2737
    %v2739 = vadd.f32 %v2738, 1.0
    %v2740 = vrcp.pop %v2739
    %v2741 = vmul.f32 1.0, %v2740
    %v2742 = vtanh.pop %v2732
    %v2743 = vmul.f32 %v2741, %v2618
    %2745 = vrot.lane.b32.xlu0 %v2742, 64
    %v2746 = vpop.permute.xlu0 %2745
    %v2748 = vmul.f32 %v2741, %v2746
    %2750 = vrot.lane.b32.xlu0 %v2748, 32
    %v2751 = vpop.permute.xlu0 %2750
    %v2753 = vadd.f32 %v2743, %v2751
    %v2754 = vtanh.pop %v2753
    %2756 = vrot.lane.b32.xlu0 %v2754, 64
    %v2757 = vpop.permute.xlu0 %2756
    %v2759 = vmul.f32 %v2741, %v2757
    %v2760 = vxor.u32 %v2735, 2147483648
    %v2761 = vmul.f32 %v2760, 1.442695
    %v2762 = vpow.pop %v2761
    %v2763 = vadd.f32 %v2762, 1.0
    %v2764 = vrcp.pop %v2763
    %v2765 = vmul.f32 1.0, %v2764
    %v2766 = vtanh.pop %v2735
    %v2767 = vmul.f32 %v2765, %v2642
    %2769 = vrot.lane.b32.xlu0 %v2766, 64
    %v2770 = vpop.permute.xlu0 %2769
    %v2772 = vmul.f32 %v2765, %v2770
    %2774 = vrot.lane.b32.xlu0 %v2772, 32
    %v2775 = vpop.permute.xlu0 %2774
    %v2777 = vadd.f32 %v2767, %v2775
    %v2778 = vtanh.pop %v2777
    %2780 = vrot.lane.b32.xlu0 %v2778, 64
    %v2781 = vpop.permute.xlu0 %2780
    %v2783 = vmul.f32 %v2765, %v2781
    %2785 = vrot.lane.b32.xlu0 %v2759, 32
    %v2786 = vpop.permute.xlu0 %2785
    %2789 = vrot.lane.b32.xlu0 %v2783, 64
    %v2790 = vpop.permute.xlu0 %2789
    %v2792 = vsel %vm103, %v2786, %v2790
    %v2794 = vsel %vm249, %v2792, 0
    %2796 = vmatprep.subr.mxu0 0.0
    %2797 = vmatpush1.msra.mxu0 0.0
    %2798 = vmatprep.subr.mxu0 0.0
    %2799 = vmatpush1.msra.mxu0 0.0
    %2800 = vmatprep.subr.mxu0 0.0
    %2801 = vmatpush1.msra.mxu0 0.0
    %2802 = vmatprep.subr.mxu0 0.0
    %2803 = vmatpush1.msra.mxu0 0.0
    %2804 = vmatprep.subr.mxu0 0.0
    %2805 = vmatpush1.msra.mxu0 0.0
    %2806 = vmatprep.subr.mxu0 0.0
    %2807 = vmatpush1.msra.mxu0 0.0
    %2808 = vmatprep.subr.mxu0 0.0
    %2809 = vmatpush1.msra.mxu0 0.0
    %2810 = vmatprep.subr.mxu0 0.0
    %2811 = vmatpush1.msra.mxu0 0.0
    %2812 = vmatprep.subr.mxu0 %v1850
    %2813 = vmatpush1.msra.mxu0 %v1849
    %2814 = vmatprep.subr.mxu0 %v1848
    %2815 = vmatpush1.msra.mxu0 %v1847
    %2816 = vmatprep.subr.mxu0 %v1846
    %2817 = vmatpush1.msra.mxu0 %v1845
    %2818 = vmatprep.subr.mxu0 %v1844
    %2819 = vmatpush1.msra.mxu0 %v1843
    %2820 = vmatprep.subr.mxu0 %v1842
    %2821 = vmatpush1.msra.mxu0 %v1841
    %2822 = vmatprep.subr.mxu0 %v1840
    %2823 = vmatpush1.msra.mxu0 %v1839
    %2824 = vmatprep.subr.mxu0 %v1838
    %2825 = vmatpush1.msra.mxu0 %v1837
    %2826 = vmatprep.subr.mxu0 %v1836
    %2827 = vmatpush1.msra.mxu0 %v1835
    %2828 = vmatprep.subr.mxu0 0.0
    %2829 = vmatpush2.msra.mxu0 0.0
    %2830 = vmatprep.subr.mxu0 0.0
    %2831 = vmatpush2.msra.mxu0 0.0
    %2832 = vmatprep.subr.mxu0 0.0
    %2833 = vmatpush2.msra.mxu0 0.0
    %2834 = vmatprep.subr.mxu0 0.0
    %2835 = vmatpush2.msra.mxu0 0.0
    %2836 = vmatprep.subr.mxu0 0.0
    %2837 = vmatpush2.msra.mxu0 0.0
    %2838 = vmatprep.subr.mxu0 0.0
    %2839 = vmatpush2.msra.mxu0 0.0
    %2840 = vmatprep.subr.mxu0 0.0
    %2841 = vmatpush2.msra.mxu0 0.0
    %2842 = vmatprep.subr.mxu0 0.0
    %2843 = vmatpush2.msra.mxu0 0.0
    %2844 = vmatprep.subr.mxu0 0.0
    %2845 = vmatpush2.msra.mxu0 0.0
    %2846 = vmatprep.subr.mxu0 0.0
    %2847 = vmatpush2.msra.mxu0 0.0
    %2848 = vmatprep.subr.mxu0 0.0
    %2849 = vmatpush2.msra.mxu0 0.0
    %2850 = vmatprep.subr.mxu0 0.0
    %2851 = vmatpush2.msra.mxu0 0.0
    %2852 = vmatprep.subr.mxu0 0.0
    %2853 = vmatpush2.msra.mxu0 0.0
    %2854 = vmatprep.subr.mxu0 0.0
    %2855 = vmatpush2.msra.mxu0 0.0
    %2856 = vmatprep.subr.mxu0 0.0
    %2857 = vmatpush2.msra.mxu0 0.0
    %2858 = vmatprep.subr.mxu0 0.0
    %2859 = vmatpush2.msra.mxu0 0.0
    %2860 = vmatprep.mubr.f32.mxu0 0.0
    %2861 = vmatmul.mubr.f32.gmra.mxu0 %v2794
    %v2862 = vpop.f32.mrf.mxu0
    %v2863 = vadd.f32 0.0, %v2862
    %v2864 = vpop.f32.mrf.mxu0
    %v2865 = vadd.f32 0.0, %v2864
    %2866 = vdwg.mxu0
    %v2867 = vadd.f32 %v2863, %v1826
    %v2868 = vrot.slane %v1799, 2
    %v2870 = vadd.f32 %v2865, %v2868
    %v2871 = vxor.u32 %v2867, 2147483648
    %v2872 = vmul.f32 %v2871, 1.442695
    %v2873 = vpow.pop %v2872
    %v2874 = vadd.f32 %v2873, 1.0
    %v2875 = vrcp.pop %v2874
    %v2876 = vmul.f32 1.0, %v2875
    %v2877 = vtanh.pop %v2867
    %v2878 = vmul.f32 %v2876, %v2753
    %2880 = vrot.lane.b32.xlu0 %v2877, 64
    %v2881 = vpop.permute.xlu0 %2880
    %v2883 = vmul.f32 %v2876, %v2881
    %2885 = vrot.lane.b32.xlu0 %v2883, 32
    %v2886 = vpop.permute.xlu0 %2885
    %v2888 = vadd.f32 %v2878, %v2886
    %v2889 = vtanh.pop %v2888
    %2891 = vrot.lane.b32.xlu0 %v2889, 64
    %v2892 = vpop.permute.xlu0 %2891
    %v2894 = vmul.f32 %v2876, %v2892
    %v2895 = vxor.u32 %v2870, 2147483648
    %v2896 = vmul.f32 %v2895, 1.442695
    %v2897 = vpow.pop %v2896
    %v2898 = vadd.f32 %v2897, 1.0
    %v2899 = vrcp.pop %v2898
    %v2900 = vmul.f32 1.0, %v2899
    %v2901 = vtanh.pop %v2870
    %v2902 = vmul.f32 %v2900, %v2777
    %2904 = vrot.lane.b32.xlu0 %v2901, 64
    %v2905 = vpop.permute.xlu0 %2904
    %v2907 = vmul.f32 %v2900, %v2905
    %2909 = vrot.lane.b32.xlu0 %v2907, 32
    %v2910 = vpop.permute.xlu0 %2909
    %v2912 = vadd.f32 %v2902, %v2910
    %v2913 = vtanh.pop %v2912
    %2915 = vrot.lane.b32.xlu0 %v2913, 64
    %v2916 = vpop.permute.xlu0 %2915
    %v2918 = vmul.f32 %v2900, %v2916
    %2920 = vrot.lane.b32.xlu0 %v2918, 64
    %v2921 = vpop.permute.xlu0 %2920
    %2924 = vrot.lane.b32.xlu0 %v2894, 96
    %v2925 = vpop.permute.xlu0 %2924
    %v2927 = vsel %vm103, %v1976, %v2921
    %v2928 = vsel %vm249, %v2927, %v2925
    %vm2929 = vcmask 785408
    %v2930 = vsel %vm2929, %v2928, %v1973
    %v2931 = vld [vmem:[%s7] sm:$0xff]
    %v2932 = vld [vmem:[%s7 + $0x8] sm:$0xff]
    %v2933 = vld [vmem:[%s7 + $0x10] sm:$0xff]
    %v2934 = vld [vmem:[%s7 + $0x18] sm:$0xff]
    %v2935 = vld [vmem:[%s7 + $0x20] sm:$0xff]
    %v2936 = vld [vmem:[%s7 + $0x28] sm:$0xff]
    %v2937 = vld [vmem:[%s7 + $0x30] sm:$0xff]
    %v2938 = vld [vmem:[%s7 + $0x38] sm:$0xff]
    %v2939 = vld [vmem:[%s7 + $0x40] sm:$0xff]
    %v2940 = vld [vmem:[%s7 + $0x48] sm:$0xff]
    %v2941 = vld [vmem:[%s7 + $0x50] sm:$0xff]
    %v2942 = vld [vmem:[%s7 + $0x58] sm:$0xff]
    %v2943 = vld [vmem:[%s7 + $0x60] sm:$0xff]
    %v2944 = vld [vmem:[%s7 + $0x68] sm:$0xff]
    %v2945 = vld [vmem:[%s7 + $0x70] sm:$0xff]
    %v2946 = vld [vmem:[%s7 + $0x78] sm:$0xff]
    %v2947 = vld [vmem:[%s8] sm:$0x1]
    %v2949 = vlaneseq
    %v2950 = vshrl.u32 %v2949, 7
    %v2951 = vsub.s32 0, %v2950
    %v2952 = vrot.slane %v2947, %v2951
    %2954 = vmatprep.subr.mxu0 0.0
    %2955 = vmatpush1.msra.mxu0 %v2946
    %2956 = vmatprep.subr.mxu0 0.0
    %2957 = vmatpush1.msra.mxu0 %v2945
    %2958 = vmatprep.subr.mxu0 0.0
    %2959 = vmatpush1.msra.mxu0 %v2944
    %2960 = vmatprep.subr.mxu0 0.0
    %2961 = vmatpush1.msra.mxu0 %v2943
    %2962 = vmatprep.subr.mxu0 0.0
    %2963 = vmatpush1.msra.mxu0 %v2942
    %2964 = vmatprep.subr.mxu0 0.0
    %2965 = vmatpush1.msra.mxu0 %v2941
    %2966 = vmatprep.subr.mxu0 0.0
    %2967 = vmatpush1.msra.mxu0 %v2940
    %2968 = vmatprep.subr.mxu0 0.0
    %2969 = vmatpush1.msra.mxu0 %v2939
    %2970 = vmatprep.subr.mxu0 0.0
    %2971 = vmatpush1.msra.mxu0 %v2938
    %2972 = vmatprep.subr.mxu0 0.0
    %2973 = vmatpush1.msra.mxu0 %v2937
    %2974 = vmatprep.subr.mxu0 0.0
    %2975 = vmatpush1.msra.mxu0 %v2936
    %2976 = vmatprep.subr.mxu0 0.0
    %2977 = vmatpush1.msra.mxu0 %v2935
    %2978 = vmatprep.subr.mxu0 0.0
    %2979 = vmatpush1.msra.mxu0 %v2934
    %2980 = vmatprep.subr.mxu0 0.0
    %2981 = vmatpush1.msra.mxu0 %v2933
    %2982 = vmatprep.subr.mxu0 0.0
    %2983 = vmatpush1.msra.mxu0 %v2932
    %2984 = vmatprep.subr.mxu0 0.0
    %2985 = vmatpush1.msra.mxu0 %v2931
    %2986 = vmatprep.subr.mxu0 0.0
    %2987 = vmatpush2.msra.mxu0 0.0
    %2988 = vmatprep.subr.mxu0 0.0
    %2989 = vmatpush2.msra.mxu0 0.0
    %2990 = vmatprep.subr.mxu0 0.0
    %2991 = vmatpush2.msra.mxu0 0.0
    %2992 = vmatprep.subr.mxu0 0.0
    %2993 = vmatpush2.msra.mxu0 0.0
    %2994 = vmatprep.subr.mxu0 0.0
    %2995 = vmatpush2.msra.mxu0 0.0
    %2996 = vmatprep.subr.mxu0 0.0
    %2997 = vmatpush2.msra.mxu0 0.0
    %2998 = vmatprep.subr.mxu0 0.0
    %2999 = vmatpush2.msra.mxu0 0.0
    %3000 = vmatprep.subr.mxu0 0.0
    %3001 = vmatpush2.msra.mxu0 0.0
    %3002 = vmatprep.subr.mxu0 0.0
    %3003 = vmatpush2.msra.mxu0 0.0
    %3004 = vmatprep.subr.mxu0 0.0
    %3005 = vmatpush2.msra.mxu0 0.0
    %3006 = vmatprep.subr.mxu0 0.0
    %3007 = vmatpush2.msra.mxu0 0.0
    %3008 = vmatprep.subr.mxu0 0.0
    %3009 = vmatpush2.msra.mxu0 0.0
    %3010 = vmatprep.subr.mxu0 0.0
    %3011 = vmatpush2.msra.mxu0 0.0
    %3012 = vmatprep.subr.mxu0 0.0
    %3013 = vmatpush2.msra.mxu0 0.0
    %3014 = vmatprep.subr.mxu0 0.0
    %3015 = vmatpush2.msra.mxu0 0.0
    %3016 = vmatprep.subr.mxu0 0.0
    %3017 = vmatpush2.msra.mxu0 0.0
    %3018 = vmatprep.mubr.f32.mxu0 0.0
    %3019 = vmatmul.mubr.f32.gmra.mxu0 %v2930
    %v3020 = vpop.f32.mrf.mxu0
    %v3021 = vadd.f32 %v2952, %v3020
    %v3022 = vpop.f32.mrf.mxu0
    %3023 = vdwg.mxu0
    %vm3024 = vcmask 9216
    %3025 = vst.msk [vmem:[#allocation4] sm:$0x3] %vm3024, %v3021
    // Predicated region
    $region38: #{sentiment_net_forward.1} parent=1 // pred_check
      _
    $region39: #{sentiment_net_forward.1} parent=1 // pred_check_branch
      %3027 = sbr.rel (0) target = $region41
    $region40: #{sentiment_net_forward.1} parent=1 // pred_region
      %s3029 = ssub.s32 32, 32
      %3030 = vsyncadd [#allocation5], %s3029
      %s3032 = sshll.u32 [#allocation4], 4
      %s3033 = int_to_ptr.vmem [resolvable:$true] %s3032
      %3035 = dma.vmem_to_hbm [thread:$0]  %s3033, 32, %s9, [#allocation5]
    $region41: #{sentiment_net_forward.1} parent=1 // pred_fallthru
      _
    // Predicated region
    $region42: #{sentiment_net_forward.1} parent=1 // pred_check
      _
    $region43: #{sentiment_net_forward.1} parent=1 // pred_check_branch
      %3037 = sbr.rel (0) target = $region45
    $region44: #{sentiment_net_forward.1} parent=1 // pred_region
      %3038 = dma.done [#allocation5], 32
    $region45: #{sentiment_net_forward.1} parent=1 // pred_fallthru
      _
    %3039 = vsyncpa [#allocation5], 1

</llo_original>
